<compile_context>
chip_gen: v6e
topology: v6e:2x2x1
jax: 0.10.0
libtpu: 0.0.40
codegen_flags: <defaults>
</compile_context>

<pallas_src>
import functools

import jax
import jax.numpy as jnp
from jax import lax
from jax.experimental import pallas as pl
from jax.experimental.pallas import tpu as pltpu

LN_EPS = 1e-5  # PyTorch LayerNorm default eps


# --------------------------------------------------------------------------
# Fused kernel: one grid step == one batch element, activations are (TC, HW)
# --------------------------------------------------------------------------
def _fused_kernel(a_cen_ref, m_avg_ref, wkv_ref, w1_ref, w2_ref,
                  bias_ref, cmask_ref, x_ref, out_ref, *, T, C, H, W):
    HW = H * W
    TC = T * C
    f32 = jnp.float32

    x = x_ref[0].astype(f32)                                       # (TC, HW)

    # ---- temporal difference + LayerNorm over the frame axis (as matmuls) ----
    # a_cen = (I - mean_over_frames) @ (roll_frames - I)  ->  dq - mean_t(dq)
    cen = jnp.dot(a_cen_ref[...], x, preferred_element_type=f32)   # (TC, HW)
    var = jnp.dot(m_avg_ref[...], cen * cen, preferred_element_type=f32)
    dqn = cen * lax.rsqrt(var + LN_EPS)                            # (TC, HW)

    # ---- Linear T -> 2T: single fused MXU matmul, K already carries the
    #      (H*W)^-0.5 attention scale folded in by the wrapper.
    kv = jnp.dot(wkv_ref[...], dqn, preferred_element_type=f32)    # (2TC, HW)
    k = kv[:TC]                                                    # sublane-tile aligned slice
    v = kv[TC:]

    # ---- per-frame channel attention, block-diagonal over frames ----
    qk = lax.dot_general(dqn, k, (((1,), (1,)), ((), ())),
                         preferred_element_type=f32)               # (TC, TC)
    logits = qk + bias_ref[...]                                    # mask cross-frame pairs
    m = jnp.max(logits, axis=-1, keepdims=True)
    e = jnp.exp(logits - m)
    attn = e / jnp.sum(e, axis=-1, keepdims=True)                  # exact 0 off-block
    td = jnp.dot(attn, v, preferred_element_type=f32)              # (TC, HW)

    # ---- conv3x3 -> ReLU -> conv3x3 (stride 1, pad 1, no bias) ----
    # Shifts are taken along the flattened-HW lane axis (static lane rolls);
    # precomputed masks zero pixels whose 3x3 neighbour falls outside the image.
    def conv3x3(y, w_ref):
        acc = None
        for kidx in range(9):
            kh, kw = divmod(kidx, 3)
            off = (kh - 1) * W + (kw - 1)
            if off == 0:
                sv = y
            else:
                # sv[:, p] = y[:, (p + off) % HW]; wrap positions are masked.
                sv = jnp.roll(y, -off, axis=1) * cmask_ref[kidx]
            t = jnp.dot(w_ref[kidx], sv, preferred_element_type=f32)
            acc = t if acc is None else acc + t
        return acc

    h1 = jnp.maximum(conv3x3(td, w1_ref), 0.0)
    h2 = conv3x3(h1, w2_ref)

    # ---- fused residual add + single lane-dense store ----
    out_ref[0] = (x + h2).astype(out_ref.dtype)


def _const_spec(shape):
    return pl.BlockSpec(shape, lambda b: (0,) * len(shape))


# --------------------------------------------------------------------------
# Wrapper: builds the small constant operators once, no pads / no transposes
# --------------------------------------------------------------------------
def difference_aware_ops(x, params, num_frames):
    """x: (B*T, C, H, W) float32, batch laid out as (b t). Matches PyTorch forward."""
    if num_frames == 1:
        return x
    T = num_frames
    BT, C, H, W = x.shape
    B = BT // T
    HW, TC = H * W, T * C
    f32 = jnp.float32

    wkv = params["wkv"].astype(f32)           # (2T, T)
    w1 = params["w_conv1"].astype(f32)        # (T, T, 3, 3)
    w2 = params["w_conv2"].astype(f32)        # (T, T, 3, 3)

    eye_c = jnp.eye(C, dtype=f32)
    eye_tc = jnp.eye(TC, dtype=f32)

    # Row-space operators in the flat (t*C + c) layout.
    roll_rows = jnp.roll(eye_tc, C, axis=0)                       # x_prev = R @ x
    m_avg = jnp.kron(jnp.ones((T, T), f32), eye_c) / float(T)     # mean over frames
    a_cen = (eye_tc - m_avg) @ (roll_rows - eye_tc)               # centered temporal diff

    # Kronecker-expanded fused KV weight: fold the channel axis into matmul M/K
    # dims and fold the (H*W)^-0.5 attention scale into the K half.
    scale = float(HW) ** -0.5
    wkv_scaled = jnp.concatenate([wkv[:T] * scale, wkv[T:]], axis=0)   # (2T, T)
    wkv_exp = jnp.kron(wkv_scaled, eye_c)                              # (2TC, TC)

    w1_exp = jnp.stack([jnp.kron(w1[:, :, kh, kw], eye_c)
                        for kh in range(3) for kw in range(3)])   # (9, TC, TC)
    w2_exp = jnp.stack([jnp.kron(w2[:, :, kh, kw], eye_c)
                        for kh in range(3) for kw in range(3)])   # (9, TC, TC)

    # Additive attention mask: 0 for same-frame channel pairs, -1e30 across frames.
    attn_bias = (jnp.kron(jnp.eye(T, dtype=f32), jnp.ones((C, C), f32)) - 1.0) * 1e30

    # 3x3 halo masks on the flattened H*W lane axis (per tap, dest-indexed).
    hh = jnp.arange(HW, dtype=jnp.int32) // W
    ww = jnp.arange(HW, dtype=jnp.int32) % W
    cmask = jnp.stack([((hh + (kh - 1) >= 0) & (hh + (kh - 1) < H) &
                        (ww + (kw - 1) >= 0) & (ww + (kw - 1) < W)).astype(f32)
                       for kh in range(3) for kw in range(3)]).reshape(9, 1, HW)

    x_flat = x.reshape(B, TC, HW).astype(f32)                     # contiguous, free

    kernel = functools.partial(_fused_kernel, T=T, C=C, H=H, W=W)
    out = pl.pallas_call(
        kernel,
        out_shape=jax.ShapeDtypeStruct((B, TC, HW), f32),
        grid=(B,),
        in_specs=[
            _const_spec((TC, TC)),            # a_cen
            _const_spec((TC, TC)),            # m_avg
            _const_spec((2 * TC, TC)),        # wkv_exp (K scaled)
            _const_spec((9, TC, TC)),         # w1_exp
            _const_spec((9, TC, TC)),         # w2_exp
            _const_spec((TC, TC)),            # attn_bias
            _const_spec((9, 1, HW)),          # cmask
            pl.BlockSpec((1, TC, HW), lambda b: (b, 0, 0)),       # x
        ],
        out_specs=pl.BlockSpec((1, TC, HW), lambda b: (b, 0, 0)),
        compiler_params=pltpu.CompilerParams(dimension_semantics=("parallel",)),
    )(a_cen, m_avg, wkv_exp, w1_exp, w2_exp, attn_bias, cmask, x_flat)

    return out.reshape(BT, C, H, W).astype(x.dtype)               # contiguous, free


# --------------------------------------------------------------------------
# Pure-JAX reference (mirrors the PyTorch math) for validation
# --------------------------------------------------------------------------
def reference_forward(x, params, num_frames):
    if num_frames == 1:
        return x
    T = num_frames
    BT, C, H, W = x.shape
    B = BT // T
    wkv, w1, w2 = params["wkv"], params["w_conv1"], params["w_conv2"]
    hp = jax.lax.Precision.HIGHEST

    u = x.reshape(B, T, C, H, W).transpose(0, 2, 3, 4, 1)         # b c h w t
    s = jnp.roll(u, 1, axis=-1)
    dq = s - u
    mean = dq.mean(-1, keepdims=True)
    var = ((dq - mean) ** 2).mean(-1, keepdims=True)
    dqn = (dq - mean) / jnp.sqrt(var + LN_EPS)
    kv = jnp.einsum('bchwt,st->bchws', dqn, wkv, precision=hp)
    dk, dv = kv[..., :T], kv[..., T:]
    qk = jnp.einsum('bxhwt,byhwt->bxyt', dqn, dk, precision=hp) * (H * W) ** -0.5
    attn = jax.nn.softmax(qk, axis=2)
    td = jnp.einsum('bxyt,byhwt->bxhwt', attn, dv, precision=hp)
    td = td.transpose(0, 1, 4, 2, 3).reshape(B * C, T, H, W)

    def conv(z, w):
        return lax.conv_general_dilated(
            z, w, (1, 1), ((1, 1), (1, 1)),
            dimension_numbers=('NCHW', 'OIHW', 'NCHW'), precision=hp)

    y = conv(jax.nn.relu(conv(td, w1)), w2)
    y = y.reshape(B, C, T, H, W).transpose(0, 2, 1, 3, 4).reshape(BT, C, H, W)
    return x + y


if __name__ == "__main__":
    B, T, C, H, W = 2, 4, 4, 16, 16      # num_frames = T = 4
    key = jax.random.PRNGKey(0)
    kx, kkv, k1, k2 = jax.random.split(key, 4)

    x = jax.random.normal(kx, (B * T, C, H, W), jnp.float32)
    params = {
        # nn.Linear(T, 2T, bias=False).weight -> (2T, T)
        "wkv": jax.random.normal(kkv, (2 * T, T), jnp.float32) * 0.1,
        # nn.Conv2d(T, T, 3, 1, 1, bias=False).weight -> (T, T, 3, 3)
        "w_conv1": jax.random.normal(k1, (T, T, 3, 3), jnp.float32) * 0.1,
        "w_conv2": jax.random.normal(k2, (T, T, 3, 3), jnp.float32) * 0.1,
    }

    out = jax.block_until_ready(difference_aware_ops(x, params, T))
    ref = jax.block_until_ready(reference_forward(x, params, T))

    assert out.shape == x.shape
    max_err = float(jnp.max(jnp.abs(out - ref)))
    assert jnp.allclose(out, ref, atol=1e-3, rtol=1e-3), max_err
    print("KERNEL_OK")
</pallas_src>

<mosaic_0001>
module attributes {stable_mosaic.version = 11 : i64} {
  func.func @_fused_kernel(%arg0: i32, %arg1: memref<16x16xf32, #tpu.memory_space<vmem>>, %arg2: memref<16x16xf32, #tpu.memory_space<vmem>>, %arg3: memref<32x16xf32, #tpu.memory_space<vmem>>, %arg4: memref<9x16x16xf32, #tpu.memory_space<vmem>>, %arg5: memref<9x16x16xf32, #tpu.memory_space<vmem>>, %arg6: memref<16x16xf32, #tpu.memory_space<vmem>>, %arg7: memref<9x1x256xf32, #tpu.memory_space<vmem>>, %arg8: memref<1x16x256xf32, #tpu.memory_space<vmem>>, %arg9: memref<1x16x256xf32, #tpu.memory_space<vmem>>) attributes {dimension_semantics = [#tpu.dimension_semantics<parallel>], iteration_bounds = array<i64: 2>, scalar_prefetch = 0 : i64, scratch_operands = 0 : i64, tpu.core_type = #tpu.core_type<tc>, window_params = [{pipeline_mode = #tpu.pipeline_mode<synchronous>, transform_indices = @transform_0, window_bounds = array<i64: 16, 16>}, {pipeline_mode = #tpu.pipeline_mode<synchronous>, transform_indices = @transform_1, window_bounds = array<i64: 16, 16>}, {pipeline_mode = #tpu.pipeline_mode<synchronous>, transform_indices = @transform_2, window_bounds = array<i64: 32, 16>}, {pipeline_mode = #tpu.pipeline_mode<synchronous>, transform_indices = @transform_3, window_bounds = array<i64: 9, 16, 16>}, {pipeline_mode = #tpu.pipeline_mode<synchronous>, transform_indices = @transform_4, window_bounds = array<i64: 9, 16, 16>}, {pipeline_mode = #tpu.pipeline_mode<synchronous>, transform_indices = @transform_5, window_bounds = array<i64: 16, 16>}, {pipeline_mode = #tpu.pipeline_mode<synchronous>, transform_indices = @transform_6, window_bounds = array<i64: 9, 1, 256>}, {transform_indices = @transform_7, window_bounds = array<i64: 1, 16, 256>}, {transform_indices = @transform_8, window_bounds = array<i64: 1, 16, 256>}]} {
    %c0 = arith.constant 0 : index
    %c0_0 = arith.constant 0 : index
    %c0_1 = arith.constant 0 : index
    %0 = vector.load %arg8[%c0, %c0_0, %c0_1] : memref<1x16x256xf32, #tpu.memory_space<vmem>>, vector<1x16x256xf32>
    %1 = vector.shape_cast %0 : vector<1x16x256xf32> to vector<16x256xf32>
    %c0_2 = arith.constant 0 : index
    %c0_3 = arith.constant 0 : index
    %2 = vector.load %arg1[%c0_2, %c0_3] : memref<16x16xf32, #tpu.memory_space<vmem>>, vector<16x16xf32>
    %cst = arith.constant dense<0.000000e+00> : vector<16x256xf32>
    %3 = tpu.matmul %2, %1, %cst {dimension_numbers = #tpu.dot_dimension_numbers<[1], [0], [0], [1], [0, 0, 1, 1], [], []>} : vector<16x16xf32>, vector<16x256xf32>, vector<16x256xf32> -> vector<16x256xf32>
    %c0_4 = arith.constant 0 : index
    %c0_5 = arith.constant 0 : index
    %4 = vector.load %arg2[%c0_4, %c0_5] : memref<16x16xf32, #tpu.memory_space<vmem>>, vector<16x16xf32>
    %5 = arith.mulf %3, %3 : vector<16x256xf32>
    %cst_6 = arith.constant dense<0.000000e+00> : vector<16x256xf32>
    %6 = tpu.matmul %4, %5, %cst_6 {dimension_numbers = #tpu.dot_dimension_numbers<[1], [0], [0], [1], [0, 0, 1, 1], [], []>} : vector<16x16xf32>, vector<16x256xf32>, vector<16x256xf32> -> vector<16x256xf32>
    %cst_7 = arith.constant 9.99999974E-6 : f32
    %7 = vector.broadcast %cst_7 : f32 to vector<16x256xf32>
    %8 = arith.addf %6, %7 : vector<16x256xf32>
    %9 = math.rsqrt %8 : vector<16x256xf32>
    %10 = arith.mulf %3, %9 : vector<16x256xf32>
    %c0_8 = arith.constant 0 : index
    %c0_9 = arith.constant 0 : index
    %11 = vector.load %arg3[%c0_8, %c0_9] : memref<32x16xf32, #tpu.memory_space<vmem>>, vector<32x16xf32>
    %cst_10 = arith.constant dense<0.000000e+00> : vector<32x256xf32>
    %12 = tpu.matmul %11, %10, %cst_10 {dimension_numbers = #tpu.dot_dimension_numbers<[1], [0], [0], [1], [0, 0, 1, 1], [], []>} : vector<32x16xf32>, vector<16x256xf32>, vector<32x256xf32> -> vector<32x256xf32>
    %13 = vector.extract_strided_slice %12 {offsets = [0, 0], sizes = [16, 256], strides = [1, 1]} : vector<32x256xf32> to vector<16x256xf32>
    %14 = vector.extract_strided_slice %12 {offsets = [16, 0], sizes = [16, 256], strides = [1, 1]} : vector<32x256xf32> to vector<16x256xf32>
    %cst_11 = arith.constant dense<0.000000e+00> : vector<16x16xf32>
    %15 = tpu.matmul %10, %13, %cst_11 {dimension_numbers = #tpu.dot_dimension_numbers<[1], [1], [0], [0], [0, 0, 1, 0], [], []>} : vector<16x256xf32>, vector<16x256xf32>, vector<16x16xf32> -> vector<16x16xf32>
    %c0_12 = arith.constant 0 : index
    %c0_13 = arith.constant 0 : index
    %16 = vector.load %arg6[%c0_12, %c0_13] : memref<16x16xf32, #tpu.memory_space<vmem>>, vector<16x16xf32>
    %17 = arith.addf %15, %16 : vector<16x16xf32>
    %cst_14 = arith.constant dense<0xFF800000> : vector<16xf32>
    %18 = vector.multi_reduction <maximumf>, %17, %cst_14 [1] : vector<16x16xf32> to vector<16xf32>
    %19 = vector.shape_cast %18 : vector<16xf32> to vector<16x1xf32>
    %20 = vector.broadcast %19 : vector<16x1xf32> to vector<16x16xf32>
    %21 = arith.subf %17, %20 : vector<16x16xf32>
    %22 = math.exp %21 : vector<16x16xf32>
    %cst_15 = arith.constant dense<0.000000e+00> : vector<16xf32>
    %23 = vector.multi_reduction <add>, %22, %cst_15 [1] : vector<16x16xf32> to vector<16xf32>
    %24 = vector.shape_cast %23 : vector<16xf32> to vector<16x1xf32>
    %25 = vector.broadcast %24 : vector<16x1xf32> to vector<16x16xf32>
    %26 = arith.divf %22, %25 : vector<16x16xf32>
    %cst_16 = arith.constant dense<0.000000e+00> : vector<16x256xf32>
    %27 = tpu.matmul %26, %14, %cst_16 {dimension_numbers = #tpu.dot_dimension_numbers<[1], [0], [0], [1], [0, 0, 1, 1], [], []>} : vector<16x16xf32>, vector<16x256xf32>, vector<16x256xf32> -> vector<16x256xf32>
    %28 = vector.extract_strided_slice %27 {offsets = [0, 239], sizes = [16, 17], strides = [1, 1]} : vector<16x256xf32> to vector<16x17xf32>
    %29 = vector.extract_strided_slice %27 {offsets = [0, 0], sizes = [16, 239], strides = [1, 1]} : vector<16x256xf32> to vector<16x239xf32>
    %30 = tpu.concatenate %28, %29 in 1 : vector<16x17xf32>, vector<16x239xf32> -> vector<16x256xf32>
    %c0_17 = arith.constant 0 : index
    %c0_18 = arith.constant 0 : index
    %c0_19 = arith.constant 0 : index
    %31 = vector.load %arg7[%c0_17, %c0_18, %c0_19] : memref<9x1x256xf32, #tpu.memory_space<vmem>>, vector<1x1x256xf32>
    %32 = vector.shape_cast %31 : vector<1x1x256xf32> to vector<1x256xf32>
    %33 = vector.broadcast %32 : vector<1x256xf32> to vector<16x256xf32>
    %34 = arith.mulf %30, %33 : vector<16x256xf32>
    %c0_20 = arith.constant 0 : index
    %c0_21 = arith.constant 0 : index
    %c0_22 = arith.constant 0 : index
    %35 = vector.load %arg4[%c0_20, %c0_21, %c0_22] : memref<9x16x16xf32, #tpu.memory_space<vmem>>, vector<1x16x16xf32>
    %36 = vector.shape_cast %35 : vector<1x16x16xf32> to vector<16x16xf32>
    %cst_23 = arith.constant dense<0.000000e+00> : vector<16x256xf32>
    %37 = tpu.matmul %36, %34, %cst_23 {dimension_numbers = #tpu.dot_dimension_numbers<[1], [0], [0], [1], [0, 0, 1, 1], [], []>} : vector<16x16xf32>, vector<16x256xf32>, vector<16x256xf32> -> vector<16x256xf32>
    %38 = vector.extract_strided_slice %27 {offsets = [0, 240], sizes = [16, 16], strides = [1, 1]} : vector<16x256xf32> to vector<16x16xf32>
    %39 = vector.extract_strided_slice %27 {offsets = [0, 0], sizes = [16, 240], strides = [1, 1]} : vector<16x256xf32> to vector<16x240xf32>
    %40 = tpu.concatenate %38, %39 in 1 : vector<16x16xf32>, vector<16x240xf32> -> vector<16x256xf32>
    %c1 = arith.constant 1 : index
    %c0_24 = arith.constant 0 : index
    %c0_25 = arith.constant 0 : index
    %41 = vector.load %arg7[%c1, %c0_24, %c0_25] : memref<9x1x256xf32, #tpu.memory_space<vmem>>, vector<1x1x256xf32>
    %42 = vector.shape_cast %41 : vector<1x1x256xf32> to vector<1x256xf32>
    %43 = vector.broadcast %42 : vector<1x256xf32> to vector<16x256xf32>
    %44 = arith.mulf %40, %43 : vector<16x256xf32>
    %c1_26 = arith.constant 1 : index
    %c0_27 = arith.constant 0 : index
    %c0_28 = arith.constant 0 : index
    %45 = vector.load %arg4[%c1_26, %c0_27, %c0_28] : memref<9x16x16xf32, #tpu.memory_space<vmem>>, vector<1x16x16xf32>
    %46 = vector.shape_cast %45 : vector<1x16x16xf32> to vector<16x16xf32>
    %cst_29 = arith.constant dense<0.000000e+00> : vector<16x256xf32>
    %47 = tpu.matmul %46, %44, %cst_29 {dimension_numbers = #tpu.dot_dimension_numbers<[1], [0], [0], [1], [0, 0, 1, 1], [], []>} : vector<16x16xf32>, vector<16x256xf32>, vector<16x256xf32> -> vector<16x256xf32>
    %48 = arith.addf %37, %47 : vector<16x256xf32>
    %49 = vector.extract_strided_slice %27 {offsets = [0, 241], sizes = [16, 15], strides = [1, 1]} : vector<16x256xf32> to vector<16x15xf32>
    %50 = vector.extract_strided_slice %27 {offsets = [0, 0], sizes = [16, 241], strides = [1, 1]} : vector<16x256xf32> to vector<16x241xf32>
    %51 = tpu.concatenate %49, %50 in 1 : vector<16x15xf32>, vector<16x241xf32> -> vector<16x256xf32>
    %c2 = arith.constant 2 : index
    %c0_30 = arith.constant 0 : index
    %c0_31 = arith.constant 0 : index
    %52 = vector.load %arg7[%c2, %c0_30, %c0_31] : memref<9x1x256xf32, #tpu.memory_space<vmem>>, vector<1x1x256xf32>
    %53 = vector.shape_cast %52 : vector<1x1x256xf32> to vector<1x256xf32>
    %54 = vector.broadcast %53 : vector<1x256xf32> to vector<16x256xf32>
    %55 = arith.mulf %51, %54 : vector<16x256xf32>
    %c2_32 = arith.constant 2 : index
    %c0_33 = arith.constant 0 : index
    %c0_34 = arith.constant 0 : index
    %56 = vector.load %arg4[%c2_32, %c0_33, %c0_34] : memref<9x16x16xf32, #tpu.memory_space<vmem>>, vector<1x16x16xf32>
    %57 = vector.shape_cast %56 : vector<1x16x16xf32> to vector<16x16xf32>
    %cst_35 = arith.constant dense<0.000000e+00> : vector<16x256xf32>
    %58 = tpu.matmul %57, %55, %cst_35 {dimension_numbers = #tpu.dot_dimension_numbers<[1], [0], [0], [1], [0, 0, 1, 1], [], []>} : vector<16x16xf32>, vector<16x256xf32>, vector<16x256xf32> -> vector<16x256xf32>
    %59 = arith.addf %48, %58 : vector<16x256xf32>
    %60 = vector.extract_strided_slice %27 {offsets = [0, 255], sizes = [16, 1], strides = [1, 1]} : vector<16x256xf32> to vector<16x1xf32>
    %61 = vector.extract_strided_slice %27 {offsets = [0, 0], sizes = [16, 255], strides = [1, 1]} : vector<16x256xf32> to vector<16x255xf32>
    %62 = tpu.concatenate %60, %61 in 1 : vector<16x1xf32>, vector<16x255xf32> -> vector<16x256xf32>
    %c3 = arith.constant 3 : index
    %c0_36 = arith.constant 0 : index
    %c0_37 = arith.constant 0 : index
    %63 = vector.load %arg7[%c3, %c0_36, %c0_37] : memref<9x1x256xf32, #tpu.memory_space<vmem>>, vector<1x1x256xf32>
    %64 = vector.shape_cast %63 : vector<1x1x256xf32> to vector<1x256xf32>
    %65 = vector.broadcast %64 : vector<1x256xf32> to vector<16x256xf32>
    %66 = arith.mulf %62, %65 : vector<16x256xf32>
    %c3_38 = arith.constant 3 : index
    %c0_39 = arith.constant 0 : index
    %c0_40 = arith.constant 0 : index
    %67 = vector.load %arg4[%c3_38, %c0_39, %c0_40] : memref<9x16x16xf32, #tpu.memory_space<vmem>>, vector<1x16x16xf32>
    %68 = vector.shape_cast %67 : vector<1x16x16xf32> to vector<16x16xf32>
    %cst_41 = arith.constant dense<0.000000e+00> : vector<16x256xf32>
    %69 = tpu.matmul %68, %66, %cst_41 {dimension_numbers = #tpu.dot_dimension_numbers<[1], [0], [0], [1], [0, 0, 1, 1], [], []>} : vector<16x16xf32>, vector<16x256xf32>, vector<16x256xf32> -> vector<16x256xf32>
    %70 = arith.addf %59, %69 : vector<16x256xf32>
    %c4 = arith.constant 4 : index
    %c0_42 = arith.constant 0 : index
    %c0_43 = arith.constant 0 : index
    %71 = vector.load %arg4[%c4, %c0_42, %c0_43] : memref<9x16x16xf32, #tpu.memory_space<vmem>>, vector<1x16x16xf32>
    %72 = vector.shape_cast %71 : vector<1x16x16xf32> to vector<16x16xf32>
    %cst_44 = arith.constant dense<0.000000e+00> : vector<16x256xf32>
    %73 = tpu.matmul %72, %27, %cst_44 {dimension_numbers = #tpu.dot_dimension_numbers<[1], [0], [0], [1], [0, 0, 1, 1], [], []>} : vector<16x16xf32>, vector<16x256xf32>, vector<16x256xf32> -> vector<16x256xf32>
    %74 = arith.addf %70, %73 : vector<16x256xf32>
    %75 = vector.extract_strided_slice %27 {offsets = [0, 1], sizes = [16, 255], strides = [1, 1]} : vector<16x256xf32> to vector<16x255xf32>
    %76 = vector.extract_strided_slice %27 {offsets = [0, 0], sizes = [16, 1], strides = [1, 1]} : vector<16x256xf32> to vector<16x1xf32>
    %77 = tpu.concatenate %75, %76 in 1 : vector<16x255xf32>, vector<16x1xf32> -> vector<16x256xf32>
    %c5 = arith.constant 5 : index
    %c0_45 = arith.constant 0 : index
    %c0_46 = arith.constant 0 : index
    %78 = vector.load %arg7[%c5, %c0_45, %c0_46] : memref<9x1x256xf32, #tpu.memory_space<vmem>>, vector<1x1x256xf32>
    %79 = vector.shape_cast %78 : vector<1x1x256xf32> to vector<1x256xf32>
    %80 = vector.broadcast %79 : vector<1x256xf32> to vector<16x256xf32>
    %81 = arith.mulf %77, %80 : vector<16x256xf32>
    %c5_47 = arith.constant 5 : index
    %c0_48 = arith.constant 0 : index
    %c0_49 = arith.constant 0 : index
    %82 = vector.load %arg4[%c5_47, %c0_48, %c0_49] : memref<9x16x16xf32, #tpu.memory_space<vmem>>, vector<1x16x16xf32>
    %83 = vector.shape_cast %82 : vector<1x16x16xf32> to vector<16x16xf32>
    %cst_50 = arith.constant dense<0.000000e+00> : vector<16x256xf32>
    %84 = tpu.matmul %83, %81, %cst_50 {dimension_numbers = #tpu.dot_dimension_numbers<[1], [0], [0], [1], [0, 0, 1, 1], [], []>} : vector<16x16xf32>, vector<16x256xf32>, vector<16x256xf32> -> vector<16x256xf32>
    %85 = arith.addf %74, %84 : vector<16x256xf32>
    %86 = vector.extract_strided_slice %27 {offsets = [0, 15], sizes = [16, 241], strides = [1, 1]} : vector<16x256xf32> to vector<16x241xf32>
    %87 = vector.extract_strided_slice %27 {offsets = [0, 0], sizes = [16, 15], strides = [1, 1]} : vector<16x256xf32> to vector<16x15xf32>
    %88 = tpu.concatenate %86, %87 in 1 : vector<16x241xf32>, vector<16x15xf32> -> vector<16x256xf32>
    %c6 = arith.constant 6 : index
    %c0_51 = arith.constant 0 : index
    %c0_52 = arith.constant 0 : index
    %89 = vector.load %arg7[%c6, %c0_51, %c0_52] : memref<9x1x256xf32, #tpu.memory_space<vmem>>, vector<1x1x256xf32>
    %90 = vector.shape_cast %89 : vector<1x1x256xf32> to vector<1x256xf32>
    %91 = vector.broadcast %90 : vector<1x256xf32> to vector<16x256xf32>
    %92 = arith.mulf %88, %91 : vector<16x256xf32>
    %c6_53 = arith.constant 6 : index
    %c0_54 = arith.constant 0 : index
    %c0_55 = arith.constant 0 : index
    %93 = vector.load %arg4[%c6_53, %c0_54, %c0_55] : memref<9x16x16xf32, #tpu.memory_space<vmem>>, vector<1x16x16xf32>
    %94 = vector.shape_cast %93 : vector<1x16x16xf32> to vector<16x16xf32>
    %cst_56 = arith.constant dense<0.000000e+00> : vector<16x256xf32>
    %95 = tpu.matmul %94, %92, %cst_56 {dimension_numbers = #tpu.dot_dimension_numbers<[1], [0], [0], [1], [0, 0, 1, 1], [], []>} : vector<16x16xf32>, vector<16x256xf32>, vector<16x256xf32> -> vector<16x256xf32>
    %96 = arith.addf %85, %95 : vector<16x256xf32>
    %97 = vector.extract_strided_slice %27 {offsets = [0, 16], sizes = [16, 240], strides = [1, 1]} : vector<16x256xf32> to vector<16x240xf32>
    %98 = vector.extract_strided_slice %27 {offsets = [0, 0], sizes = [16, 16], strides = [1, 1]} : vector<16x256xf32> to vector<16x16xf32>
    %99 = tpu.concatenate %97, %98 in 1 : vector<16x240xf32>, vector<16x16xf32> -> vector<16x256xf32>
    %c7 = arith.constant 7 : index
    %c0_57 = arith.constant 0 : index
    %c0_58 = arith.constant 0 : index
    %100 = vector.load %arg7[%c7, %c0_57, %c0_58] : memref<9x1x256xf32, #tpu.memory_space<vmem>>, vector<1x1x256xf32>
    %101 = vector.shape_cast %100 : vector<1x1x256xf32> to vector<1x256xf32>
    %102 = vector.broadcast %101 : vector<1x256xf32> to vector<16x256xf32>
    %103 = arith.mulf %99, %102 : vector<16x256xf32>
    %c7_59 = arith.constant 7 : index
    %c0_60 = arith.constant 0 : index
    %c0_61 = arith.constant 0 : index
    %104 = vector.load %arg4[%c7_59, %c0_60, %c0_61] : memref<9x16x16xf32, #tpu.memory_space<vmem>>, vector<1x16x16xf32>
    %105 = vector.shape_cast %104 : vector<1x16x16xf32> to vector<16x16xf32>
    %cst_62 = arith.constant dense<0.000000e+00> : vector<16x256xf32>
    %106 = tpu.matmul %105, %103, %cst_62 {dimension_numbers = #tpu.dot_dimension_numbers<[1], [0], [0], [1], [0, 0, 1, 1], [], []>} : vector<16x16xf32>, vector<16x256xf32>, vector<16x256xf32> -> vector<16x256xf32>
    %107 = arith.addf %96, %106 : vector<16x256xf32>
    %108 = vector.extract_strided_slice %27 {offsets = [0, 17], sizes = [16, 239], strides = [1, 1]} : vector<16x256xf32> to vector<16x239xf32>
    %109 = vector.extract_strided_slice %27 {offsets = [0, 0], sizes = [16, 17], strides = [1, 1]} : vector<16x256xf32> to vector<16x17xf32>
    %110 = tpu.concatenate %108, %109 in 1 : vector<16x239xf32>, vector<16x17xf32> -> vector<16x256xf32>
    %c8 = arith.constant 8 : index
    %c0_63 = arith.constant 0 : index
    %c0_64 = arith.constant 0 : index
    %111 = vector.load %arg7[%c8, %c0_63, %c0_64] : memref<9x1x256xf32, #tpu.memory_space<vmem>>, vector<1x1x256xf32>
    %112 = vector.shape_cast %111 : vector<1x1x256xf32> to vector<1x256xf32>
    %113 = vector.broadcast %112 : vector<1x256xf32> to vector<16x256xf32>
    %114 = arith.mulf %110, %113 : vector<16x256xf32>
    %c8_65 = arith.constant 8 : index
    %c0_66 = arith.constant 0 : index
    %c0_67 = arith.constant 0 : index
    %115 = vector.load %arg4[%c8_65, %c0_66, %c0_67] : memref<9x16x16xf32, #tpu.memory_space<vmem>>, vector<1x16x16xf32>
    %116 = vector.shape_cast %115 : vector<1x16x16xf32> to vector<16x16xf32>
    %cst_68 = arith.constant dense<0.000000e+00> : vector<16x256xf32>
    %117 = tpu.matmul %116, %114, %cst_68 {dimension_numbers = #tpu.dot_dimension_numbers<[1], [0], [0], [1], [0, 0, 1, 1], [], []>} : vector<16x16xf32>, vector<16x256xf32>, vector<16x256xf32> -> vector<16x256xf32>
    %118 = arith.addf %107, %117 : vector<16x256xf32>
    %cst_69 = arith.constant 0.000000e+00 : f32
    %119 = vector.broadcast %cst_69 : f32 to vector<16x256xf32>
    %120 = arith.maximumf %118, %119 : vector<16x256xf32>
    %121 = vector.extract_strided_slice %120 {offsets = [0, 239], sizes = [16, 17], strides = [1, 1]} : vector<16x256xf32> to vector<16x17xf32>
    %122 = vector.extract_strided_slice %120 {offsets = [0, 0], sizes = [16, 239], strides = [1, 1]} : vector<16x256xf32> to vector<16x239xf32>
    %123 = tpu.concatenate %121, %122 in 1 : vector<16x17xf32>, vector<16x239xf32> -> vector<16x256xf32>
    %c0_70 = arith.constant 0 : index
    %c0_71 = arith.constant 0 : index
    %c0_72 = arith.constant 0 : index
    %124 = vector.load %arg7[%c0_70, %c0_71, %c0_72] : memref<9x1x256xf32, #tpu.memory_space<vmem>>, vector<1x1x256xf32>
    %125 = vector.shape_cast %124 : vector<1x1x256xf32> to vector<1x256xf32>
    %126 = vector.broadcast %125 : vector<1x256xf32> to vector<16x256xf32>
    %127 = arith.mulf %123, %126 : vector<16x256xf32>
    %c0_73 = arith.constant 0 : index
    %c0_74 = arith.constant 0 : index
    %c0_75 = arith.constant 0 : index
    %128 = vector.load %arg5[%c0_73, %c0_74, %c0_75] : memref<9x16x16xf32, #tpu.memory_space<vmem>>, vector<1x16x16xf32>
    %129 = vector.shape_cast %128 : vector<1x16x16xf32> to vector<16x16xf32>
    %cst_76 = arith.constant dense<0.000000e+00> : vector<16x256xf32>
    %130 = tpu.matmul %129, %127, %cst_76 {dimension_numbers = #tpu.dot_dimension_numbers<[1], [0], [0], [1], [0, 0, 1, 1], [], []>} : vector<16x16xf32>, vector<16x256xf32>, vector<16x256xf32> -> vector<16x256xf32>
    %131 = vector.extract_strided_slice %120 {offsets = [0, 240], sizes = [16, 16], strides = [1, 1]} : vector<16x256xf32> to vector<16x16xf32>
    %132 = vector.extract_strided_slice %120 {offsets = [0, 0], sizes = [16, 240], strides = [1, 1]} : vector<16x256xf32> to vector<16x240xf32>
    %133 = tpu.concatenate %131, %132 in 1 : vector<16x16xf32>, vector<16x240xf32> -> vector<16x256xf32>
    %c1_77 = arith.constant 1 : index
    %c0_78 = arith.constant 0 : index
    %c0_79 = arith.constant 0 : index
    %134 = vector.load %arg7[%c1_77, %c0_78, %c0_79] : memref<9x1x256xf32, #tpu.memory_space<vmem>>, vector<1x1x256xf32>
    %135 = vector.shape_cast %134 : vector<1x1x256xf32> to vector<1x256xf32>
    %136 = vector.broadcast %135 : vector<1x256xf32> to vector<16x256xf32>
    %137 = arith.mulf %133, %136 : vector<16x256xf32>
    %c1_80 = arith.constant 1 : index
    %c0_81 = arith.constant 0 : index
    %c0_82 = arith.constant 0 : index
    %138 = vector.load %arg5[%c1_80, %c0_81, %c0_82] : memref<9x16x16xf32, #tpu.memory_space<vmem>>, vector<1x16x16xf32>
    %139 = vector.shape_cast %138 : vector<1x16x16xf32> to vector<16x16xf32>
    %cst_83 = arith.constant dense<0.000000e+00> : vector<16x256xf32>
    %140 = tpu.matmul %139, %137, %cst_83 {dimension_numbers = #tpu.dot_dimension_numbers<[1], [0], [0], [1], [0, 0, 1, 1], [], []>} : vector<16x16xf32>, vector<16x256xf32>, vector<16x256xf32> -> vector<16x256xf32>
    %141 = arith.addf %130, %140 : vector<16x256xf32>
    %142 = vector.extract_strided_slice %120 {offsets = [0, 241], sizes = [16, 15], strides = [1, 1]} : vector<16x256xf32> to vector<16x15xf32>
    %143 = vector.extract_strided_slice %120 {offsets = [0, 0], sizes = [16, 241], strides = [1, 1]} : vector<16x256xf32> to vector<16x241xf32>
    %144 = tpu.concatenate %142, %143 in 1 : vector<16x15xf32>, vector<16x241xf32> -> vector<16x256xf32>
    %c2_84 = arith.constant 2 : index
    %c0_85 = arith.constant 0 : index
    %c0_86 = arith.constant 0 : index
    %145 = vector.load %arg7[%c2_84, %c0_85, %c0_86] : memref<9x1x256xf32, #tpu.memory_space<vmem>>, vector<1x1x256xf32>
    %146 = vector.shape_cast %145 : vector<1x1x256xf32> to vector<1x256xf32>
    %147 = vector.broadcast %146 : vector<1x256xf32> to vector<16x256xf32>
    %148 = arith.mulf %144, %147 : vector<16x256xf32>
    %c2_87 = arith.constant 2 : index
    %c0_88 = arith.constant 0 : index
    %c0_89 = arith.constant 0 : index
    %149 = vector.load %arg5[%c2_87, %c0_88, %c0_89] : memref<9x16x16xf32, #tpu.memory_space<vmem>>, vector<1x16x16xf32>
    %150 = vector.shape_cast %149 : vector<1x16x16xf32> to vector<16x16xf32>
    %cst_90 = arith.constant dense<0.000000e+00> : vector<16x256xf32>
    %151 = tpu.matmul %150, %148, %cst_90 {dimension_numbers = #tpu.dot_dimension_numbers<[1], [0], [0], [1], [0, 0, 1, 1], [], []>} : vector<16x16xf32>, vector<16x256xf32>, vector<16x256xf32> -> vector<16x256xf32>
    %152 = arith.addf %141, %151 : vector<16x256xf32>
    %153 = vector.extract_strided_slice %120 {offsets = [0, 255], sizes = [16, 1], strides = [1, 1]} : vector<16x256xf32> to vector<16x1xf32>
    %154 = vector.extract_strided_slice %120 {offsets = [0, 0], sizes = [16, 255], strides = [1, 1]} : vector<16x256xf32> to vector<16x255xf32>
    %155 = tpu.concatenate %153, %154 in 1 : vector<16x1xf32>, vector<16x255xf32> -> vector<16x256xf32>
    %c3_91 = arith.constant 3 : index
    %c0_92 = arith.constant 0 : index
    %c0_93 = arith.constant 0 : index
    %156 = vector.load %arg7[%c3_91, %c0_92, %c0_93] : memref<9x1x256xf32, #tpu.memory_space<vmem>>, vector<1x1x256xf32>
    %157 = vector.shape_cast %156 : vector<1x1x256xf32> to vector<1x256xf32>
    %158 = vector.broadcast %157 : vector<1x256xf32> to vector<16x256xf32>
    %159 = arith.mulf %155, %158 : vector<16x256xf32>
    %c3_94 = arith.constant 3 : index
    %c0_95 = arith.constant 0 : index
    %c0_96 = arith.constant 0 : index
    %160 = vector.load %arg5[%c3_94, %c0_95, %c0_96] : memref<9x16x16xf32, #tpu.memory_space<vmem>>, vector<1x16x16xf32>
    %161 = vector.shape_cast %160 : vector<1x16x16xf32> to vector<16x16xf32>
    %cst_97 = arith.constant dense<0.000000e+00> : vector<16x256xf32>
    %162 = tpu.matmul %161, %159, %cst_97 {dimension_numbers = #tpu.dot_dimension_numbers<[1], [0], [0], [1], [0, 0, 1, 1], [], []>} : vector<16x16xf32>, vector<16x256xf32>, vector<16x256xf32> -> vector<16x256xf32>
    %163 = arith.addf %152, %162 : vector<16x256xf32>
    %c4_98 = arith.constant 4 : index
    %c0_99 = arith.constant 0 : index
    %c0_100 = arith.constant 0 : index
    %164 = vector.load %arg5[%c4_98, %c0_99, %c0_100] : memref<9x16x16xf32, #tpu.memory_space<vmem>>, vector<1x16x16xf32>
    %165 = vector.shape_cast %164 : vector<1x16x16xf32> to vector<16x16xf32>
    %cst_101 = arith.constant dense<0.000000e+00> : vector<16x256xf32>
    %166 = tpu.matmul %165, %120, %cst_101 {dimension_numbers = #tpu.dot_dimension_numbers<[1], [0], [0], [1], [0, 0, 1, 1], [], []>} : vector<16x16xf32>, vector<16x256xf32>, vector<16x256xf32> -> vector<16x256xf32>
    %167 = arith.addf %163, %166 : vector<16x256xf32>
    %168 = vector.extract_strided_slice %120 {offsets = [0, 1], sizes = [16, 255], strides = [1, 1]} : vector<16x256xf32> to vector<16x255xf32>
    %169 = vector.extract_strided_slice %120 {offsets = [0, 0], sizes = [16, 1], strides = [1, 1]} : vector<16x256xf32> to vector<16x1xf32>
    %170 = tpu.concatenate %168, %169 in 1 : vector<16x255xf32>, vector<16x1xf32> -> vector<16x256xf32>
    %c5_102 = arith.constant 5 : index
    %c0_103 = arith.constant 0 : index
    %c0_104 = arith.constant 0 : index
    %171 = vector.load %arg7[%c5_102, %c0_103, %c0_104] : memref<9x1x256xf32, #tpu.memory_space<vmem>>, vector<1x1x256xf32>
    %172 = vector.shape_cast %171 : vector<1x1x256xf32> to vector<1x256xf32>
    %173 = vector.broadcast %172 : vector<1x256xf32> to vector<16x256xf32>
    %174 = arith.mulf %170, %173 : vector<16x256xf32>
    %c5_105 = arith.constant 5 : index
    %c0_106 = arith.constant 0 : index
    %c0_107 = arith.constant 0 : index
    %175 = vector.load %arg5[%c5_105, %c0_106, %c0_107] : memref<9x16x16xf32, #tpu.memory_space<vmem>>, vector<1x16x16xf32>
    %176 = vector.shape_cast %175 : vector<1x16x16xf32> to vector<16x16xf32>
    %cst_108 = arith.constant dense<0.000000e+00> : vector<16x256xf32>
    %177 = tpu.matmul %176, %174, %cst_108 {dimension_numbers = #tpu.dot_dimension_numbers<[1], [0], [0], [1], [0, 0, 1, 1], [], []>} : vector<16x16xf32>, vector<16x256xf32>, vector<16x256xf32> -> vector<16x256xf32>
    %178 = arith.addf %167, %177 : vector<16x256xf32>
    %179 = vector.extract_strided_slice %120 {offsets = [0, 15], sizes = [16, 241], strides = [1, 1]} : vector<16x256xf32> to vector<16x241xf32>
    %180 = vector.extract_strided_slice %120 {offsets = [0, 0], sizes = [16, 15], strides = [1, 1]} : vector<16x256xf32> to vector<16x15xf32>
    %181 = tpu.concatenate %179, %180 in 1 : vector<16x241xf32>, vector<16x15xf32> -> vector<16x256xf32>
    %c6_109 = arith.constant 6 : index
    %c0_110 = arith.constant 0 : index
    %c0_111 = arith.constant 0 : index
    %182 = vector.load %arg7[%c6_109, %c0_110, %c0_111] : memref<9x1x256xf32, #tpu.memory_space<vmem>>, vector<1x1x256xf32>
    %183 = vector.shape_cast %182 : vector<1x1x256xf32> to vector<1x256xf32>
    %184 = vector.broadcast %183 : vector<1x256xf32> to vector<16x256xf32>
    %185 = arith.mulf %181, %184 : vector<16x256xf32>
    %c6_112 = arith.constant 6 : index
    %c0_113 = arith.constant 0 : index
    %c0_114 = arith.constant 0 : index
    %186 = vector.load %arg5[%c6_112, %c0_113, %c0_114] : memref<9x16x16xf32, #tpu.memory_space<vmem>>, vector<1x16x16xf32>
    %187 = vector.shape_cast %186 : vector<1x16x16xf32> to vector<16x16xf32>
    %cst_115 = arith.constant dense<0.000000e+00> : vector<16x256xf32>
    %188 = tpu.matmul %187, %185, %cst_115 {dimension_numbers = #tpu.dot_dimension_numbers<[1], [0], [0], [1], [0, 0, 1, 1], [], []>} : vector<16x16xf32>, vector<16x256xf32>, vector<16x256xf32> -> vector<16x256xf32>
    %189 = arith.addf %178, %188 : vector<16x256xf32>
    %190 = vector.extract_strided_slice %120 {offsets = [0, 16], sizes = [16, 240], strides = [1, 1]} : vector<16x256xf32> to vector<16x240xf32>
    %191 = vector.extract_strided_slice %120 {offsets = [0, 0], sizes = [16, 16], strides = [1, 1]} : vector<16x256xf32> to vector<16x16xf32>
    %192 = tpu.concatenate %190, %191 in 1 : vector<16x240xf32>, vector<16x16xf32> -> vector<16x256xf32>
    %c7_116 = arith.constant 7 : index
    %c0_117 = arith.constant 0 : index
    %c0_118 = arith.constant 0 : index
    %193 = vector.load %arg7[%c7_116, %c0_117, %c0_118] : memref<9x1x256xf32, #tpu.memory_space<vmem>>, vector<1x1x256xf32>
    %194 = vector.shape_cast %193 : vector<1x1x256xf32> to vector<1x256xf32>
    %195 = vector.broadcast %194 : vector<1x256xf32> to vector<16x256xf32>
    %196 = arith.mulf %192, %195 : vector<16x256xf32>
    %c7_119 = arith.constant 7 : index
    %c0_120 = arith.constant 0 : index
    %c0_121 = arith.constant 0 : index
    %197 = vector.load %arg5[%c7_119, %c0_120, %c0_121] : memref<9x16x16xf32, #tpu.memory_space<vmem>>, vector<1x16x16xf32>
    %198 = vector.shape_cast %197 : vector<1x16x16xf32> to vector<16x16xf32>
    %cst_122 = arith.constant dense<0.000000e+00> : vector<16x256xf32>
    %199 = tpu.matmul %198, %196, %cst_122 {dimension_numbers = #tpu.dot_dimension_numbers<[1], [0], [0], [1], [0, 0, 1, 1], [], []>} : vector<16x16xf32>, vector<16x256xf32>, vector<16x256xf32> -> vector<16x256xf32>
    %200 = arith.addf %189, %199 : vector<16x256xf32>
    %201 = vector.extract_strided_slice %120 {offsets = [0, 17], sizes = [16, 239], strides = [1, 1]} : vector<16x256xf32> to vector<16x239xf32>
    %202 = vector.extract_strided_slice %120 {offsets = [0, 0], sizes = [16, 17], strides = [1, 1]} : vector<16x256xf32> to vector<16x17xf32>
    %203 = tpu.concatenate %201, %202 in 1 : vector<16x239xf32>, vector<16x17xf32> -> vector<16x256xf32>
    %c8_123 = arith.constant 8 : index
    %c0_124 = arith.constant 0 : index
    %c0_125 = arith.constant 0 : index
    %204 = vector.load %arg7[%c8_123, %c0_124, %c0_125] : memref<9x1x256xf32, #tpu.memory_space<vmem>>, vector<1x1x256xf32>
    %205 = vector.shape_cast %204 : vector<1x1x256xf32> to vector<1x256xf32>
    %206 = vector.broadcast %205 : vector<1x256xf32> to vector<16x256xf32>
    %207 = arith.mulf %203, %206 : vector<16x256xf32>
    %c8_126 = arith.constant 8 : index
    %c0_127 = arith.constant 0 : index
    %c0_128 = arith.constant 0 : index
    %208 = vector.load %arg5[%c8_126, %c0_127, %c0_128] : memref<9x16x16xf32, #tpu.memory_space<vmem>>, vector<1x16x16xf32>
    %209 = vector.shape_cast %208 : vector<1x16x16xf32> to vector<16x16xf32>
    %cst_129 = arith.constant dense<0.000000e+00> : vector<16x256xf32>
    %210 = tpu.matmul %209, %207, %cst_129 {dimension_numbers = #tpu.dot_dimension_numbers<[1], [0], [0], [1], [0, 0, 1, 1], [], []>} : vector<16x16xf32>, vector<16x256xf32>, vector<16x256xf32> -> vector<16x256xf32>
    %211 = arith.addf %200, %210 : vector<16x256xf32>
    %212 = arith.addf %1, %211 : vector<16x256xf32>
    %c0_130 = arith.constant 0 : index
    %c0_131 = arith.constant 0 : index
    %c0_132 = arith.constant 0 : index
    %213 = vector.load %arg9[%c0_130, %c0_131, %c0_132] : memref<1x16x256xf32, #tpu.memory_space<vmem>>, vector<1x16x256xf32>
    %214 = vector.shape_cast %213 : vector<1x16x256xf32> to vector<16x256xf32>
    %215 = vector.shape_cast %212 : vector<16x256xf32> to vector<1x16x256xf32>
    tpu.vector_store %arg9[%c0_130, %c0_131, %c0_132], %215 {strides = array<i32>} : memref<1x16x256xf32, #tpu.memory_space<vmem>>, vector<1x16x256xf32>,
    return
  }
  func.func @transform_0(%arg0: i32) -> (i32, i32) {
    %c0_i32 = arith.constant 0 : i32
    %c0_i32_0 = arith.constant 0 : i32
    %c0_i32_1 = arith.constant 0 : i32
    return %c0_i32, %c0_i32_0 : i32, i32
  }
  func.func @transform_1(%arg0: i32) -> (i32, i32) {
    %c0_i32 = arith.constant 0 : i32
    %c0_i32_0 = arith.constant 0 : i32
    %c0_i32_1 = arith.constant 0 : i32
    return %c0_i32, %c0_i32_0 : i32, i32
  }
  func.func @transform_2(%arg0: i32) -> (i32, i32) {
    %c0_i32 = arith.constant 0 : i32
    %c0_i32_0 = arith.constant 0 : i32
    %c0_i32_1 = arith.constant 0 : i32
    return %c0_i32, %c0_i32_0 : i32, i32
  }
  func.func @transform_3(%arg0: i32) -> (i32, i32, i32) {
    %c0_i32 = arith.constant 0 : i32
    %c0_i32_0 = arith.constant 0 : i32
    %c0_i32_1 = arith.constant 0 : i32
    %c0_i32_2 = arith.constant 0 : i32
    return %c0_i32, %c0_i32_0, %c0_i32_1 : i32, i32, i32
  }
  func.func @transform_4(%arg0: i32) -> (i32, i32, i32) {
    %c0_i32 = arith.constant 0 : i32
    %c0_i32_0 = arith.constant 0 : i32
    %c0_i32_1 = arith.constant 0 : i32
    %c0_i32_2 = arith.constant 0 : i32
    return %c0_i32, %c0_i32_0, %c0_i32_1 : i32, i32, i32
  }
  func.func @transform_5(%arg0: i32) -> (i32, i32) {
    %c0_i32 = arith.constant 0 : i32
    %c0_i32_0 = arith.constant 0 : i32
    %c0_i32_1 = arith.constant 0 : i32
    return %c0_i32, %c0_i32_0 : i32, i32
  }
  func.func @transform_6(%arg0: i32) -> (i32, i32, i32) {
    %c0_i32 = arith.constant 0 : i32
    %c0_i32_0 = arith.constant 0 : i32
    %c0_i32_1 = arith.constant 0 : i32
    %c0_i32_2 = arith.constant 0 : i32
    return %c0_i32, %c0_i32_0, %c0_i32_1 : i32, i32, i32
  }
  func.func @transform_7(%arg0: i32) -> (i32, i32, i32) {
    %c0_i32 = arith.constant 0 : i32
    %c0_i32_0 = arith.constant 0 : i32
    %c0_i32_1 = arith.constant 0 : i32
    return %arg0, %c0_i32, %c0_i32_0 : i32, i32, i32
  }
  func.func @transform_8(%arg0: i32) -> (i32, i32, i32) {
    %c0_i32 = arith.constant 0 : i32
    %c0_i32_0 = arith.constant 0 : i32
    %c0_i32_1 = arith.constant 0 : i32
    return %arg0, %c0_i32, %c0_i32_0 : i32, i32, i32
  }
}

</mosaic_0001>

<llo_original>
// kernel: tpu_custom_call.1
$region0: #{tpu_custom_call.1}
  #allocation0 [shape = 'u32[]', space=smem, size = 0x4, offset = 0x4, fixed_abs, tag = 'smem constant byte address 0x4 - core index']
  #allocation1 [shape = 'u32[144,128]{1,0:T(1,128)}', space=vmem, size = 0x12000, scoped, tag = 'internal scratch']
  %s0 = inlined_call_operand.vmem [shape: f32[16,16], index: 0, kind: input, shape index: {}]
  %s1 = inlined_call_operand.hbm [shape: f32[16,16], index: 1, kind: input, shape index: {}]
  %s2 = inlined_call_operand.vmem [shape: f32[32,16], index: 2, kind: input, shape index: {}]
  %s3 = inlined_call_operand.hbm [shape: f32[9,16,16], index: 3, kind: input, shape index: {}]
  %s4 = inlined_call_operand.hbm [shape: f32[9,16,16], index: 4, kind: input, shape index: {}]
  %s5 = inlined_call_operand.vmem [shape: f32[16,16], index: 5, kind: input, shape index: {}]
  %s6 = inlined_call_operand.vmem [shape: f32[9,1,256], index: 6, kind: input, shape index: {}]
  %s7 = inlined_call_operand.hbm [shape: f32[2,16,256], index: 7, kind: input, shape index: {}]
  %s8 = inlined_call_operand.hbm [shape: f32[2,16,256], index: 8, kind: output, shape index: {}]
  %s9 = sld [smem:[#allocation0]]
  $region81: #{tpu_custom_call.1} parent=0
    _
  %s11 = ssub.s32 1, %s9
  %s12 = scalar_select 0, %s11, %s9
  $region1: #{tpu_custom_call.1} parent=0
    #allocation2 [shape = 'u8[8192]{0}', space=vmem, size = 0x2000, scoped, tag = 'input window, operand 1, single buffered']
    #allocation3 [shape = 's32[2]{0}', space=sflag, size = 0x8, scoped, tag = 'scoped memory for tpu_custom_call.1']
    #allocation4 [shape = 's32[2]{0}', space=sflag, size = 0x8, scoped, tag = 'scoped memory for tpu_custom_call.1']
    #allocation5 [shape = 'u8[73728]{0}', space=vmem, size = 0x12000, scoped, tag = 'input window, operand 3, single buffered']
    #allocation6 [shape = 's32[1]{0}', space=sflag, size = 0x4, scoped, tag = 'scoped memory for tpu_custom_call.1']
    #allocation7 [shape = 'u8[73728]{0}', space=vmem, size = 0x12000, scoped, tag = 'input window, operand 4, single buffered']
    #allocation8 [shape = 'u8[32768]{0}', space=vmem, size = 0x8000, scoped, tag = 'input window, operand 7']
    #allocation9 [shape = 's32[2]{0}', space=sflag, size = 0x8, scoped, tag = 'scoped memory for tpu_custom_call.1']
    #allocation10 [shape = 'u8[32768]{0}', space=vmem, size = 0x8000, scoped, tag = 'output window, operand 0']
    %13 = vsyncpa [#allocation3], 0
    %14 = vsyncpa [#allocation6], 0
    %15 = vsyncpa [#allocation9], 0
    %s16 = scalar_lea.sflag [#allocation9], 1
    %17 = vsyncpa %s16, 0
    %18 = vsyncpa [#allocation4], 0
    %s19 = scalar_lea.sflag [#allocation4], 1
    %20 = vsyncpa %s19, 0
    loop: start=0, step=1, limit=4
    $region2: #{tpu_custom_call.1} parent=1 // loop_pre_header
      _
    $region3: #{tpu_custom_call.1} parent=1 // loop_header
      %s22 = sphi 0, %s26
      %p23 = scmp.ge.s32.totalorder %s22, 4
      %s30 = sphi 0, %s30
      %s32 = sphi 0, %s30
      %s33 = sphi 0, %s32
      %s47 = sphi 0, %s33
      %s51 = sphi 0, %s51
      %s53 = sphi 0, %s51
      %s54 = sphi 0, %s53
      %s68 = sphi 0, %s54
      %s72 = sphi 0, %s72
      %s74 = sphi 0, %s72
      %s75 = sphi 0, %s74
      %s89 = sphi 0, %s75
      %s93 = sphi 0, %s93
      %s95 = sphi 0, %s93
      %s96 = sphi 0, %s95
      %s110 = sphi 0, %s96
      %s114 = sphi 0, %s114
      %s116 = sphi 0, %s114
      %s117 = sphi 0, %s116
      %s131 = sphi 0, %s117
      %s135 = sphi 0, %s135
      %s137 = sphi 0, %s135
      %s138 = sphi 0, %s137
      %s152 = sphi 0, %s138
      %s156 = sphi 0, %s156
      %s158 = sphi 0, %s156
      %s159 = sphi 0, %s158
      %s173 = sphi 0, %s159
      %s179 = sphi 0, %s181
      %s182 = sphi 0, %s179
      %s183 = sphi 0, %s182
      %s199 = sphi 0, %s183
      %s205 = sphi 0, %s207
      %s208 = sphi 0, %s205
      %s209 = sphi 0, %s208
      %s225 = sphi 0, %s209
    $region4: #{tpu_custom_call.1} parent=1 // loop_header_branch
      %25 = sbr.rel (%p23) target = $region8
    $region5: #{tpu_custom_call.1} parent=1 // loop_body
      %s27 = ssub.s32 %s22, 1
      %s28 = ssub.s32 %s22, 2
      %s29 = sadd.s32 %s22, 1
      %s31 = sadd.s32 %s30, 1
      %p34 = scmp.eq.s32.totalorder %s22, 1
      %p35 = scmp.ne.s32.totalorder %s30, %s32
      %p36 = scmp.eq.s32.totalorder %s22, 0
      %p37 = por %p35, %p36
      %p38 = scmp.ne.s32.totalorder %s30, %s32
      %p39 = scmp.eq.s32.totalorder %s27, 1
      %p40 = por %p38, %p39
      %p41 = scmp.ne.s32.totalorder %s32, %s33
      %p42 = scmp.eq.s32.totalorder %s27, 0
      %p43 = por %p41, %p42
      %p44 = scmp.ne.s32.totalorder %s32, %s33
      %p45 = scmp.eq.s32.totalorder %s28, 1
      %p46 = por %p44, %p45
      %p48 = scmp.ne.s32.totalorder %s33, %s47
      %p49 = scmp.eq.s32.totalorder %s28, 0
      %p50 = por %p48, %p49
      %s52 = sadd.s32 %s51, 1
      %p55 = scmp.eq.s32.totalorder %s22, 1
      %p56 = scmp.ne.s32.totalorder %s51, %s53
      %p57 = scmp.eq.s32.totalorder %s22, 0
      %p58 = por %p56, %p57
      %p59 = scmp.ne.s32.totalorder %s51, %s53
      %p60 = scmp.eq.s32.totalorder %s27, 1
      %p61 = por %p59, %p60
      %p62 = scmp.ne.s32.totalorder %s53, %s54
      %p63 = scmp.eq.s32.totalorder %s27, 0
      %p64 = por %p62, %p63
      %p65 = scmp.ne.s32.totalorder %s53, %s54
      %p66 = scmp.eq.s32.totalorder %s28, 1
      %p67 = por %p65, %p66
      %p69 = scmp.ne.s32.totalorder %s54, %s68
      %p70 = scmp.eq.s32.totalorder %s28, 0
      %p71 = por %p69, %p70
      %s73 = sadd.s32 %s72, 1
      %p76 = scmp.eq.s32.totalorder %s22, 1
      %p77 = scmp.ne.s32.totalorder %s72, %s74
      %p78 = scmp.eq.s32.totalorder %s22, 0
      %p79 = por %p77, %p78
      %p80 = scmp.ne.s32.totalorder %s72, %s74
      %p81 = scmp.eq.s32.totalorder %s27, 1
      %p82 = por %p80, %p81
      %p83 = scmp.ne.s32.totalorder %s74, %s75
      %p84 = scmp.eq.s32.totalorder %s27, 0
      %p85 = por %p83, %p84
      %p86 = scmp.ne.s32.totalorder %s74, %s75
      %p87 = scmp.eq.s32.totalorder %s28, 1
      %p88 = por %p86, %p87
      %p90 = scmp.ne.s32.totalorder %s75, %s89
      %p91 = scmp.eq.s32.totalorder %s28, 0
      %p92 = por %p90, %p91
      %s94 = sadd.s32 %s93, 1
      %p97 = scmp.eq.s32.totalorder %s22, 1
      %p98 = scmp.ne.s32.totalorder %s93, %s95
      %p99 = scmp.eq.s32.totalorder %s22, 0
      %p100 = por %p98, %p99
      %p101 = scmp.ne.s32.totalorder %s93, %s95
      %p102 = scmp.eq.s32.totalorder %s27, 1
      %p103 = por %p101, %p102
      %p104 = scmp.ne.s32.totalorder %s95, %s96
      %p105 = scmp.eq.s32.totalorder %s27, 0
      %p106 = por %p104, %p105
      %p107 = scmp.ne.s32.totalorder %s95, %s96
      %p108 = scmp.eq.s32.totalorder %s28, 1
      %p109 = por %p107, %p108
      %p111 = scmp.ne.s32.totalorder %s96, %s110
      %p112 = scmp.eq.s32.totalorder %s28, 0
      %p113 = por %p111, %p112
      %s115 = sadd.s32 %s114, 1
      %p118 = scmp.eq.s32.totalorder %s22, 1
      %p119 = scmp.ne.s32.totalorder %s114, %s116
      %p120 = scmp.eq.s32.totalorder %s22, 0
      %p121 = por %p119, %p120
      %p122 = scmp.ne.s32.totalorder %s114, %s116
      %p123 = scmp.eq.s32.totalorder %s27, 1
      %p124 = por %p122, %p123
      %p125 = scmp.ne.s32.totalorder %s116, %s117
      %p126 = scmp.eq.s32.totalorder %s27, 0
      %p127 = por %p125, %p126
      %p128 = scmp.ne.s32.totalorder %s116, %s117
      %p129 = scmp.eq.s32.totalorder %s28, 1
      %p130 = por %p128, %p129
      %p132 = scmp.ne.s32.totalorder %s117, %s131
      %p133 = scmp.eq.s32.totalorder %s28, 0
      %p134 = por %p132, %p133
      %s136 = sadd.s32 %s135, 1
      %p139 = scmp.eq.s32.totalorder %s22, 1
      %p140 = scmp.ne.s32.totalorder %s135, %s137
      %p141 = scmp.eq.s32.totalorder %s22, 0
      %p142 = por %p140, %p141
      %p143 = scmp.ne.s32.totalorder %s135, %s137
      %p144 = scmp.eq.s32.totalorder %s27, 1
      %p145 = por %p143, %p144
      %p146 = scmp.ne.s32.totalorder %s137, %s138
      %p147 = scmp.eq.s32.totalorder %s27, 0
      %p148 = por %p146, %p147
      %p149 = scmp.ne.s32.totalorder %s137, %s138
      %p150 = scmp.eq.s32.totalorder %s28, 1
      %p151 = por %p149, %p150
      %p153 = scmp.ne.s32.totalorder %s138, %s152
      %p154 = scmp.eq.s32.totalorder %s28, 0
      %p155 = por %p153, %p154
      %s157 = sadd.s32 %s156, 1
      %p160 = scmp.eq.s32.totalorder %s22, 1
      %p161 = scmp.ne.s32.totalorder %s156, %s158
      %p162 = scmp.eq.s32.totalorder %s22, 0
      %p163 = por %p161, %p162
      %p164 = scmp.ne.s32.totalorder %s156, %s158
      %p165 = scmp.eq.s32.totalorder %s27, 1
      %p166 = por %p164, %p165
      %p167 = scmp.ne.s32.totalorder %s158, %s159
      %p168 = scmp.eq.s32.totalorder %s27, 0
      %p169 = por %p167, %p168
      %p170 = scmp.ne.s32.totalorder %s158, %s159
      %p171 = scmp.eq.s32.totalorder %s28, 1
      %p172 = por %p170, %p171
      %p174 = scmp.ne.s32.totalorder %s159, %s173
      %p175 = scmp.eq.s32.totalorder %s28, 0
      %p176 = por %p174, %p175
      %s177 = ssub.s32 %s22, %s29
      %p178 = scmp.eq.s32.totalorder %s177, 0
      %s180 = sadd.s32 %s179, 1
      %s181 = scalar_select %p178, %s179, %s180
      %p184 = pneg %p178
      %p185 = scmp.eq.s32.totalorder %s22, 1
      %p186 = por %p184, %p185
      %p187 = scmp.ne.s32.totalorder %s179, %s182
      %p188 = scmp.eq.s32.totalorder %s22, 0
      %p189 = por %p187, %p188
      %p190 = scmp.ne.s32.totalorder %s179, %s182
      %p191 = scmp.eq.s32.totalorder %s27, 1
      %p192 = por %p190, %p191
      %p193 = scmp.ne.s32.totalorder %s182, %s183
      %p194 = scmp.eq.s32.totalorder %s27, 0
      %p195 = por %p193, %p194
      %p196 = scmp.ne.s32.totalorder %s182, %s183
      %p197 = scmp.eq.s32.totalorder %s28, 1
      %p198 = por %p196, %p197
      %p200 = scmp.ne.s32.totalorder %s183, %s199
      %p201 = scmp.eq.s32.totalorder %s28, 0
      %p202 = por %p200, %p201
      %s203 = ssub.s32 %s22, %s29
      %p204 = scmp.eq.s32.totalorder %s203, 0
      %s206 = sadd.s32 %s205, 1
      %s207 = scalar_select %p204, %s205, %s206
      %p210 = pneg %p204
      %p211 = scmp.eq.s32.totalorder %s22, 1
      %p212 = por %p210, %p211
      %p213 = scmp.ne.s32.totalorder %s205, %s208
      %p214 = scmp.eq.s32.totalorder %s22, 0
      %p215 = por %p213, %p214
      %p216 = scmp.ne.s32.totalorder %s205, %s208
      %p217 = scmp.eq.s32.totalorder %s27, 1
      %p218 = por %p216, %p217
      %p219 = scmp.ne.s32.totalorder %s208, %s209
      %p220 = scmp.eq.s32.totalorder %s27, 0
      %p221 = por %p219, %p220
      %p222 = scmp.ne.s32.totalorder %s208, %s209
      %p223 = scmp.eq.s32.totalorder %s28, 1
      %p224 = por %p222, %p223
      %p226 = scmp.ne.s32.totalorder %s209, %s225
      %p227 = scmp.eq.s32.totalorder %s28, 0
      %p228 = por %p226, %p227
      %p229 = scmp.le.s32.totalorder 1, %s22
      %p230 = scmp.lt.s32.totalorder %s22, 3
      %p231 = pnand %p229, %p230
      %p232 = pneg %p231
      // Predicated region
      $region9: #{tpu_custom_call.1} parent=5 // pred_check
        _
      $region10: #{tpu_custom_call.1} parent=5 // pred_check_branch
        %234 = sbr.rel (%p231) target = $region12
      $region11: #{tpu_custom_call.1} parent=5 // pred_region
        %s235 = ssub.s32 %s22, 1
        // Predicated region
        $region13: #{tpu_custom_call.1} parent=11 // pred_check
          %p236 = pneg %p43
        $region14: #{tpu_custom_call.1} parent=11 // pred_check_branch
          %238 = sbr.rel (%p236) target = $region16
        $region15: #{tpu_custom_call.1} parent=11 // pred_region
          _
        $region16: #{tpu_custom_call.1} parent=11 // pred_fallthru
          _
        // Predicated region
        $region17: #{tpu_custom_call.1} parent=11 // pred_check
          %p239 = pneg %p64
        $region18: #{tpu_custom_call.1} parent=11 // pred_check_branch
          %241 = sbr.rel (%p239) target = $region20
        $region19: #{tpu_custom_call.1} parent=11 // pred_region
          %s243 = ssub.s32 256, 256
          %244 = vsyncadd [#allocation3], %s243
          %s245 = sshll.u32 [#allocation2], 4
          %s246 = int_to_ptr.vmem [resolvable:$true] %s245
          %251 = dma.hbm_to_vmem [thread:$0]  %s1, 256, %s246, [#allocation3], 128, 128, 8
        $region20: #{tpu_custom_call.1} parent=11 // pred_fallthru
          _
        // Predicated region
        $region21: #{tpu_custom_call.1} parent=11 // pred_check
          %p252 = pneg %p85
        $region22: #{tpu_custom_call.1} parent=11 // pred_check_branch
          %254 = sbr.rel (%p252) target = $region24
        $region23: #{tpu_custom_call.1} parent=11 // pred_region
          _
        $region24: #{tpu_custom_call.1} parent=11 // pred_fallthru
          _
        // Predicated region
        $region25: #{tpu_custom_call.1} parent=11 // pred_check
          %p255 = pneg %p106
        $region26: #{tpu_custom_call.1} parent=11 // pred_check_branch
          %257 = sbr.rel (%p255) target = $region28
        $region27: #{tpu_custom_call.1} parent=11 // pred_region
          %s259 = ssub.s32 2304, 2304
          %260 = vsyncadd [#allocation6], %s259
          %s261 = sshll.u32 [#allocation5], 4
          %s262 = int_to_ptr.vmem [resolvable:$true] %s261
          %267 = dma.hbm_to_vmem [thread:$0]  %s3, 2304, %s262, [#allocation6], 128, 128, 8
        $region28: #{tpu_custom_call.1} parent=11 // pred_fallthru
          _
        // Predicated region
        $region29: #{tpu_custom_call.1} parent=11 // pred_check
          %p268 = pneg %p127
        $region30: #{tpu_custom_call.1} parent=11 // pred_check_branch
          %270 = sbr.rel (%p268) target = $region32
        $region31: #{tpu_custom_call.1} parent=11 // pred_region
          %s272 = ssub.s32 2304, 2304
          %273 = vsyncadd [#allocation6], %s272
          %s274 = sshll.u32 [#allocation7], 4
          %s275 = int_to_ptr.vmem [resolvable:$true] %s274
          %280 = dma.hbm_to_vmem [thread:$0]  %s4, 2304, %s275, [#allocation6], 128, 128, 8
        $region32: #{tpu_custom_call.1} parent=11 // pred_fallthru
          _
        // Predicated region
        $region33: #{tpu_custom_call.1} parent=11 // pred_check
          %p281 = pneg %p148
        $region34: #{tpu_custom_call.1} parent=11 // pred_check_branch
          %283 = sbr.rel (%p281) target = $region36
        $region35: #{tpu_custom_call.1} parent=11 // pred_region
          _
        $region36: #{tpu_custom_call.1} parent=11 // pred_fallthru
          _
        // Predicated region
        $region37: #{tpu_custom_call.1} parent=11 // pred_check
          %p284 = pneg %p169
        $region38: #{tpu_custom_call.1} parent=11 // pred_check_branch
          %286 = sbr.rel (%p284) target = $region40
        $region39: #{tpu_custom_call.1} parent=11 // pred_region
          _
        $region40: #{tpu_custom_call.1} parent=11 // pred_fallthru
          _
      $region12: #{tpu_custom_call.1} parent=5 // pred_fallthru
        _
      %p287 = scmp.lt.s32.totalorder %s22, 2
      // Predicated region
      $region41: #{tpu_custom_call.1} parent=5 // pred_check
        %p288 = pneg %p287
      $region42: #{tpu_custom_call.1} parent=5 // pred_check_branch
        %290 = sbr.rel (%p288) target = $region44
      $region43: #{tpu_custom_call.1} parent=5 // pred_region
        // Predicated region
        $region45: #{tpu_custom_call.1} parent=43 // pred_check
          %p291 = pneg %p189
        $region46: #{tpu_custom_call.1} parent=43 // pred_check_branch
          %293 = sbr.rel (%p291) target = $region48
        $region47: #{tpu_custom_call.1} parent=43 // pred_region
          %s294 = sand.u32 %s179, 1
          %s295 = scalar_lea.sflag [#allocation9], %s294
          %s296 = sand.u32 %s179, 1
          %s297 = smul.addr %s296, 32
          %s298 = scalar_lea.vmem [#allocation8], %s297
          %s300 = ssub.s32 512, 512
          %301 = vsyncadd %s295, %s300
          %s302 = smul.addr %s22, 4
          %s303 = smul.addr %s302, 128
          %s304 = scalar_lea.hbm %s7, %s303
          %s305 = sshll.u32 %s298, 4
          %s306 = int_to_ptr.vmem [resolvable:$true] %s305
          %311 = dma.hbm_to_vmem [thread:$0]  %s304, 512, %s306, %s295, 256, 256, 16
        $region48: #{tpu_custom_call.1} parent=43 // pred_fallthru
          _
      $region44: #{tpu_custom_call.1} parent=5 // pred_fallthru
        _
      %p312 = scmp.le.s32.totalorder 1, %s22
      %p313 = scmp.lt.s32.totalorder %s22, 3
      %p314 = pnand %p312, %p313
      %p315 = pneg %p314
      // Predicated region
      $region49: #{tpu_custom_call.1} parent=5 // pred_check
        _
      $region50: #{tpu_custom_call.1} parent=5 // pred_check_branch
        %317 = sbr.rel (%p314) target = $region52
      $region51: #{tpu_custom_call.1} parent=5 // pred_region
        %s318 = ssub.s32 %s22, 1
        // Predicated region
        $region53: #{tpu_custom_call.1} parent=51 // pred_check
          %p319 = pneg %p64
        $region54: #{tpu_custom_call.1} parent=51 // pred_check_branch
          %321 = sbr.rel (%p319) target = $region56
        $region55: #{tpu_custom_call.1} parent=51 // pred_region
          %322 = dma.done [#allocation3], 256
        $region56: #{tpu_custom_call.1} parent=51 // pred_fallthru
          _
        // Predicated region
        $region57: #{tpu_custom_call.1} parent=51 // pred_check
          %p323 = pneg %p106
        $region58: #{tpu_custom_call.1} parent=51 // pred_check_branch
          %325 = sbr.rel (%p323) target = $region60
        $region59: #{tpu_custom_call.1} parent=51 // pred_region
          %326 = dma.done [#allocation6], 2304
        $region60: #{tpu_custom_call.1} parent=51 // pred_fallthru
          _
        // Predicated region
        $region61: #{tpu_custom_call.1} parent=51 // pred_check
          %p327 = pneg %p127
        $region62: #{tpu_custom_call.1} parent=51 // pred_check_branch
          %329 = sbr.rel (%p327) target = $region64
        $region63: #{tpu_custom_call.1} parent=51 // pred_region
          %330 = dma.done [#allocation6], 2304
        $region64: #{tpu_custom_call.1} parent=51 // pred_fallthru
          _
        %s331 = sand.u32 %s182, 1
        %s332 = scalar_lea.sflag [#allocation9], %s331
        %s333 = sand.u32 %s182, 1
        %s334 = smul.addr %s333, 32
        %s335 = scalar_lea.vmem [#allocation8], %s334
        // Predicated region
        $region65: #{tpu_custom_call.1} parent=51 // pred_check
          %p336 = pneg %p195
        $region66: #{tpu_custom_call.1} parent=51 // pred_check_branch
          %338 = sbr.rel (%p336) target = $region68
        $region67: #{tpu_custom_call.1} parent=51 // pred_region
          %339 = dma.done %s332, 512
        $region68: #{tpu_custom_call.1} parent=51 // pred_fallthru
          _
        %p340 = pneg %p43
        %p341 = pneg %p40
        %p342 = pneg %p64
        %p343 = pneg %p61
        %p344 = pneg %p85
        %p345 = pneg %p82
        %p346 = pneg %p106
        %p347 = pneg %p103
        %p348 = pneg %p127
        %p349 = pneg %p124
        %p350 = pneg %p148
        %p351 = pneg %p145
        %p352 = pneg %p169
        %p353 = pneg %p166
        %s354 = sand.u32 %s182, 1
        %s355 = scalar_lea.sflag [#allocation9], %s354
        %s356 = sand.u32 %s182, 1
        %s357 = smul.addr %s356, 32
        %s358 = scalar_lea.vmem [#allocation8], %s357
        %p359 = pneg %p195
        %p360 = pneg %p192
        %p361 = pneg %p221
        %p362 = pneg %p218
        %s363 = sand.u32 %s208, 1
        %s364 = scalar_lea.sflag [#allocation4], %s363
        %s365 = sand.u32 %s208, 1
        %s366 = smul.addr %s365, 32
        %s367 = scalar_lea.vmem [#allocation10], %s366
        %v368 = vld [vmem:[%s335] sm:$0xff]
        %v369 = vld [vmem:[%s335 + $0x8] sm:$0xff]
        %v370 = vld [vmem:[%s335 + $0x10] sm:$0xff]
        %v371 = vld [vmem:[%s335 + $0x18] sm:$0xff]
        %v372 = vld [vmem:[%s0] sm:$0xff]
        %v373 = vld [vmem:[%s0 + $0x8] sm:$0xff]
        %vm374 = vcmask 130048
        %v376 = vsel %vm374, %v372, 0
        %v379 = vsel %vm374, %v373, 0
        %381 = vmatprep.subr.mxu0 0.0
        %382 = vmatpush1.msra.mxu0 0.0
        %383 = vmatprep.subr.mxu0 0.0
        %384 = vmatpush1.msra.mxu0 0.0
        %385 = vmatprep.subr.mxu0 0.0
        %386 = vmatpush1.msra.mxu0 0.0
        %387 = vmatprep.subr.mxu0 0.0
        %388 = vmatpush1.msra.mxu0 0.0
        %389 = vmatprep.subr.mxu0 0.0
        %390 = vmatpush1.msra.mxu0 0.0
        %391 = vmatprep.subr.mxu0 0.0
        %392 = vmatpush1.msra.mxu0 0.0
        %393 = vmatprep.subr.mxu0 0.0
        %394 = vmatpush1.msra.mxu0 0.0
        %395 = vmatprep.subr.mxu0 0.0
        %396 = vmatpush1.msra.mxu0 0.0
        %397 = vmatprep.subr.mxu0 0.0
        %398 = vmatpush1.msra.mxu0 0.0
        %399 = vmatprep.subr.mxu0 0.0
        %400 = vmatpush1.msra.mxu0 0.0
        %401 = vmatprep.subr.mxu0 0.0
        %402 = vmatpush1.msra.mxu0 0.0
        %403 = vmatprep.subr.mxu0 0.0
        %404 = vmatpush1.msra.mxu0 0.0
        %405 = vmatprep.subr.mxu0 0.0
        %406 = vmatpush1.msra.mxu0 0.0
        %407 = vmatprep.subr.mxu0 0.0
        %408 = vmatpush1.msra.mxu0 0.0
        %409 = vmatprep.subr.mxu0 %v371
        %410 = vmatpush1.msra.mxu0 %v370
        %411 = vmatprep.subr.mxu0 %v369
        %412 = vmatpush1.msra.mxu0 %v368
        %413 = vmatprep.subr.mxu0 0.0
        %414 = vmatpush2.msra.mxu0 0.0
        %415 = vmatprep.subr.mxu0 0.0
        %416 = vmatpush2.msra.mxu0 0.0
        %417 = vmatprep.subr.mxu0 0.0
        %418 = vmatpush2.msra.mxu0 0.0
        %419 = vmatprep.subr.mxu0 0.0
        %420 = vmatpush2.msra.mxu0 0.0
        %421 = vmatprep.subr.mxu0 0.0
        %422 = vmatpush2.msra.mxu0 0.0
        %423 = vmatprep.subr.mxu0 0.0
        %424 = vmatpush2.msra.mxu0 0.0
        %425 = vmatprep.subr.mxu0 0.0
        %426 = vmatpush2.msra.mxu0 0.0
        %427 = vmatprep.subr.mxu0 0.0
        %428 = vmatpush2.msra.mxu0 0.0
        %429 = vmatprep.subr.mxu0 0.0
        %430 = vmatpush2.msra.mxu0 0.0
        %431 = vmatprep.subr.mxu0 0.0
        %432 = vmatpush2.msra.mxu0 0.0
        %433 = vmatprep.subr.mxu0 0.0
        %434 = vmatpush2.msra.mxu0 0.0
        %435 = vmatprep.subr.mxu0 0.0
        %436 = vmatpush2.msra.mxu0 0.0
        %437 = vmatprep.subr.mxu0 0.0
        %438 = vmatpush2.msra.mxu0 0.0
        %439 = vmatprep.subr.mxu0 0.0
        %440 = vmatpush2.msra.mxu0 0.0
        %441 = vmatprep.subr.mxu0 0.0
        %442 = vmatpush2.msra.mxu0 0.0
        %443 = vmatprep.subr.mxu0 0.0
        %444 = vmatpush2.msra.mxu0 0.0
        %445 = vmatprep.mubr.f32.mxu0 0.0
        %446 = vmatmul.mubr.f32.gmra.mxu0 %v376
        %v447 = vpop.f32.mrf.mxu0
        %v448 = vadd.f32 0.0, %v447
        %v449 = vpop.f32.mrf.mxu0
        %v450 = vadd.f32 0.0, %v449
        %451 = vmatprep.mubr.f32.mxu0 0.0
        %452 = vmatmul.mubr.f32.gmra.mxu0 %v379
        %v453 = vpop.f32.mrf.mxu0
        %v454 = vadd.f32 0.0, %v453
        %v455 = vpop.f32.mrf.mxu0
        %v456 = vadd.f32 0.0, %v455
        %457 = vdwg.mxu0
        %v458 = vld [vmem:[#allocation2] sm:$0xff]
        %v459 = vld [vmem:[#allocation2 + $0x8] sm:$0xff]
        %v460 = vmul.f32 %v448, %v448
        %v461 = vmul.f32 %v450, %v450
        %v462 = vmul.f32 %v454, %v454
        %v463 = vmul.f32 %v456, %v456
        %v465 = vsel %vm374, %v458, 0
        %v468 = vsel %vm374, %v459, 0
        %470 = vmatprep.subr.mxu0 0.0
        %471 = vmatpush1.msra.mxu0 0.0
        %472 = vmatprep.subr.mxu0 0.0
        %473 = vmatpush1.msra.mxu0 0.0
        %474 = vmatprep.subr.mxu0 0.0
        %475 = vmatpush1.msra.mxu0 0.0
        %476 = vmatprep.subr.mxu0 0.0
        %477 = vmatpush1.msra.mxu0 0.0
        %478 = vmatprep.subr.mxu0 0.0
        %479 = vmatpush1.msra.mxu0 0.0
        %480 = vmatprep.subr.mxu0 0.0
        %481 = vmatpush1.msra.mxu0 0.0
        %482 = vmatprep.subr.mxu0 0.0
        %483 = vmatpush1.msra.mxu0 0.0
        %484 = vmatprep.subr.mxu0 0.0
        %485 = vmatpush1.msra.mxu0 0.0
        %486 = vmatprep.subr.mxu0 0.0
        %487 = vmatpush1.msra.mxu0 0.0
        %488 = vmatprep.subr.mxu0 0.0
        %489 = vmatpush1.msra.mxu0 0.0
        %490 = vmatprep.subr.mxu0 0.0
        %491 = vmatpush1.msra.mxu0 0.0
        %492 = vmatprep.subr.mxu0 0.0
        %493 = vmatpush1.msra.mxu0 0.0
        %494 = vmatprep.subr.mxu0 0.0
        %495 = vmatpush1.msra.mxu0 0.0
        %496 = vmatprep.subr.mxu0 0.0
        %497 = vmatpush1.msra.mxu0 0.0
        %498 = vmatprep.subr.mxu0 %v463
        %499 = vmatpush1.msra.mxu0 %v462
        %500 = vmatprep.subr.mxu0 %v461
        %501 = vmatpush1.msra.mxu0 %v460
        %502 = vmatprep.subr.mxu0 0.0
        %503 = vmatpush2.msra.mxu0 0.0
        %504 = vmatprep.subr.mxu0 0.0
        %505 = vmatpush2.msra.mxu0 0.0
        %506 = vmatprep.subr.mxu0 0.0
        %507 = vmatpush2.msra.mxu0 0.0
        %508 = vmatprep.subr.mxu0 0.0
        %509 = vmatpush2.msra.mxu0 0.0
        %510 = vmatprep.subr.mxu0 0.0
        %511 = vmatpush2.msra.mxu0 0.0
        %512 = vmatprep.subr.mxu0 0.0
        %513 = vmatpush2.msra.mxu0 0.0
        %514 = vmatprep.subr.mxu0 0.0
        %515 = vmatpush2.msra.mxu0 0.0
        %516 = vmatprep.subr.mxu0 0.0
        %517 = vmatpush2.msra.mxu0 0.0
        %518 = vmatprep.subr.mxu0 0.0
        %519 = vmatpush2.msra.mxu0 0.0
        %520 = vmatprep.subr.mxu0 0.0
        %521 = vmatpush2.msra.mxu0 0.0
        %522 = vmatprep.subr.mxu0 0.0
        %523 = vmatpush2.msra.mxu0 0.0
        %524 = vmatprep.subr.mxu0 0.0
        %525 = vmatpush2.msra.mxu0 0.0
        %526 = vmatprep.subr.mxu0 0.0
        %527 = vmatpush2.msra.mxu0 0.0
        %528 = vmatprep.subr.mxu0 0.0
        %529 = vmatpush2.msra.mxu0 0.0
        %530 = vmatprep.subr.mxu0 0.0
        %531 = vmatpush2.msra.mxu0 0.0
        %532 = vmatprep.subr.mxu0 0.0
        %533 = vmatpush2.msra.mxu0 0.0
        %534 = vmatprep.mubr.f32.mxu0 0.0
        %535 = vmatmul.mubr.f32.gmra.mxu0 %v465
        %v536 = vpop.f32.mrf.mxu0
        %v537 = vadd.f32 1e-05, %v536
        %v538 = vpop.f32.mrf.mxu0
        %v539 = vadd.f32 1e-05, %v538
        %540 = vmatprep.mubr.f32.mxu0 0.0
        %541 = vmatmul.mubr.f32.gmra.mxu0 %v468
        %v542 = vpop.f32.mrf.mxu0
        %v543 = vadd.f32 1e-05, %v542
        %v544 = vpop.f32.mrf.mxu0
        %v545 = vadd.f32 1e-05, %v544
        %546 = vdwg.mxu0
        %v547 = vrsqrt.pop %v537
        %v548 = vrsqrt.pop %v539
        %v549 = vrsqrt.pop %v543
        %v550 = vrsqrt.pop %v545
        %v551 = vmul.f32 %v448, %v547
        %v552 = vmul.f32 %v450, %v548
        %v553 = vmul.f32 %v454, %v549
        %v554 = vmul.f32 %v456, %v550
        %v555 = vld [vmem:[%s2] sm:$0xff]
        %v556 = vld [vmem:[%s2 + $0x8] sm:$0xff]
        %v557 = vld [vmem:[%s2 + $0x10] sm:$0xff]
        %v558 = vld [vmem:[%s2 + $0x18] sm:$0xff]
        %v560 = vsel %vm374, %v555, 0
        %v563 = vsel %vm374, %v556, 0
        %v566 = vsel %vm374, %v557, 0
        %v569 = vsel %vm374, %v558, 0
        %571 = vmatprep.subr.mxu0 0.0
        %572 = vmatpush1.msra.mxu0 0.0
        %573 = vmatprep.subr.mxu0 0.0
        %574 = vmatpush1.msra.mxu0 0.0
        %575 = vmatprep.subr.mxu0 0.0
        %576 = vmatpush1.msra.mxu0 0.0
        %577 = vmatprep.subr.mxu0 0.0
        %578 = vmatpush1.msra.mxu0 0.0
        %579 = vmatprep.subr.mxu0 0.0
        %580 = vmatpush1.msra.mxu0 0.0
        %581 = vmatprep.subr.mxu0 0.0
        %582 = vmatpush1.msra.mxu0 0.0
        %583 = vmatprep.subr.mxu0 0.0
        %584 = vmatpush1.msra.mxu0 0.0
        %585 = vmatprep.subr.mxu0 0.0
        %586 = vmatpush1.msra.mxu0 0.0
        %587 = vmatprep.subr.mxu0 0.0
        %588 = vmatpush1.msra.mxu0 0.0
        %589 = vmatprep.subr.mxu0 0.0
        %590 = vmatpush1.msra.mxu0 0.0
        %591 = vmatprep.subr.mxu0 0.0
        %592 = vmatpush1.msra.mxu0 0.0
        %593 = vmatprep.subr.mxu0 0.0
        %594 = vmatpush1.msra.mxu0 0.0
        %595 = vmatprep.subr.mxu0 0.0
        %596 = vmatpush1.msra.mxu0 0.0
        %597 = vmatprep.subr.mxu0 0.0
        %598 = vmatpush1.msra.mxu0 0.0
        %599 = vmatprep.subr.mxu0 %v554
        %600 = vmatpush1.msra.mxu0 %v553
        %601 = vmatprep.subr.mxu0 %v552
        %602 = vmatpush1.msra.mxu0 %v551
        %603 = vmatprep.subr.mxu0 0.0
        %604 = vmatpush2.msra.mxu0 0.0
        %605 = vmatprep.subr.mxu0 0.0
        %606 = vmatpush2.msra.mxu0 0.0
        %607 = vmatprep.subr.mxu0 0.0
        %608 = vmatpush2.msra.mxu0 0.0
        %609 = vmatprep.subr.mxu0 0.0
        %610 = vmatpush2.msra.mxu0 0.0
        %611 = vmatprep.subr.mxu0 0.0
        %612 = vmatpush2.msra.mxu0 0.0
        %613 = vmatprep.subr.mxu0 0.0
        %614 = vmatpush2.msra.mxu0 0.0
        %615 = vmatprep.subr.mxu0 0.0
        %616 = vmatpush2.msra.mxu0 0.0
        %617 = vmatprep.subr.mxu0 0.0
        %618 = vmatpush2.msra.mxu0 0.0
        %619 = vmatprep.subr.mxu0 0.0
        %620 = vmatpush2.msra.mxu0 0.0
        %621 = vmatprep.subr.mxu0 0.0
        %622 = vmatpush2.msra.mxu0 0.0
        %623 = vmatprep.subr.mxu0 0.0
        %624 = vmatpush2.msra.mxu0 0.0
        %625 = vmatprep.subr.mxu0 0.0
        %626 = vmatpush2.msra.mxu0 0.0
        %627 = vmatprep.subr.mxu0 0.0
        %628 = vmatpush2.msra.mxu0 0.0
        %629 = vmatprep.subr.mxu0 0.0
        %630 = vmatpush2.msra.mxu0 0.0
        %631 = vmatprep.subr.mxu0 0.0
        %632 = vmatpush2.msra.mxu0 0.0
        %633 = vmatprep.subr.mxu0 0.0
        %634 = vmatpush2.msra.mxu0 0.0
        %635 = vmatprep.mubr.f32.mxu0 0.0
        %636 = vmatmul.mubr.f32.gmra.mxu0 %v560
        %v637 = vpop.f32.mrf.mxu0
        %v638 = vadd.f32 0.0, %v637
        %v639 = vpop.f32.mrf.mxu0
        %v640 = vadd.f32 0.0, %v639
        %641 = vmatprep.mubr.f32.mxu0 0.0
        %642 = vmatmul.mubr.f32.gmra.mxu0 %v563
        %v643 = vpop.f32.mrf.mxu0
        %v644 = vadd.f32 0.0, %v643
        %v645 = vpop.f32.mrf.mxu0
        %v646 = vadd.f32 0.0, %v645
        %647 = vmatprep.mubr.f32.mxu0 0.0
        %648 = vmatmul.mubr.f32.gmra.mxu0 %v566
        %v649 = vpop.f32.mrf.mxu0
        %v650 = vadd.f32 0.0, %v649
        %v651 = vpop.f32.mrf.mxu0
        %v652 = vadd.f32 0.0, %v651
        %653 = vmatprep.mubr.f32.mxu0 0.0
        %654 = vmatmul.mubr.f32.gmra.mxu0 %v569
        %v655 = vpop.f32.mrf.mxu0
        %v656 = vadd.f32 0.0, %v655
        %v657 = vpop.f32.mrf.mxu0
        %v658 = vadd.f32 0.0, %v657
        %659 = vdwg.mxu0
        %v660 = vld [vmem:[%s5] sm:$0xff]
        %v661 = vld [vmem:[%s5 + $0x8] sm:$0xff]
        %662 = vmatprep.subr.mxu0 0.0
        %663 = vmatpush1.xpose.msra.mxu0 0.0
        %664 = vmatprep.subr.mxu0 0.0
        %665 = vmatpush1.xpose.msra.mxu0 0.0
        %666 = vmatprep.subr.mxu0 0.0
        %667 = vmatpush1.xpose.msra.mxu0 0.0
        %668 = vmatprep.subr.mxu0 0.0
        %669 = vmatpush1.xpose.msra.mxu0 0.0
        %670 = vmatprep.subr.mxu0 0.0
        %671 = vmatpush1.xpose.msra.mxu0 0.0
        %672 = vmatprep.subr.mxu0 0.0
        %673 = vmatpush1.xpose.msra.mxu0 0.0
        %674 = vmatprep.subr.mxu0 0.0
        %675 = vmatpush1.xpose.msra.mxu0 0.0
        %676 = vmatprep.subr.mxu0 0.0
        %677 = vmatpush1.xpose.msra.mxu0 0.0
        %678 = vmatprep.subr.mxu0 0.0
        %679 = vmatpush1.xpose.msra.mxu0 0.0
        %680 = vmatprep.subr.mxu0 0.0
        %681 = vmatpush1.xpose.msra.mxu0 0.0
        %682 = vmatprep.subr.mxu0 0.0
        %683 = vmatpush1.xpose.msra.mxu0 0.0
        %684 = vmatprep.subr.mxu0 0.0
        %685 = vmatpush1.xpose.msra.mxu0 0.0
        %686 = vmatprep.subr.mxu0 0.0
        %687 = vmatpush1.xpose.msra.mxu0 0.0
        %688 = vmatprep.subr.mxu0 0.0
        %689 = vmatpush1.xpose.msra.mxu0 0.0
        %690 = vmatprep.subr.mxu0 %v646
        %691 = vmatpush1.xpose.msra.mxu0 %v644
        %692 = vmatprep.subr.mxu0 %v640
        %693 = vmatpush1.xpose.msra.mxu0 %v638
        %694 = vmatprep.subr.mxu0 0.0
        %695 = vmatpush2.xpose.msra.mxu0 0.0
        %696 = vmatprep.subr.mxu0 0.0
        %697 = vmatpush2.xpose.msra.mxu0 0.0
        %698 = vmatprep.subr.mxu0 0.0
        %699 = vmatpush2.xpose.msra.mxu0 0.0
        %700 = vmatprep.subr.mxu0 0.0
        %701 = vmatpush2.xpose.msra.mxu0 0.0
        %702 = vmatprep.subr.mxu0 0.0
        %703 = vmatpush2.xpose.msra.mxu0 0.0
        %704 = vmatprep.subr.mxu0 0.0
        %705 = vmatpush2.xpose.msra.mxu0 0.0
        %706 = vmatprep.subr.mxu0 0.0
        %707 = vmatpush2.xpose.msra.mxu0 0.0
        %708 = vmatprep.subr.mxu0 0.0
        %709 = vmatpush2.xpose.msra.mxu0 0.0
        %710 = vmatprep.subr.mxu0 0.0
        %711 = vmatpush2.xpose.msra.mxu0 0.0
        %712 = vmatprep.subr.mxu0 0.0
        %713 = vmatpush2.xpose.msra.mxu0 0.0
        %714 = vmatprep.subr.mxu0 0.0
        %715 = vmatpush2.xpose.msra.mxu0 0.0
        %716 = vmatprep.subr.mxu0 0.0
        %717 = vmatpush2.xpose.msra.mxu0 0.0
        %718 = vmatprep.subr.mxu0 0.0
        %719 = vmatpush2.xpose.msra.mxu0 0.0
        %720 = vmatprep.subr.mxu0 0.0
        %721 = vmatpush2.xpose.msra.mxu0 0.0
        %722 = vmatprep.subr.mxu0 0.0
        %723 = vmatpush2.xpose.msra.mxu0 0.0
        %724 = vmatprep.subr.mxu0 0.0
        %725 = vmatpush2.xpose.msra.mxu0 0.0
        %726 = vmatprep.mubr.f32.mxu0 %v552
        %727 = vmatmul.mubr.f32.gmra.mxu0 %v551
        %v728 = vpop.f32.mrf.mxu0
        %v729 = vadd.f32 %v660, %v728
        %v730 = vpop.f32.mrf.mxu0
        %731 = vmatprep.mubr.f32.mxu0 %v554
        %732 = vmatmul.mubr.f32.gmra.mxu0 %v553
        %v733 = vpop.f32.mrf.mxu0
        %v734 = vadd.f32 %v661, %v733
        %v735 = vpop.f32.mrf.mxu0
        %736 = vdwg.mxu0
        %v737 = vsel %vm374, %v729, -inf
        %738 = vmax.xlane.f32.xlu0 %v737
        %v739 = vpop.xlane.xlu0 %738
        %v740 = vsel %vm374, %v734, -inf
        %741 = vmax.xlane.f32.xlu0 %v740
        %v742 = vpop.xlane.xlu0 %741
        %v743 = vsub.f32 %v729, %v739
        %v744 = vsub.f32 %v734, %v742
        %v745 = vmul.f32 %v743, 1.442695
        %v746 = vpow.pop %v745
        %v747 = vmul.f32 %v744, 1.442695
        %v748 = vpow.pop %v747
        %v749 = vsel %vm374, %v746, 0.0
        %750 = vadd.xlane.f32.xlu0 %v749
        %v751 = vpop.xlane.xlu0 %750
        %v752 = vsel %vm374, %v748, 0.0
        %753 = vadd.xlane.f32.xlu0 %v752
        %v754 = vpop.xlane.xlu0 %753
        %v755 = vrcp.pop %v751
        %v756 = vmul.f32 %v746, %v755
        %v757 = vrcp.pop %v754
        %v758 = vmul.f32 %v748, %v757
        %v760 = vsel %vm374, %v756, 0
        %v763 = vsel %vm374, %v758, 0
        %765 = vmatprep.subr.mxu0 0.0
        %766 = vmatpush1.msra.mxu0 0.0
        %767 = vmatprep.subr.mxu0 0.0
        %768 = vmatpush1.msra.mxu0 0.0
        %769 = vmatprep.subr.mxu0 0.0
        %770 = vmatpush1.msra.mxu0 0.0
        %771 = vmatprep.subr.mxu0 0.0
        %772 = vmatpush1.msra.mxu0 0.0
        %773 = vmatprep.subr.mxu0 0.0
        %774 = vmatpush1.msra.mxu0 0.0
        %775 = vmatprep.subr.mxu0 0.0
        %776 = vmatpush1.msra.mxu0 0.0
        %777 = vmatprep.subr.mxu0 0.0
        %778 = vmatpush1.msra.mxu0 0.0
        %779 = vmatprep.subr.mxu0 0.0
        %780 = vmatpush1.msra.mxu0 0.0
        %781 = vmatprep.subr.mxu0 0.0
        %782 = vmatpush1.msra.mxu0 0.0
        %783 = vmatprep.subr.mxu0 0.0
        %784 = vmatpush1.msra.mxu0 0.0
        %785 = vmatprep.subr.mxu0 0.0
        %786 = vmatpush1.msra.mxu0 0.0
        %787 = vmatprep.subr.mxu0 0.0
        %788 = vmatpush1.msra.mxu0 0.0
        %789 = vmatprep.subr.mxu0 0.0
        %790 = vmatpush1.msra.mxu0 0.0
        %791 = vmatprep.subr.mxu0 0.0
        %792 = vmatpush1.msra.mxu0 0.0
        %793 = vmatprep.subr.mxu0 %v658
        %794 = vmatpush1.msra.mxu0 %v656
        %795 = vmatprep.subr.mxu0 %v652
        %796 = vmatpush1.msra.mxu0 %v650
        %797 = vmatprep.subr.mxu0 0.0
        %798 = vmatpush2.msra.mxu0 0.0
        %799 = vmatprep.subr.mxu0 0.0
        %800 = vmatpush2.msra.mxu0 0.0
        %801 = vmatprep.subr.mxu0 0.0
        %802 = vmatpush2.msra.mxu0 0.0
        %803 = vmatprep.subr.mxu0 0.0
        %804 = vmatpush2.msra.mxu0 0.0
        %805 = vmatprep.subr.mxu0 0.0
        %806 = vmatpush2.msra.mxu0 0.0
        %807 = vmatprep.subr.mxu0 0.0
        %808 = vmatpush2.msra.mxu0 0.0
        %809 = vmatprep.subr.mxu0 0.0
        %810 = vmatpush2.msra.mxu0 0.0
        %811 = vmatprep.subr.mxu0 0.0
        %812 = vmatpush2.msra.mxu0 0.0
        %813 = vmatprep.subr.mxu0 0.0
        %814 = vmatpush2.msra.mxu0 0.0
        %815 = vmatprep.subr.mxu0 0.0
        %816 = vmatpush2.msra.mxu0 0.0
        %817 = vmatprep.subr.mxu0 0.0
        %818 = vmatpush2.msra.mxu0 0.0
        %819 = vmatprep.subr.mxu0 0.0
        %820 = vmatpush2.msra.mxu0 0.0
        %821 = vmatprep.subr.mxu0 0.0
        %822 = vmatpush2.msra.mxu0 0.0
        %823 = vmatprep.subr.mxu0 0.0
        %824 = vmatpush2.msra.mxu0 0.0
        %825 = vmatprep.subr.mxu0 0.0
        %826 = vmatpush2.msra.mxu0 0.0
        %827 = vmatprep.subr.mxu0 0.0
        %828 = vmatpush2.msra.mxu0 0.0
        %829 = vmatprep.mubr.f32.mxu0 0.0
        %830 = vmatmul.mubr.f32.gmra.mxu0 %v760
        %v831 = vpop.f32.mrf.mxu0
        %v832 = vadd.f32 0.0, %v831
        %v833 = vpop.f32.mrf.mxu0
        %v834 = vadd.f32 0.0, %v833
        %835 = vmatprep.mubr.f32.mxu0 0.0
        %836 = vmatmul.mubr.f32.gmra.mxu0 %v763
        %v837 = vpop.f32.mrf.mxu0
        %v838 = vadd.f32 0.0, %v837
        %v839 = vpop.f32.mrf.mxu0
        %v840 = vadd.f32 0.0, %v839
        %841 = vdwg.mxu0
        %844 = vrot.lane.b32.xlu0 %v834, 17
        %v845 = vpop.permute.xlu0 %844
        %846 = vrot.lane.b32.xlu0 %v840, 17
        %v847 = vpop.permute.xlu0 %846
        %852 = vrot.lane.b32.xlu0 %v832, 17
        %v853 = vpop.permute.xlu0 %852
        %854 = vrot.lane.b32.xlu0 %v838, 17
        %v855 = vpop.permute.xlu0 %854
        %vm856 = vcmask 138240
        %v857 = vsel %vm856, %v853, %v845
        %v858 = vsel %vm856, %v855, %v847
        %v863 = vsel %vm856, %v845, %v853
        %v864 = vsel %vm856, %v847, %v855
        %v865 = vld [vmem:[%s6] sm:$0x3]
        %v867 = vlaneseq
        %v868 = vshrl.u32 %v867, 7
        %v869 = vsub.s32 0, %v868
        %v870 = vrot.slane %v865, %v869
        %v871 = vlaneseq
        %v872 = vshrl.u32 %v871, 7
        %v873 = vsub.s32 1, %v872
        %v874 = vrot.slane %v865, %v873
        %v877 = vmul.f32 %v863, %v870
        %v878 = vmul.f32 %v857, %v874
        %v879 = vmul.f32 %v864, %v870
        %v880 = vmul.f32 %v858, %v874
        %v881 = vld [vmem:[#allocation5] sm:$0xff]
        %v882 = vld [vmem:[#allocation5 + $0x8] sm:$0xff]
        %883 = vrot.lane.b32.xlu0 %v834, 16
        %v884 = vpop.permute.xlu0 %883
        %885 = vrot.lane.b32.xlu0 %v840, 16
        %v886 = vpop.permute.xlu0 %885
        %889 = vrot.lane.b32.xlu0 %v832, 16
        %v890 = vpop.permute.xlu0 %889
        %891 = vrot.lane.b32.xlu0 %v838, 16
        %v892 = vpop.permute.xlu0 %891
        %v893 = vsel %vm374, %v890, %v884
        %v894 = vsel %vm374, %v892, %v886
        %v899 = vsel %vm374, %v884, %v890
        %v900 = vsel %vm374, %v886, %v892
        %s901 = scalar_lea.vmem %s6, 2
        %v902 = vld [vmem:[%s901] sm:$0x3]
        %v904 = vlaneseq
        %v905 = vshrl.u32 %v904, 7
        %v906 = vsub.s32 0, %v905
        %v907 = vrot.slane %v902, %v906
        %v908 = vlaneseq
        %v909 = vshrl.u32 %v908, 7
        %v910 = vsub.s32 1, %v909
        %v911 = vrot.slane %v902, %v910
        %v914 = vmul.f32 %v899, %v907
        %v915 = vmul.f32 %v893, %v911
        %v916 = vmul.f32 %v900, %v907
        %v917 = vmul.f32 %v894, %v911
        %s918 = scalar_lea.vmem [#allocation5], 16
        %v919 = vld [vmem:[%s918] sm:$0xff]
        %v920 = vld [vmem:[%s918 + $0x8] sm:$0xff]
        %v922 = vsel %vm374, %v919, 0
        %v925 = vsel %vm374, %v920, 0
        %927 = vmatprep.subr.mxu0 0.0
        %928 = vmatpush1.msra.mxu0 0.0
        %929 = vmatprep.subr.mxu0 0.0
        %930 = vmatpush1.msra.mxu0 0.0
        %931 = vmatprep.subr.mxu0 0.0
        %932 = vmatpush1.msra.mxu0 0.0
        %933 = vmatprep.subr.mxu0 0.0
        %934 = vmatpush1.msra.mxu0 0.0
        %935 = vmatprep.subr.mxu0 0.0
        %936 = vmatpush1.msra.mxu0 0.0
        %937 = vmatprep.subr.mxu0 0.0
        %938 = vmatpush1.msra.mxu0 0.0
        %939 = vmatprep.subr.mxu0 0.0
        %940 = vmatpush1.msra.mxu0 0.0
        %941 = vmatprep.subr.mxu0 0.0
        %942 = vmatpush1.msra.mxu0 0.0
        %943 = vmatprep.subr.mxu0 0.0
        %944 = vmatpush1.msra.mxu0 0.0
        %945 = vmatprep.subr.mxu0 0.0
        %946 = vmatpush1.msra.mxu0 0.0
        %947 = vmatprep.subr.mxu0 0.0
        %948 = vmatpush1.msra.mxu0 0.0
        %949 = vmatprep.subr.mxu0 0.0
        %950 = vmatpush1.msra.mxu0 0.0
        %951 = vmatprep.subr.mxu0 0.0
        %952 = vmatpush1.msra.mxu0 0.0
        %953 = vmatprep.subr.mxu0 0.0
        %954 = vmatpush1.msra.mxu0 0.0
        %955 = vmatprep.subr.mxu0 %v917
        %956 = vmatpush1.msra.mxu0 %v916
        %957 = vmatprep.subr.mxu0 %v915
        %958 = vmatpush1.msra.mxu0 %v914
        %959 = vmatprep.subr.mxu0 0.0
        %960 = vmatpush2.msra.mxu0 0.0
        %961 = vmatprep.subr.mxu0 0.0
        %962 = vmatpush2.msra.mxu0 0.0
        %963 = vmatprep.subr.mxu0 0.0
        %964 = vmatpush2.msra.mxu0 0.0
        %965 = vmatprep.subr.mxu0 0.0
        %966 = vmatpush2.msra.mxu0 0.0
        %967 = vmatprep.subr.mxu0 0.0
        %968 = vmatpush2.msra.mxu0 0.0
        %969 = vmatprep.subr.mxu0 0.0
        %970 = vmatpush2.msra.mxu0 0.0
        %971 = vmatprep.subr.mxu0 0.0
        %972 = vmatpush2.msra.mxu0 0.0
        %973 = vmatprep.subr.mxu0 0.0
        %974 = vmatpush2.msra.mxu0 0.0
        %975 = vmatprep.subr.mxu0 0.0
        %976 = vmatpush2.msra.mxu0 0.0
        %977 = vmatprep.subr.mxu0 0.0
        %978 = vmatpush2.msra.mxu0 0.0
        %979 = vmatprep.subr.mxu0 0.0
        %980 = vmatpush2.msra.mxu0 0.0
        %981 = vmatprep.subr.mxu0 0.0
        %982 = vmatpush2.msra.mxu0 0.0
        %983 = vmatprep.subr.mxu0 0.0
        %984 = vmatpush2.msra.mxu0 0.0
        %985 = vmatprep.subr.mxu0 0.0
        %986 = vmatpush2.msra.mxu0 0.0
        %987 = vmatprep.subr.mxu0 0.0
        %988 = vmatpush2.msra.mxu0 0.0
        %989 = vmatprep.subr.mxu0 0.0
        %990 = vmatpush2.msra.mxu0 0.0
        %991 = vmatprep.mubr.f32.mxu0 0.0
        %992 = vmatmul.mubr.f32.gmra.mxu0 %v922
        %v993 = vpop.f32.mrf.mxu0
        %v994 = vadd.f32 0.0, %v993
        %v995 = vpop.f32.mrf.mxu0
        %v996 = vadd.f32 0.0, %v995
        %997 = vmatprep.mubr.f32.mxu0 0.0
        %998 = vmatmul.mubr.f32.gmra.mxu0 %v925
        %v999 = vpop.f32.mrf.mxu0
        %v1000 = vadd.f32 0.0, %v999
        %v1001 = vpop.f32.mrf.mxu0
        %v1002 = vadd.f32 0.0, %v1001
        %1003 = vdwg.mxu0
        %v1005 = vsel %vm374, %v881, 0
        %v1008 = vsel %vm374, %v882, 0
        %1010 = vmatprep.subr.mxu0 0.0
        %1011 = vmatpush1.msra.mxu0 0.0
        %1012 = vmatprep.subr.mxu0 0.0
        %1013 = vmatpush1.msra.mxu0 0.0
        %1014 = vmatprep.subr.mxu0 0.0
        %1015 = vmatpush1.msra.mxu0 0.0
        %1016 = vmatprep.subr.mxu0 0.0
        %1017 = vmatpush1.msra.mxu0 0.0
        %1018 = vmatprep.subr.mxu0 0.0
        %1019 = vmatpush1.msra.mxu0 0.0
        %1020 = vmatprep.subr.mxu0 0.0
        %1021 = vmatpush1.msra.mxu0 0.0
        %1022 = vmatprep.subr.mxu0 0.0
        %1023 = vmatpush1.msra.mxu0 0.0
        %1024 = vmatprep.subr.mxu0 0.0
        %1025 = vmatpush1.msra.mxu0 0.0
        %1026 = vmatprep.subr.mxu0 0.0
        %1027 = vmatpush1.msra.mxu0 0.0
        %1028 = vmatprep.subr.mxu0 0.0
        %1029 = vmatpush1.msra.mxu0 0.0
        %1030 = vmatprep.subr.mxu0 0.0
        %1031 = vmatpush1.msra.mxu0 0.0
        %1032 = vmatprep.subr.mxu0 0.0
        %1033 = vmatpush1.msra.mxu0 0.0
        %1034 = vmatprep.subr.mxu0 0.0
        %1035 = vmatpush1.msra.mxu0 0.0
        %1036 = vmatprep.subr.mxu0 0.0
        %1037 = vmatpush1.msra.mxu0 0.0
        %1038 = vmatprep.subr.mxu0 %v880
        %1039 = vmatpush1.msra.mxu0 %v879
        %1040 = vmatprep.subr.mxu0 %v878
        %1041 = vmatpush1.msra.mxu0 %v877
        %1042 = vmatprep.subr.mxu0 0.0
        %1043 = vmatpush2.msra.mxu0 0.0
        %1044 = vmatprep.subr.mxu0 0.0
        %1045 = vmatpush2.msra.mxu0 0.0
        %1046 = vmatprep.subr.mxu0 0.0
        %1047 = vmatpush2.msra.mxu0 0.0
        %1048 = vmatprep.subr.mxu0 0.0
        %1049 = vmatpush2.msra.mxu0 0.0
        %1050 = vmatprep.subr.mxu0 0.0
        %1051 = vmatpush2.msra.mxu0 0.0
        %1052 = vmatprep.subr.mxu0 0.0
        %1053 = vmatpush2.msra.mxu0 0.0
        %1054 = vmatprep.subr.mxu0 0.0
        %1055 = vmatpush2.msra.mxu0 0.0
        %1056 = vmatprep.subr.mxu0 0.0
        %1057 = vmatpush2.msra.mxu0 0.0
        %1058 = vmatprep.subr.mxu0 0.0
        %1059 = vmatpush2.msra.mxu0 0.0
        %1060 = vmatprep.subr.mxu0 0.0
        %1061 = vmatpush2.msra.mxu0 0.0
        %1062 = vmatprep.subr.mxu0 0.0
        %1063 = vmatpush2.msra.mxu0 0.0
        %1064 = vmatprep.subr.mxu0 0.0
        %1065 = vmatpush2.msra.mxu0 0.0
        %1066 = vmatprep.subr.mxu0 0.0
        %1067 = vmatpush2.msra.mxu0 0.0
        %1068 = vmatprep.subr.mxu0 0.0
        %1069 = vmatpush2.msra.mxu0 0.0
        %1070 = vmatprep.subr.mxu0 0.0
        %1071 = vmatpush2.msra.mxu0 0.0
        %1072 = vmatprep.subr.mxu0 0.0
        %1073 = vmatpush2.msra.mxu0 0.0
        %1074 = vmatprep.mubr.f32.mxu0 0.0
        %1075 = vmatmul.mubr.f32.gmra.mxu0 %v1005
        %v1076 = vpop.f32.mrf.mxu0
        %v1077 = vadd.f32 %v994, %v1076
        %v1078 = vpop.f32.mrf.mxu0
        %v1079 = vadd.f32 %v996, %v1078
        %1080 = vmatprep.mubr.f32.mxu0 0.0
        %1081 = vmatmul.mubr.f32.gmra.mxu0 %v1008
        %v1082 = vpop.f32.mrf.mxu0
        %v1083 = vadd.f32 %v1000, %v1082
        %v1084 = vpop.f32.mrf.mxu0
        %v1085 = vadd.f32 %v1002, %v1084
        %1086 = vdwg.mxu0
        %1087 = vrot.lane.b32.xlu0 %v834, 15
        %v1088 = vpop.permute.xlu0 %1087
        %1089 = vrot.lane.b32.xlu0 %v840, 15
        %v1090 = vpop.permute.xlu0 %1089
        %1093 = vrot.lane.b32.xlu0 %v832, 15
        %v1094 = vpop.permute.xlu0 %1093
        %1095 = vrot.lane.b32.xlu0 %v838, 15
        %v1096 = vpop.permute.xlu0 %1095
        %vm1097 = vcmask 121856
        %v1098 = vsel %vm1097, %v1094, %v1088
        %v1099 = vsel %vm1097, %v1096, %v1090
        %v1104 = vsel %vm1097, %v1088, %v1094
        %v1105 = vsel %vm1097, %v1090, %v1096
        %s1106 = scalar_lea.vmem %s6, 4
        %v1107 = vld [vmem:[%s1106] sm:$0x3]
        %v1109 = vlaneseq
        %v1110 = vshrl.u32 %v1109, 7
        %v1111 = vsub.s32 0, %v1110
        %v1112 = vrot.slane %v1107, %v1111
        %v1113 = vlaneseq
        %v1114 = vshrl.u32 %v1113, 7
        %v1115 = vsub.s32 1, %v1114
        %v1116 = vrot.slane %v1107, %v1115
        %v1119 = vmul.f32 %v1104, %v1112
        %v1120 = vmul.f32 %v1098, %v1116
        %v1121 = vmul.f32 %v1105, %v1112
        %v1122 = vmul.f32 %v1099, %v1116
        %s1123 = scalar_lea.vmem [#allocation5], 32
        %v1124 = vld [vmem:[%s1123] sm:$0xff]
        %v1125 = vld [vmem:[%s1123 + $0x8] sm:$0xff]
        %v1127 = vsel %vm374, %v1124, 0
        %v1130 = vsel %vm374, %v1125, 0
        %1132 = vmatprep.subr.mxu0 0.0
        %1133 = vmatpush1.msra.mxu0 0.0
        %1134 = vmatprep.subr.mxu0 0.0
        %1135 = vmatpush1.msra.mxu0 0.0
        %1136 = vmatprep.subr.mxu0 0.0
        %1137 = vmatpush1.msra.mxu0 0.0
        %1138 = vmatprep.subr.mxu0 0.0
        %1139 = vmatpush1.msra.mxu0 0.0
        %1140 = vmatprep.subr.mxu0 0.0
        %1141 = vmatpush1.msra.mxu0 0.0
        %1142 = vmatprep.subr.mxu0 0.0
        %1143 = vmatpush1.msra.mxu0 0.0
        %1144 = vmatprep.subr.mxu0 0.0
        %1145 = vmatpush1.msra.mxu0 0.0
        %1146 = vmatprep.subr.mxu0 0.0
        %1147 = vmatpush1.msra.mxu0 0.0
        %1148 = vmatprep.subr.mxu0 0.0
        %1149 = vmatpush1.msra.mxu0 0.0
        %1150 = vmatprep.subr.mxu0 0.0
        %1151 = vmatpush1.msra.mxu0 0.0
        %1152 = vmatprep.subr.mxu0 0.0
        %1153 = vmatpush1.msra.mxu0 0.0
        %1154 = vmatprep.subr.mxu0 0.0
        %1155 = vmatpush1.msra.mxu0 0.0
        %1156 = vmatprep.subr.mxu0 0.0
        %1157 = vmatpush1.msra.mxu0 0.0
        %1158 = vmatprep.subr.mxu0 0.0
        %1159 = vmatpush1.msra.mxu0 0.0
        %1160 = vmatprep.subr.mxu0 %v1122
        %1161 = vmatpush1.msra.mxu0 %v1121
        %1162 = vmatprep.subr.mxu0 %v1120
        %1163 = vmatpush1.msra.mxu0 %v1119
        %1164 = vmatprep.subr.mxu0 0.0
        %1165 = vmatpush2.msra.mxu0 0.0
        %1166 = vmatprep.subr.mxu0 0.0
        %1167 = vmatpush2.msra.mxu0 0.0
        %1168 = vmatprep.subr.mxu0 0.0
        %1169 = vmatpush2.msra.mxu0 0.0
        %1170 = vmatprep.subr.mxu0 0.0
        %1171 = vmatpush2.msra.mxu0 0.0
        %1172 = vmatprep.subr.mxu0 0.0
        %1173 = vmatpush2.msra.mxu0 0.0
        %1174 = vmatprep.subr.mxu0 0.0
        %1175 = vmatpush2.msra.mxu0 0.0
        %1176 = vmatprep.subr.mxu0 0.0
        %1177 = vmatpush2.msra.mxu0 0.0
        %1178 = vmatprep.subr.mxu0 0.0
        %1179 = vmatpush2.msra.mxu0 0.0
        %1180 = vmatprep.subr.mxu0 0.0
        %1181 = vmatpush2.msra.mxu0 0.0
        %1182 = vmatprep.subr.mxu0 0.0
        %1183 = vmatpush2.msra.mxu0 0.0
        %1184 = vmatprep.subr.mxu0 0.0
        %1185 = vmatpush2.msra.mxu0 0.0
        %1186 = vmatprep.subr.mxu0 0.0
        %1187 = vmatpush2.msra.mxu0 0.0
        %1188 = vmatprep.subr.mxu0 0.0
        %1189 = vmatpush2.msra.mxu0 0.0
        %1190 = vmatprep.subr.mxu0 0.0
        %1191 = vmatpush2.msra.mxu0 0.0
        %1192 = vmatprep.subr.mxu0 0.0
        %1193 = vmatpush2.msra.mxu0 0.0
        %1194 = vmatprep.subr.mxu0 0.0
        %1195 = vmatpush2.msra.mxu0 0.0
        %1196 = vmatprep.mubr.f32.mxu0 0.0
        %1197 = vmatmul.mubr.f32.gmra.mxu0 %v1127
        %v1198 = vpop.f32.mrf.mxu0
        %v1199 = vadd.f32 0.0, %v1198
        %v1200 = vpop.f32.mrf.mxu0
        %v1201 = vadd.f32 0.0, %v1200
        %1202 = vmatprep.mubr.f32.mxu0 0.0
        %1203 = vmatmul.mubr.f32.gmra.mxu0 %v1130
        %v1204 = vpop.f32.mrf.mxu0
        %v1205 = vadd.f32 0.0, %v1204
        %v1206 = vpop.f32.mrf.mxu0
        %v1207 = vadd.f32 0.0, %v1206
        %1208 = vdwg.mxu0
        %v1209 = vadd.f32 %v1077, %v1199
        %v1210 = vadd.f32 %v1079, %v1201
        %v1211 = vadd.f32 %v1083, %v1205
        %v1212 = vadd.f32 %v1085, %v1207
        %1213 = vrot.lane.b32.xlu0 %v834, 1
        %v1214 = vpop.permute.xlu0 %1213
        %1215 = vrot.lane.b32.xlu0 %v840, 1
        %v1216 = vpop.permute.xlu0 %1215
        %1219 = vrot.lane.b32.xlu0 %v832, 1
        %v1220 = vpop.permute.xlu0 %1219
        %1221 = vrot.lane.b32.xlu0 %v838, 1
        %v1222 = vpop.permute.xlu0 %1221
        %vm1223 = vcmask 7168
        %v1224 = vsel %vm1223, %v1220, %v1214
        %v1225 = vsel %vm1223, %v1222, %v1216
        %v1230 = vsel %vm1223, %v1214, %v1220
        %v1231 = vsel %vm1223, %v1216, %v1222
        %s1232 = scalar_lea.vmem %s6, 6
        %v1233 = vld [vmem:[%s1232] sm:$0x3]
        %v1235 = vlaneseq
        %v1236 = vshrl.u32 %v1235, 7
        %v1237 = vsub.s32 0, %v1236
        %v1238 = vrot.slane %v1233, %v1237
        %v1239 = vlaneseq
        %v1240 = vshrl.u32 %v1239, 7
        %v1241 = vsub.s32 1, %v1240
        %v1242 = vrot.slane %v1233, %v1241
        %v1245 = vmul.f32 %v1230, %v1238
        %v1246 = vmul.f32 %v1224, %v1242
        %v1247 = vmul.f32 %v1231, %v1238
        %v1248 = vmul.f32 %v1225, %v1242
        %s1249 = scalar_lea.vmem [#allocation5], 48
        %v1250 = vld [vmem:[%s1249] sm:$0xff]
        %v1251 = vld [vmem:[%s1249 + $0x8] sm:$0xff]
        %v1253 = vsel %vm374, %v1250, 0
        %v1256 = vsel %vm374, %v1251, 0
        %1258 = vmatprep.subr.mxu0 0.0
        %1259 = vmatpush1.msra.mxu0 0.0
        %1260 = vmatprep.subr.mxu0 0.0
        %1261 = vmatpush1.msra.mxu0 0.0
        %1262 = vmatprep.subr.mxu0 0.0
        %1263 = vmatpush1.msra.mxu0 0.0
        %1264 = vmatprep.subr.mxu0 0.0
        %1265 = vmatpush1.msra.mxu0 0.0
        %1266 = vmatprep.subr.mxu0 0.0
        %1267 = vmatpush1.msra.mxu0 0.0
        %1268 = vmatprep.subr.mxu0 0.0
        %1269 = vmatpush1.msra.mxu0 0.0
        %1270 = vmatprep.subr.mxu0 0.0
        %1271 = vmatpush1.msra.mxu0 0.0
        %1272 = vmatprep.subr.mxu0 0.0
        %1273 = vmatpush1.msra.mxu0 0.0
        %1274 = vmatprep.subr.mxu0 0.0
        %1275 = vmatpush1.msra.mxu0 0.0
        %1276 = vmatprep.subr.mxu0 0.0
        %1277 = vmatpush1.msra.mxu0 0.0
        %1278 = vmatprep.subr.mxu0 0.0
        %1279 = vmatpush1.msra.mxu0 0.0
        %1280 = vmatprep.subr.mxu0 0.0
        %1281 = vmatpush1.msra.mxu0 0.0
        %1282 = vmatprep.subr.mxu0 0.0
        %1283 = vmatpush1.msra.mxu0 0.0
        %1284 = vmatprep.subr.mxu0 0.0
        %1285 = vmatpush1.msra.mxu0 0.0
        %1286 = vmatprep.subr.mxu0 %v1248
        %1287 = vmatpush1.msra.mxu0 %v1247
        %1288 = vmatprep.subr.mxu0 %v1246
        %1289 = vmatpush1.msra.mxu0 %v1245
        %1290 = vmatprep.subr.mxu0 0.0
        %1291 = vmatpush2.msra.mxu0 0.0
        %1292 = vmatprep.subr.mxu0 0.0
        %1293 = vmatpush2.msra.mxu0 0.0
        %1294 = vmatprep.subr.mxu0 0.0
        %1295 = vmatpush2.msra.mxu0 0.0
        %1296 = vmatprep.subr.mxu0 0.0
        %1297 = vmatpush2.msra.mxu0 0.0
        %1298 = vmatprep.subr.mxu0 0.0
        %1299 = vmatpush2.msra.mxu0 0.0
        %1300 = vmatprep.subr.mxu0 0.0
        %1301 = vmatpush2.msra.mxu0 0.0
        %1302 = vmatprep.subr.mxu0 0.0
        %1303 = vmatpush2.msra.mxu0 0.0
        %1304 = vmatprep.subr.mxu0 0.0
        %1305 = vmatpush2.msra.mxu0 0.0
        %1306 = vmatprep.subr.mxu0 0.0
        %1307 = vmatpush2.msra.mxu0 0.0
        %1308 = vmatprep.subr.mxu0 0.0
        %1309 = vmatpush2.msra.mxu0 0.0
        %1310 = vmatprep.subr.mxu0 0.0
        %1311 = vmatpush2.msra.mxu0 0.0
        %1312 = vmatprep.subr.mxu0 0.0
        %1313 = vmatpush2.msra.mxu0 0.0
        %1314 = vmatprep.subr.mxu0 0.0
        %1315 = vmatpush2.msra.mxu0 0.0
        %1316 = vmatprep.subr.mxu0 0.0
        %1317 = vmatpush2.msra.mxu0 0.0
        %1318 = vmatprep.subr.mxu0 0.0
        %1319 = vmatpush2.msra.mxu0 0.0
        %1320 = vmatprep.subr.mxu0 0.0
        %1321 = vmatpush2.msra.mxu0 0.0
        %1322 = vmatprep.mubr.f32.mxu0 0.0
        %1323 = vmatmul.mubr.f32.gmra.mxu0 %v1253
        %v1324 = vpop.f32.mrf.mxu0
        %v1325 = vadd.f32 0.0, %v1324
        %v1326 = vpop.f32.mrf.mxu0
        %v1327 = vadd.f32 0.0, %v1326
        %1328 = vmatprep.mubr.f32.mxu0 0.0
        %1329 = vmatmul.mubr.f32.gmra.mxu0 %v1256
        %v1330 = vpop.f32.mrf.mxu0
        %v1331 = vadd.f32 0.0, %v1330
        %v1332 = vpop.f32.mrf.mxu0
        %v1333 = vadd.f32 0.0, %v1332
        %1334 = vdwg.mxu0
        %v1335 = vadd.f32 %v1209, %v1325
        %v1336 = vadd.f32 %v1210, %v1327
        %v1337 = vadd.f32 %v1211, %v1331
        %v1338 = vadd.f32 %v1212, %v1333
        %s1339 = scalar_lea.vmem [#allocation5], 64
        %v1340 = vld [vmem:[%s1339] sm:$0xff]
        %v1341 = vld [vmem:[%s1339 + $0x8] sm:$0xff]
        %v1343 = vsel %vm374, %v1340, 0
        %v1346 = vsel %vm374, %v1341, 0
        %1348 = vmatprep.subr.mxu0 0.0
        %1349 = vmatpush1.msra.mxu0 0.0
        %1350 = vmatprep.subr.mxu0 0.0
        %1351 = vmatpush1.msra.mxu0 0.0
        %1352 = vmatprep.subr.mxu0 0.0
        %1353 = vmatpush1.msra.mxu0 0.0
        %1354 = vmatprep.subr.mxu0 0.0
        %1355 = vmatpush1.msra.mxu0 0.0
        %1356 = vmatprep.subr.mxu0 0.0
        %1357 = vmatpush1.msra.mxu0 0.0
        %1358 = vmatprep.subr.mxu0 0.0
        %1359 = vmatpush1.msra.mxu0 0.0
        %1360 = vmatprep.subr.mxu0 0.0
        %1361 = vmatpush1.msra.mxu0 0.0
        %1362 = vmatprep.subr.mxu0 0.0
        %1363 = vmatpush1.msra.mxu0 0.0
        %1364 = vmatprep.subr.mxu0 0.0
        %1365 = vmatpush1.msra.mxu0 0.0
        %1366 = vmatprep.subr.mxu0 0.0
        %1367 = vmatpush1.msra.mxu0 0.0
        %1368 = vmatprep.subr.mxu0 0.0
        %1369 = vmatpush1.msra.mxu0 0.0
        %1370 = vmatprep.subr.mxu0 0.0
        %1371 = vmatpush1.msra.mxu0 0.0
        %1372 = vmatprep.subr.mxu0 0.0
        %1373 = vmatpush1.msra.mxu0 0.0
        %1374 = vmatprep.subr.mxu0 0.0
        %1375 = vmatpush1.msra.mxu0 0.0
        %1376 = vmatprep.subr.mxu0 %v840
        %1377 = vmatpush1.msra.mxu0 %v838
        %1378 = vmatprep.subr.mxu0 %v834
        %1379 = vmatpush1.msra.mxu0 %v832
        %1380 = vmatprep.subr.mxu0 0.0
        %1381 = vmatpush2.msra.mxu0 0.0
        %1382 = vmatprep.subr.mxu0 0.0
        %1383 = vmatpush2.msra.mxu0 0.0
        %1384 = vmatprep.subr.mxu0 0.0
        %1385 = vmatpush2.msra.mxu0 0.0
        %1386 = vmatprep.subr.mxu0 0.0
        %1387 = vmatpush2.msra.mxu0 0.0
        %1388 = vmatprep.subr.mxu0 0.0
        %1389 = vmatpush2.msra.mxu0 0.0
        %1390 = vmatprep.subr.mxu0 0.0
        %1391 = vmatpush2.msra.mxu0 0.0
        %1392 = vmatprep.subr.mxu0 0.0
        %1393 = vmatpush2.msra.mxu0 0.0
        %1394 = vmatprep.subr.mxu0 0.0
        %1395 = vmatpush2.msra.mxu0 0.0
        %1396 = vmatprep.subr.mxu0 0.0
        %1397 = vmatpush2.msra.mxu0 0.0
        %1398 = vmatprep.subr.mxu0 0.0
        %1399 = vmatpush2.msra.mxu0 0.0
        %1400 = vmatprep.subr.mxu0 0.0
        %1401 = vmatpush2.msra.mxu0 0.0
        %1402 = vmatprep.subr.mxu0 0.0
        %1403 = vmatpush2.msra.mxu0 0.0
        %1404 = vmatprep.subr.mxu0 0.0
        %1405 = vmatpush2.msra.mxu0 0.0
        %1406 = vmatprep.subr.mxu0 0.0
        %1407 = vmatpush2.msra.mxu0 0.0
        %1408 = vmatprep.subr.mxu0 0.0
        %1409 = vmatpush2.msra.mxu0 0.0
        %1410 = vmatprep.subr.mxu0 0.0
        %1411 = vmatpush2.msra.mxu0 0.0
        %1412 = vmatprep.mubr.f32.mxu0 0.0
        %1413 = vmatmul.mubr.f32.gmra.mxu0 %v1343
        %v1414 = vpop.f32.mrf.mxu0
        %v1415 = vadd.f32 0.0, %v1414
        %v1416 = vpop.f32.mrf.mxu0
        %v1417 = vadd.f32 0.0, %v1416
        %1418 = vmatprep.mubr.f32.mxu0 0.0
        %1419 = vmatmul.mubr.f32.gmra.mxu0 %v1346
        %v1420 = vpop.f32.mrf.mxu0
        %v1421 = vadd.f32 0.0, %v1420
        %v1422 = vpop.f32.mrf.mxu0
        %v1423 = vadd.f32 0.0, %v1422
        %1424 = vdwg.mxu0
        %v1425 = vadd.f32 %v1335, %v1415
        %v1426 = vadd.f32 %v1336, %v1417
        %v1427 = vadd.f32 %v1337, %v1421
        %v1428 = vadd.f32 %v1338, %v1423
        %1429 = vrot.lane.b32.xlu0 %v832, 127
        %v1430 = vpop.permute.xlu0 %1429
        %1431 = vrot.lane.b32.xlu0 %v834, 127
        %v1432 = vpop.permute.xlu0 %1431
        %1433 = vrot.lane.b32.xlu0 %v838, 127
        %v1434 = vpop.permute.xlu0 %1433
        %1435 = vrot.lane.b32.xlu0 %v840, 127
        %v1436 = vpop.permute.xlu0 %1435
        %vm1437 = vcmask 1039360
        %v1438 = vsel %vm1437, %v1430, %v1432
        %v1439 = vsel %vm1437, %v1434, %v1436
        %v1446 = vsel %vm1437, %v1432, %v1430
        %v1447 = vsel %vm1437, %v1436, %v1434
        %s1448 = scalar_lea.vmem %s6, 10
        %v1449 = vld [vmem:[%s1448] sm:$0x3]
        %v1451 = vlaneseq
        %v1452 = vshrl.u32 %v1451, 7
        %v1453 = vsub.s32 0, %v1452
        %v1454 = vrot.slane %v1449, %v1453
        %v1455 = vlaneseq
        %v1456 = vshrl.u32 %v1455, 7
        %v1457 = vsub.s32 1, %v1456
        %v1458 = vrot.slane %v1449, %v1457
        %v1461 = vmul.f32 %v1438, %v1454
        %v1462 = vmul.f32 %v1446, %v1458
        %v1463 = vmul.f32 %v1439, %v1454
        %v1464 = vmul.f32 %v1447, %v1458
        %s1465 = scalar_lea.vmem [#allocation5], 80
        %v1466 = vld [vmem:[%s1465] sm:$0xff]
        %v1467 = vld [vmem:[%s1465 + $0x8] sm:$0xff]
        %v1469 = vsel %vm374, %v1466, 0
        %v1472 = vsel %vm374, %v1467, 0
        %1474 = vmatprep.subr.mxu0 0.0
        %1475 = vmatpush1.msra.mxu0 0.0
        %1476 = vmatprep.subr.mxu0 0.0
        %1477 = vmatpush1.msra.mxu0 0.0
        %1478 = vmatprep.subr.mxu0 0.0
        %1479 = vmatpush1.msra.mxu0 0.0
        %1480 = vmatprep.subr.mxu0 0.0
        %1481 = vmatpush1.msra.mxu0 0.0
        %1482 = vmatprep.subr.mxu0 0.0
        %1483 = vmatpush1.msra.mxu0 0.0
        %1484 = vmatprep.subr.mxu0 0.0
        %1485 = vmatpush1.msra.mxu0 0.0
        %1486 = vmatprep.subr.mxu0 0.0
        %1487 = vmatpush1.msra.mxu0 0.0
        %1488 = vmatprep.subr.mxu0 0.0
        %1489 = vmatpush1.msra.mxu0 0.0
        %1490 = vmatprep.subr.mxu0 0.0
        %1491 = vmatpush1.msra.mxu0 0.0
        %1492 = vmatprep.subr.mxu0 0.0
        %1493 = vmatpush1.msra.mxu0 0.0
        %1494 = vmatprep.subr.mxu0 0.0
        %1495 = vmatpush1.msra.mxu0 0.0
        %1496 = vmatprep.subr.mxu0 0.0
        %1497 = vmatpush1.msra.mxu0 0.0
        %1498 = vmatprep.subr.mxu0 0.0
        %1499 = vmatpush1.msra.mxu0 0.0
        %1500 = vmatprep.subr.mxu0 0.0
        %1501 = vmatpush1.msra.mxu0 0.0
        %1502 = vmatprep.subr.mxu0 %v1464
        %1503 = vmatpush1.msra.mxu0 %v1463
        %1504 = vmatprep.subr.mxu0 %v1462
        %1505 = vmatpush1.msra.mxu0 %v1461
        %1506 = vmatprep.subr.mxu0 0.0
        %1507 = vmatpush2.msra.mxu0 0.0
        %1508 = vmatprep.subr.mxu0 0.0
        %1509 = vmatpush2.msra.mxu0 0.0
        %1510 = vmatprep.subr.mxu0 0.0
        %1511 = vmatpush2.msra.mxu0 0.0
        %1512 = vmatprep.subr.mxu0 0.0
        %1513 = vmatpush2.msra.mxu0 0.0
        %1514 = vmatprep.subr.mxu0 0.0
        %1515 = vmatpush2.msra.mxu0 0.0
        %1516 = vmatprep.subr.mxu0 0.0
        %1517 = vmatpush2.msra.mxu0 0.0
        %1518 = vmatprep.subr.mxu0 0.0
        %1519 = vmatpush2.msra.mxu0 0.0
        %1520 = vmatprep.subr.mxu0 0.0
        %1521 = vmatpush2.msra.mxu0 0.0
        %1522 = vmatprep.subr.mxu0 0.0
        %1523 = vmatpush2.msra.mxu0 0.0
        %1524 = vmatprep.subr.mxu0 0.0
        %1525 = vmatpush2.msra.mxu0 0.0
        %1526 = vmatprep.subr.mxu0 0.0
        %1527 = vmatpush2.msra.mxu0 0.0
        %1528 = vmatprep.subr.mxu0 0.0
        %1529 = vmatpush2.msra.mxu0 0.0
        %1530 = vmatprep.subr.mxu0 0.0
        %1531 = vmatpush2.msra.mxu0 0.0
        %1532 = vmatprep.subr.mxu0 0.0
        %1533 = vmatpush2.msra.mxu0 0.0
        %1534 = vmatprep.subr.mxu0 0.0
        %1535 = vmatpush2.msra.mxu0 0.0
        %1536 = vmatprep.subr.mxu0 0.0
        %1537 = vmatpush2.msra.mxu0 0.0
        %1538 = vmatprep.mubr.f32.mxu0 0.0
        %1539 = vmatmul.mubr.f32.gmra.mxu0 %v1469
        %v1540 = vpop.f32.mrf.mxu0
        %v1541 = vadd.f32 0.0, %v1540
        %v1542 = vpop.f32.mrf.mxu0
        %v1543 = vadd.f32 0.0, %v1542
        %1544 = vmatprep.mubr.f32.mxu0 0.0
        %1545 = vmatmul.mubr.f32.gmra.mxu0 %v1472
        %v1546 = vpop.f32.mrf.mxu0
        %v1547 = vadd.f32 0.0, %v1546
        %v1548 = vpop.f32.mrf.mxu0
        %v1549 = vadd.f32 0.0, %v1548
        %1550 = vdwg.mxu0
        %v1551 = vadd.f32 %v1425, %v1541
        %v1552 = vadd.f32 %v1426, %v1543
        %v1553 = vadd.f32 %v1427, %v1547
        %v1554 = vadd.f32 %v1428, %v1549
        %1555 = vrot.lane.b32.xlu0 %v832, 113
        %v1556 = vpop.permute.xlu0 %1555
        %1557 = vrot.lane.b32.xlu0 %v834, 113
        %v1558 = vpop.permute.xlu0 %1557
        %1559 = vrot.lane.b32.xlu0 %v838, 113
        %v1560 = vpop.permute.xlu0 %1559
        %1561 = vrot.lane.b32.xlu0 %v840, 113
        %v1562 = vpop.permute.xlu0 %1561
        %vm1563 = vcmask 924672
        %v1564 = vsel %vm1563, %v1556, %v1558
        %v1565 = vsel %vm1563, %v1560, %v1562
        %v1572 = vsel %vm1563, %v1558, %v1556
        %v1573 = vsel %vm1563, %v1562, %v1560
        %s1574 = scalar_lea.vmem %s6, 12
        %v1575 = vld [vmem:[%s1574] sm:$0x3]
        %v1577 = vlaneseq
        %v1578 = vshrl.u32 %v1577, 7
        %v1579 = vsub.s32 0, %v1578
        %v1580 = vrot.slane %v1575, %v1579
        %v1581 = vlaneseq
        %v1582 = vshrl.u32 %v1581, 7
        %v1583 = vsub.s32 1, %v1582
        %v1584 = vrot.slane %v1575, %v1583
        %v1587 = vmul.f32 %v1564, %v1580
        %v1588 = vmul.f32 %v1572, %v1584
        %v1589 = vmul.f32 %v1565, %v1580
        %v1590 = vmul.f32 %v1573, %v1584
        %s1591 = scalar_lea.vmem [#allocation5], 96
        %v1592 = vld [vmem:[%s1591] sm:$0xff]
        %v1593 = vld [vmem:[%s1591 + $0x8] sm:$0xff]
        %v1595 = vsel %vm374, %v1592, 0
        %v1598 = vsel %vm374, %v1593, 0
        %1600 = vmatprep.subr.mxu0 0.0
        %1601 = vmatpush1.msra.mxu0 0.0
        %1602 = vmatprep.subr.mxu0 0.0
        %1603 = vmatpush1.msra.mxu0 0.0
        %1604 = vmatprep.subr.mxu0 0.0
        %1605 = vmatpush1.msra.mxu0 0.0
        %1606 = vmatprep.subr.mxu0 0.0
        %1607 = vmatpush1.msra.mxu0 0.0
        %1608 = vmatprep.subr.mxu0 0.0
        %1609 = vmatpush1.msra.mxu0 0.0
        %1610 = vmatprep.subr.mxu0 0.0
        %1611 = vmatpush1.msra.mxu0 0.0
        %1612 = vmatprep.subr.mxu0 0.0
        %1613 = vmatpush1.msra.mxu0 0.0
        %1614 = vmatprep.subr.mxu0 0.0
        %1615 = vmatpush1.msra.mxu0 0.0
        %1616 = vmatprep.subr.mxu0 0.0
        %1617 = vmatpush1.msra.mxu0 0.0
        %1618 = vmatprep.subr.mxu0 0.0
        %1619 = vmatpush1.msra.mxu0 0.0
        %1620 = vmatprep.subr.mxu0 0.0
        %1621 = vmatpush1.msra.mxu0 0.0
        %1622 = vmatprep.subr.mxu0 0.0
        %1623 = vmatpush1.msra.mxu0 0.0
        %1624 = vmatprep.subr.mxu0 0.0
        %1625 = vmatpush1.msra.mxu0 0.0
        %1626 = vmatprep.subr.mxu0 0.0
        %1627 = vmatpush1.msra.mxu0 0.0
        %1628 = vmatprep.subr.mxu0 %v1590
        %1629 = vmatpush1.msra.mxu0 %v1589
        %1630 = vmatprep.subr.mxu0 %v1588
        %1631 = vmatpush1.msra.mxu0 %v1587
        %1632 = vmatprep.subr.mxu0 0.0
        %1633 = vmatpush2.msra.mxu0 0.0
        %1634 = vmatprep.subr.mxu0 0.0
        %1635 = vmatpush2.msra.mxu0 0.0
        %1636 = vmatprep.subr.mxu0 0.0
        %1637 = vmatpush2.msra.mxu0 0.0
        %1638 = vmatprep.subr.mxu0 0.0
        %1639 = vmatpush2.msra.mxu0 0.0
        %1640 = vmatprep.subr.mxu0 0.0
        %1641 = vmatpush2.msra.mxu0 0.0
        %1642 = vmatprep.subr.mxu0 0.0
        %1643 = vmatpush2.msra.mxu0 0.0
        %1644 = vmatprep.subr.mxu0 0.0
        %1645 = vmatpush2.msra.mxu0 0.0
        %1646 = vmatprep.subr.mxu0 0.0
        %1647 = vmatpush2.msra.mxu0 0.0
        %1648 = vmatprep.subr.mxu0 0.0
        %1649 = vmatpush2.msra.mxu0 0.0
        %1650 = vmatprep.subr.mxu0 0.0
        %1651 = vmatpush2.msra.mxu0 0.0
        %1652 = vmatprep.subr.mxu0 0.0
        %1653 = vmatpush2.msra.mxu0 0.0
        %1654 = vmatprep.subr.mxu0 0.0
        %1655 = vmatpush2.msra.mxu0 0.0
        %1656 = vmatprep.subr.mxu0 0.0
        %1657 = vmatpush2.msra.mxu0 0.0
        %1658 = vmatprep.subr.mxu0 0.0
        %1659 = vmatpush2.msra.mxu0 0.0
        %1660 = vmatprep.subr.mxu0 0.0
        %1661 = vmatpush2.msra.mxu0 0.0
        %1662 = vmatprep.subr.mxu0 0.0
        %1663 = vmatpush2.msra.mxu0 0.0
        %1664 = vmatprep.mubr.f32.mxu0 0.0
        %1665 = vmatmul.mubr.f32.gmra.mxu0 %v1595
        %v1666 = vpop.f32.mrf.mxu0
        %v1667 = vadd.f32 0.0, %v1666
        %v1668 = vpop.f32.mrf.mxu0
        %v1669 = vadd.f32 0.0, %v1668
        %1670 = vmatprep.mubr.f32.mxu0 0.0
        %1671 = vmatmul.mubr.f32.gmra.mxu0 %v1598
        %v1672 = vpop.f32.mrf.mxu0
        %v1673 = vadd.f32 0.0, %v1672
        %v1674 = vpop.f32.mrf.mxu0
        %v1675 = vadd.f32 0.0, %v1674
        %1676 = vdwg.mxu0
        %v1677 = vadd.f32 %v1551, %v1667
        %v1678 = vadd.f32 %v1552, %v1669
        %v1679 = vadd.f32 %v1553, %v1673
        %v1680 = vadd.f32 %v1554, %v1675
        %1681 = vrot.lane.b32.xlu0 %v832, 112
        %v1682 = vpop.permute.xlu0 %1681
        %1683 = vrot.lane.b32.xlu0 %v834, 112
        %v1684 = vpop.permute.xlu0 %1683
        %1685 = vrot.lane.b32.xlu0 %v838, 112
        %v1686 = vpop.permute.xlu0 %1685
        %1687 = vrot.lane.b32.xlu0 %v840, 112
        %v1688 = vpop.permute.xlu0 %1687
        %vm1689 = vcmask 916480
        %v1690 = vsel %vm1689, %v1682, %v1684
        %v1691 = vsel %vm1689, %v1686, %v1688
        %v1698 = vsel %vm1689, %v1684, %v1682
        %v1699 = vsel %vm1689, %v1688, %v1686
        %s1700 = scalar_lea.vmem %s6, 14
        %v1701 = vld [vmem:[%s1700] sm:$0x3]
        %v1703 = vlaneseq
        %v1704 = vshrl.u32 %v1703, 7
        %v1705 = vsub.s32 0, %v1704
        %v1706 = vrot.slane %v1701, %v1705
        %v1707 = vlaneseq
        %v1708 = vshrl.u32 %v1707, 7
        %v1709 = vsub.s32 1, %v1708
        %v1710 = vrot.slane %v1701, %v1709
        %v1713 = vmul.f32 %v1690, %v1706
        %v1714 = vmul.f32 %v1698, %v1710
        %v1715 = vmul.f32 %v1691, %v1706
        %v1716 = vmul.f32 %v1699, %v1710
        %s1717 = scalar_lea.vmem [#allocation5], 112
        %v1718 = vld [vmem:[%s1717] sm:$0xff]
        %v1719 = vld [vmem:[%s1717 + $0x8] sm:$0xff]
        %v1721 = vsel %vm374, %v1718, 0
        %v1724 = vsel %vm374, %v1719, 0
        %1726 = vmatprep.subr.mxu0 0.0
        %1727 = vmatpush1.msra.mxu0 0.0
        %1728 = vmatprep.subr.mxu0 0.0
        %1729 = vmatpush1.msra.mxu0 0.0
        %1730 = vmatprep.subr.mxu0 0.0
        %1731 = vmatpush1.msra.mxu0 0.0
        %1732 = vmatprep.subr.mxu0 0.0
        %1733 = vmatpush1.msra.mxu0 0.0
        %1734 = vmatprep.subr.mxu0 0.0
        %1735 = vmatpush1.msra.mxu0 0.0
        %1736 = vmatprep.subr.mxu0 0.0
        %1737 = vmatpush1.msra.mxu0 0.0
        %1738 = vmatprep.subr.mxu0 0.0
        %1739 = vmatpush1.msra.mxu0 0.0
        %1740 = vmatprep.subr.mxu0 0.0
        %1741 = vmatpush1.msra.mxu0 0.0
        %1742 = vmatprep.subr.mxu0 0.0
        %1743 = vmatpush1.msra.mxu0 0.0
        %1744 = vmatprep.subr.mxu0 0.0
        %1745 = vmatpush1.msra.mxu0 0.0
        %1746 = vmatprep.subr.mxu0 0.0
        %1747 = vmatpush1.msra.mxu0 0.0
        %1748 = vmatprep.subr.mxu0 0.0
        %1749 = vmatpush1.msra.mxu0 0.0
        %1750 = vmatprep.subr.mxu0 0.0
        %1751 = vmatpush1.msra.mxu0 0.0
        %1752 = vmatprep.subr.mxu0 0.0
        %1753 = vmatpush1.msra.mxu0 0.0
        %1754 = vmatprep.subr.mxu0 %v1716
        %1755 = vmatpush1.msra.mxu0 %v1715
        %1756 = vmatprep.subr.mxu0 %v1714
        %1757 = vmatpush1.msra.mxu0 %v1713
        %1758 = vmatprep.subr.mxu0 0.0
        %1759 = vmatpush2.msra.mxu0 0.0
        %1760 = vmatprep.subr.mxu0 0.0
        %1761 = vmatpush2.msra.mxu0 0.0
        %1762 = vmatprep.subr.mxu0 0.0
        %1763 = vmatpush2.msra.mxu0 0.0
        %1764 = vmatprep.subr.mxu0 0.0
        %1765 = vmatpush2.msra.mxu0 0.0
        %1766 = vmatprep.subr.mxu0 0.0
        %1767 = vmatpush2.msra.mxu0 0.0
        %1768 = vmatprep.subr.mxu0 0.0
        %1769 = vmatpush2.msra.mxu0 0.0
        %1770 = vmatprep.subr.mxu0 0.0
        %1771 = vmatpush2.msra.mxu0 0.0
        %1772 = vmatprep.subr.mxu0 0.0
        %1773 = vmatpush2.msra.mxu0 0.0
        %1774 = vmatprep.subr.mxu0 0.0
        %1775 = vmatpush2.msra.mxu0 0.0
        %1776 = vmatprep.subr.mxu0 0.0
        %1777 = vmatpush2.msra.mxu0 0.0
        %1778 = vmatprep.subr.mxu0 0.0
        %1779 = vmatpush2.msra.mxu0 0.0
        %1780 = vmatprep.subr.mxu0 0.0
        %1781 = vmatpush2.msra.mxu0 0.0
        %1782 = vmatprep.subr.mxu0 0.0
        %1783 = vmatpush2.msra.mxu0 0.0
        %1784 = vmatprep.subr.mxu0 0.0
        %1785 = vmatpush2.msra.mxu0 0.0
        %1786 = vmatprep.subr.mxu0 0.0
        %1787 = vmatpush2.msra.mxu0 0.0
        %1788 = vmatprep.subr.mxu0 0.0
        %1789 = vmatpush2.msra.mxu0 0.0
        %1790 = vmatprep.mubr.f32.mxu0 0.0
        %1791 = vmatmul.mubr.f32.gmra.mxu0 %v1721
        %v1792 = vpop.f32.mrf.mxu0
        %v1793 = vadd.f32 0.0, %v1792
        %v1794 = vpop.f32.mrf.mxu0
        %v1795 = vadd.f32 0.0, %v1794
        %1796 = vmatprep.mubr.f32.mxu0 0.0
        %1797 = vmatmul.mubr.f32.gmra.mxu0 %v1724
        %v1798 = vpop.f32.mrf.mxu0
        %v1799 = vadd.f32 0.0, %v1798
        %v1800 = vpop.f32.mrf.mxu0
        %v1801 = vadd.f32 0.0, %v1800
        %1802 = vdwg.mxu0
        %v1803 = vadd.f32 %v1677, %v1793
        %v1804 = vadd.f32 %v1678, %v1795
        %v1805 = vadd.f32 %v1679, %v1799
        %v1806 = vadd.f32 %v1680, %v1801
        %1807 = vrot.lane.b32.xlu0 %v832, 111
        %v1808 = vpop.permute.xlu0 %1807
        %1809 = vrot.lane.b32.xlu0 %v834, 111
        %v1810 = vpop.permute.xlu0 %1809
        %1811 = vrot.lane.b32.xlu0 %v838, 111
        %v1812 = vpop.permute.xlu0 %1811
        %1813 = vrot.lane.b32.xlu0 %v840, 111
        %v1814 = vpop.permute.xlu0 %1813
        %vm1815 = vcmask 908288
        %v1816 = vsel %vm1815, %v1808, %v1810
        %v1817 = vsel %vm1815, %v1812, %v1814
        %v1824 = vsel %vm1815, %v1810, %v1808
        %v1825 = vsel %vm1815, %v1814, %v1812
        %s1826 = scalar_lea.vmem %s6, 16
        %v1827 = vld [vmem:[%s1826] sm:$0x3]
        %v1829 = vlaneseq
        %v1830 = vshrl.u32 %v1829, 7
        %v1831 = vsub.s32 0, %v1830
        %v1832 = vrot.slane %v1827, %v1831
        %v1833 = vlaneseq
        %v1834 = vshrl.u32 %v1833, 7
        %v1835 = vsub.s32 1, %v1834
        %v1836 = vrot.slane %v1827, %v1835
        %v1839 = vmul.f32 %v1816, %v1832
        %v1840 = vmul.f32 %v1824, %v1836
        %v1841 = vmul.f32 %v1817, %v1832
        %v1842 = vmul.f32 %v1825, %v1836
        %s1843 = scalar_lea.vmem [#allocation5], 128
        %v1844 = vld [vmem:[%s1843] sm:$0xff]
        %v1845 = vld [vmem:[%s1843 + $0x8] sm:$0xff]
        %v1847 = vsel %vm374, %v1844, 0
        %v1850 = vsel %vm374, %v1845, 0
        %1852 = vmatprep.subr.mxu0 0.0
        %1853 = vmatpush1.msra.mxu0 0.0
        %1854 = vmatprep.subr.mxu0 0.0
        %1855 = vmatpush1.msra.mxu0 0.0
        %1856 = vmatprep.subr.mxu0 0.0
        %1857 = vmatpush1.msra.mxu0 0.0
        %1858 = vmatprep.subr.mxu0 0.0
        %1859 = vmatpush1.msra.mxu0 0.0
        %1860 = vmatprep.subr.mxu0 0.0
        %1861 = vmatpush1.msra.mxu0 0.0
        %1862 = vmatprep.subr.mxu0 0.0
        %1863 = vmatpush1.msra.mxu0 0.0
        %1864 = vmatprep.subr.mxu0 0.0
        %1865 = vmatpush1.msra.mxu0 0.0
        %1866 = vmatprep.subr.mxu0 0.0
        %1867 = vmatpush1.msra.mxu0 0.0
        %1868 = vmatprep.subr.mxu0 0.0
        %1869 = vmatpush1.msra.mxu0 0.0
        %1870 = vmatprep.subr.mxu0 0.0
        %1871 = vmatpush1.msra.mxu0 0.0
        %1872 = vmatprep.subr.mxu0 0.0
        %1873 = vmatpush1.msra.mxu0 0.0
        %1874 = vmatprep.subr.mxu0 0.0
        %1875 = vmatpush1.msra.mxu0 0.0
        %1876 = vmatprep.subr.mxu0 0.0
        %1877 = vmatpush1.msra.mxu0 0.0
        %1878 = vmatprep.subr.mxu0 0.0
        %1879 = vmatpush1.msra.mxu0 0.0
        %1880 = vmatprep.subr.mxu0 %v1842
        %1881 = vmatpush1.msra.mxu0 %v1841
        %1882 = vmatprep.subr.mxu0 %v1840
        %1883 = vmatpush1.msra.mxu0 %v1839
        %1884 = vmatprep.subr.mxu0 0.0
        %1885 = vmatpush2.msra.mxu0 0.0
        %1886 = vmatprep.subr.mxu0 0.0
        %1887 = vmatpush2.msra.mxu0 0.0
        %1888 = vmatprep.subr.mxu0 0.0
        %1889 = vmatpush2.msra.mxu0 0.0
        %1890 = vmatprep.subr.mxu0 0.0
        %1891 = vmatpush2.msra.mxu0 0.0
        %1892 = vmatprep.subr.mxu0 0.0
        %1893 = vmatpush2.msra.mxu0 0.0
        %1894 = vmatprep.subr.mxu0 0.0
        %1895 = vmatpush2.msra.mxu0 0.0
        %1896 = vmatprep.subr.mxu0 0.0
        %1897 = vmatpush2.msra.mxu0 0.0
        %1898 = vmatprep.subr.mxu0 0.0
        %1899 = vmatpush2.msra.mxu0 0.0
        %1900 = vmatprep.subr.mxu0 0.0
        %1901 = vmatpush2.msra.mxu0 0.0
        %1902 = vmatprep.subr.mxu0 0.0
        %1903 = vmatpush2.msra.mxu0 0.0
        %1904 = vmatprep.subr.mxu0 0.0
        %1905 = vmatpush2.msra.mxu0 0.0
        %1906 = vmatprep.subr.mxu0 0.0
        %1907 = vmatpush2.msra.mxu0 0.0
        %1908 = vmatprep.subr.mxu0 0.0
        %1909 = vmatpush2.msra.mxu0 0.0
        %1910 = vmatprep.subr.mxu0 0.0
        %1911 = vmatpush2.msra.mxu0 0.0
        %1912 = vmatprep.subr.mxu0 0.0
        %1913 = vmatpush2.msra.mxu0 0.0
        %1914 = vmatprep.subr.mxu0 0.0
        %1915 = vmatpush2.msra.mxu0 0.0
        %1916 = vmatprep.mubr.f32.mxu0 0.0
        %1917 = vmatmul.mubr.f32.gmra.mxu0 %v1847
        %v1918 = vpop.f32.mrf.mxu0
        %v1919 = vadd.f32 0.0, %v1918
        %v1920 = vpop.f32.mrf.mxu0
        %v1921 = vadd.f32 0.0, %v1920
        %1922 = vmatprep.mubr.f32.mxu0 0.0
        %1923 = vmatmul.mubr.f32.gmra.mxu0 %v1850
        %v1924 = vpop.f32.mrf.mxu0
        %v1925 = vadd.f32 0.0, %v1924
        %v1926 = vpop.f32.mrf.mxu0
        %v1927 = vadd.f32 0.0, %v1926
        %1928 = vdwg.mxu0
        %v1929 = vadd.f32 %v1803, %v1919
        %v1930 = vadd.f32 %v1804, %v1921
        %v1931 = vadd.f32 %v1805, %v1925
        %v1932 = vadd.f32 %v1806, %v1927
        %v1933 = vmax.f32 %v1929, 0.0
        %v1934 = vmax.f32 %v1930, 0.0
        %v1935 = vmax.f32 %v1931, 0.0
        %v1936 = vmax.f32 %v1932, 0.0
        %1939 = vrot.lane.b32.xlu0 %v1934, 17
        %v1940 = vpop.permute.xlu0 %1939
        %1941 = vrot.lane.b32.xlu0 %v1936, 17
        %v1942 = vpop.permute.xlu0 %1941
        %1947 = vrot.lane.b32.xlu0 %v1933, 17
        %v1948 = vpop.permute.xlu0 %1947
        %1949 = vrot.lane.b32.xlu0 %v1935, 17
        %v1950 = vpop.permute.xlu0 %1949
        %v1951 = vsel %vm856, %v1948, %v1940
        %v1952 = vsel %vm856, %v1950, %v1942
        %v1957 = vsel %vm856, %v1940, %v1948
        %v1958 = vsel %vm856, %v1942, %v1950
        %v1959 = vmul.f32 %v1957, %v870
        %v1960 = vmul.f32 %v1951, %v874
        %v1961 = vmul.f32 %v1958, %v870
        %v1962 = vmul.f32 %v1952, %v874
        %v1963 = vld [vmem:[#allocation7] sm:$0xff]
        %v1964 = vld [vmem:[#allocation7 + $0x8] sm:$0xff]
        %1965 = vrot.lane.b32.xlu0 %v1934, 16
        %v1966 = vpop.permute.xlu0 %1965
        %1967 = vrot.lane.b32.xlu0 %v1936, 16
        %v1968 = vpop.permute.xlu0 %1967
        %1971 = vrot.lane.b32.xlu0 %v1933, 16
        %v1972 = vpop.permute.xlu0 %1971
        %1973 = vrot.lane.b32.xlu0 %v1935, 16
        %v1974 = vpop.permute.xlu0 %1973
        %v1975 = vsel %vm374, %v1972, %v1966
        %v1976 = vsel %vm374, %v1974, %v1968
        %v1981 = vsel %vm374, %v1966, %v1972
        %v1982 = vsel %vm374, %v1968, %v1974
        %v1983 = vmul.f32 %v1981, %v907
        %v1984 = vmul.f32 %v1975, %v911
        %v1985 = vmul.f32 %v1982, %v907
        %v1986 = vmul.f32 %v1976, %v911
        %s1987 = scalar_lea.vmem [#allocation7], 16
        %v1988 = vld [vmem:[%s1987] sm:$0xff]
        %v1989 = vld [vmem:[%s1987 + $0x8] sm:$0xff]
        %v1991 = vsel %vm374, %v1988, 0
        %v1994 = vsel %vm374, %v1989, 0
        %1996 = vmatprep.subr.mxu0 0.0
        %1997 = vmatpush1.msra.mxu0 0.0
        %1998 = vmatprep.subr.mxu0 0.0
        %1999 = vmatpush1.msra.mxu0 0.0
        %2000 = vmatprep.subr.mxu0 0.0
        %2001 = vmatpush1.msra.mxu0 0.0
        %2002 = vmatprep.subr.mxu0 0.0
        %2003 = vmatpush1.msra.mxu0 0.0
        %2004 = vmatprep.subr.mxu0 0.0
        %2005 = vmatpush1.msra.mxu0 0.0
        %2006 = vmatprep.subr.mxu0 0.0
        %2007 = vmatpush1.msra.mxu0 0.0
        %2008 = vmatprep.subr.mxu0 0.0
        %2009 = vmatpush1.msra.mxu0 0.0
        %2010 = vmatprep.subr.mxu0 0.0
        %2011 = vmatpush1.msra.mxu0 0.0
        %2012 = vmatprep.subr.mxu0 0.0
        %2013 = vmatpush1.msra.mxu0 0.0
        %2014 = vmatprep.subr.mxu0 0.0
        %2015 = vmatpush1.msra.mxu0 0.0
        %2016 = vmatprep.subr.mxu0 0.0
        %2017 = vmatpush1.msra.mxu0 0.0
        %2018 = vmatprep.subr.mxu0 0.0
        %2019 = vmatpush1.msra.mxu0 0.0
        %2020 = vmatprep.subr.mxu0 0.0
        %2021 = vmatpush1.msra.mxu0 0.0
        %2022 = vmatprep.subr.mxu0 0.0
        %2023 = vmatpush1.msra.mxu0 0.0
        %2024 = vmatprep.subr.mxu0 %v1986
        %2025 = vmatpush1.msra.mxu0 %v1985
        %2026 = vmatprep.subr.mxu0 %v1984
        %2027 = vmatpush1.msra.mxu0 %v1983
        %2028 = vmatprep.subr.mxu0 0.0
        %2029 = vmatpush2.msra.mxu0 0.0
        %2030 = vmatprep.subr.mxu0 0.0
        %2031 = vmatpush2.msra.mxu0 0.0
        %2032 = vmatprep.subr.mxu0 0.0
        %2033 = vmatpush2.msra.mxu0 0.0
        %2034 = vmatprep.subr.mxu0 0.0
        %2035 = vmatpush2.msra.mxu0 0.0
        %2036 = vmatprep.subr.mxu0 0.0
        %2037 = vmatpush2.msra.mxu0 0.0
        %2038 = vmatprep.subr.mxu0 0.0
        %2039 = vmatpush2.msra.mxu0 0.0
        %2040 = vmatprep.subr.mxu0 0.0
        %2041 = vmatpush2.msra.mxu0 0.0
        %2042 = vmatprep.subr.mxu0 0.0
        %2043 = vmatpush2.msra.mxu0 0.0
        %2044 = vmatprep.subr.mxu0 0.0
        %2045 = vmatpush2.msra.mxu0 0.0
        %2046 = vmatprep.subr.mxu0 0.0
        %2047 = vmatpush2.msra.mxu0 0.0
        %2048 = vmatprep.subr.mxu0 0.0
        %2049 = vmatpush2.msra.mxu0 0.0
        %2050 = vmatprep.subr.mxu0 0.0
        %2051 = vmatpush2.msra.mxu0 0.0
        %2052 = vmatprep.subr.mxu0 0.0
        %2053 = vmatpush2.msra.mxu0 0.0
        %2054 = vmatprep.subr.mxu0 0.0
        %2055 = vmatpush2.msra.mxu0 0.0
        %2056 = vmatprep.subr.mxu0 0.0
        %2057 = vmatpush2.msra.mxu0 0.0
        %2058 = vmatprep.subr.mxu0 0.0
        %2059 = vmatpush2.msra.mxu0 0.0
        %2060 = vmatprep.mubr.f32.mxu0 0.0
        %2061 = vmatmul.mubr.f32.gmra.mxu0 %v1991
        %v2062 = vpop.f32.mrf.mxu0
        %v2063 = vadd.f32 0.0, %v2062
        %v2064 = vpop.f32.mrf.mxu0
        %v2065 = vadd.f32 0.0, %v2064
        %2066 = vmatprep.mubr.f32.mxu0 0.0
        %2067 = vmatmul.mubr.f32.gmra.mxu0 %v1994
        %v2068 = vpop.f32.mrf.mxu0
        %v2069 = vadd.f32 0.0, %v2068
        %v2070 = vpop.f32.mrf.mxu0
        %v2071 = vadd.f32 0.0, %v2070
        %2072 = vdwg.mxu0
        %v2074 = vsel %vm374, %v1963, 0
        %v2077 = vsel %vm374, %v1964, 0
        %2079 = vmatprep.subr.mxu0 0.0
        %2080 = vmatpush1.msra.mxu0 0.0
        %2081 = vmatprep.subr.mxu0 0.0
        %2082 = vmatpush1.msra.mxu0 0.0
        %2083 = vmatprep.subr.mxu0 0.0
        %2084 = vmatpush1.msra.mxu0 0.0
        %2085 = vmatprep.subr.mxu0 0.0
        %2086 = vmatpush1.msra.mxu0 0.0
        %2087 = vmatprep.subr.mxu0 0.0
        %2088 = vmatpush1.msra.mxu0 0.0
        %2089 = vmatprep.subr.mxu0 0.0
        %2090 = vmatpush1.msra.mxu0 0.0
        %2091 = vmatprep.subr.mxu0 0.0
        %2092 = vmatpush1.msra.mxu0 0.0
        %2093 = vmatprep.subr.mxu0 0.0
        %2094 = vmatpush1.msra.mxu0 0.0
        %2095 = vmatprep.subr.mxu0 0.0
        %2096 = vmatpush1.msra.mxu0 0.0
        %2097 = vmatprep.subr.mxu0 0.0
        %2098 = vmatpush1.msra.mxu0 0.0
        %2099 = vmatprep.subr.mxu0 0.0
        %2100 = vmatpush1.msra.mxu0 0.0
        %2101 = vmatprep.subr.mxu0 0.0
        %2102 = vmatpush1.msra.mxu0 0.0
        %2103 = vmatprep.subr.mxu0 0.0
        %2104 = vmatpush1.msra.mxu0 0.0
        %2105 = vmatprep.subr.mxu0 0.0
        %2106 = vmatpush1.msra.mxu0 0.0
        %2107 = vmatprep.subr.mxu0 %v1962
        %2108 = vmatpush1.msra.mxu0 %v1961
        %2109 = vmatprep.subr.mxu0 %v1960
        %2110 = vmatpush1.msra.mxu0 %v1959
        %2111 = vmatprep.subr.mxu0 0.0
        %2112 = vmatpush2.msra.mxu0 0.0
        %2113 = vmatprep.subr.mxu0 0.0
        %2114 = vmatpush2.msra.mxu0 0.0
        %2115 = vmatprep.subr.mxu0 0.0
        %2116 = vmatpush2.msra.mxu0 0.0
        %2117 = vmatprep.subr.mxu0 0.0
        %2118 = vmatpush2.msra.mxu0 0.0
        %2119 = vmatprep.subr.mxu0 0.0
        %2120 = vmatpush2.msra.mxu0 0.0
        %2121 = vmatprep.subr.mxu0 0.0
        %2122 = vmatpush2.msra.mxu0 0.0
        %2123 = vmatprep.subr.mxu0 0.0
        %2124 = vmatpush2.msra.mxu0 0.0
        %2125 = vmatprep.subr.mxu0 0.0
        %2126 = vmatpush2.msra.mxu0 0.0
        %2127 = vmatprep.subr.mxu0 0.0
        %2128 = vmatpush2.msra.mxu0 0.0
        %2129 = vmatprep.subr.mxu0 0.0
        %2130 = vmatpush2.msra.mxu0 0.0
        %2131 = vmatprep.subr.mxu0 0.0
        %2132 = vmatpush2.msra.mxu0 0.0
        %2133 = vmatprep.subr.mxu0 0.0
        %2134 = vmatpush2.msra.mxu0 0.0
        %2135 = vmatprep.subr.mxu0 0.0
        %2136 = vmatpush2.msra.mxu0 0.0
        %2137 = vmatprep.subr.mxu0 0.0
        %2138 = vmatpush2.msra.mxu0 0.0
        %2139 = vmatprep.subr.mxu0 0.0
        %2140 = vmatpush2.msra.mxu0 0.0
        %2141 = vmatprep.subr.mxu0 0.0
        %2142 = vmatpush2.msra.mxu0 0.0
        %2143 = vmatprep.mubr.f32.mxu0 0.0
        %2144 = vmatmul.mubr.f32.gmra.mxu0 %v2074
        %v2145 = vpop.f32.mrf.mxu0
        %v2146 = vadd.f32 %v2063, %v2145
        %v2147 = vpop.f32.mrf.mxu0
        %v2148 = vadd.f32 %v2065, %v2147
        %2149 = vmatprep.mubr.f32.mxu0 0.0
        %2150 = vmatmul.mubr.f32.gmra.mxu0 %v2077
        %v2151 = vpop.f32.mrf.mxu0
        %v2152 = vadd.f32 %v2069, %v2151
        %v2153 = vpop.f32.mrf.mxu0
        %v2154 = vadd.f32 %v2071, %v2153
        %2155 = vdwg.mxu0
        %2156 = vrot.lane.b32.xlu0 %v1934, 15
        %v2157 = vpop.permute.xlu0 %2156
        %2158 = vrot.lane.b32.xlu0 %v1936, 15
        %v2159 = vpop.permute.xlu0 %2158
        %2162 = vrot.lane.b32.xlu0 %v1933, 15
        %v2163 = vpop.permute.xlu0 %2162
        %2164 = vrot.lane.b32.xlu0 %v1935, 15
        %v2165 = vpop.permute.xlu0 %2164
        %v2166 = vsel %vm1097, %v2163, %v2157
        %v2167 = vsel %vm1097, %v2165, %v2159
        %v2172 = vsel %vm1097, %v2157, %v2163
        %v2173 = vsel %vm1097, %v2159, %v2165
        %v2174 = vmul.f32 %v2172, %v1112
        %v2175 = vmul.f32 %v2166, %v1116
        %v2176 = vmul.f32 %v2173, %v1112
        %v2177 = vmul.f32 %v2167, %v1116
        %s2178 = scalar_lea.vmem [#allocation7], 32
        %v2179 = vld [vmem:[%s2178] sm:$0xff]
        %v2180 = vld [vmem:[%s2178 + $0x8] sm:$0xff]
        %v2182 = vsel %vm374, %v2179, 0
        %v2185 = vsel %vm374, %v2180, 0
        %2187 = vmatprep.subr.mxu0 0.0
        %2188 = vmatpush1.msra.mxu0 0.0
        %2189 = vmatprep.subr.mxu0 0.0
        %2190 = vmatpush1.msra.mxu0 0.0
        %2191 = vmatprep.subr.mxu0 0.0
        %2192 = vmatpush1.msra.mxu0 0.0
        %2193 = vmatprep.subr.mxu0 0.0
        %2194 = vmatpush1.msra.mxu0 0.0
        %2195 = vmatprep.subr.mxu0 0.0
        %2196 = vmatpush1.msra.mxu0 0.0
        %2197 = vmatprep.subr.mxu0 0.0
        %2198 = vmatpush1.msra.mxu0 0.0
        %2199 = vmatprep.subr.mxu0 0.0
        %2200 = vmatpush1.msra.mxu0 0.0
        %2201 = vmatprep.subr.mxu0 0.0
        %2202 = vmatpush1.msra.mxu0 0.0
        %2203 = vmatprep.subr.mxu0 0.0
        %2204 = vmatpush1.msra.mxu0 0.0
        %2205 = vmatprep.subr.mxu0 0.0
        %2206 = vmatpush1.msra.mxu0 0.0
        %2207 = vmatprep.subr.mxu0 0.0
        %2208 = vmatpush1.msra.mxu0 0.0
        %2209 = vmatprep.subr.mxu0 0.0
        %2210 = vmatpush1.msra.mxu0 0.0
        %2211 = vmatprep.subr.mxu0 0.0
        %2212 = vmatpush1.msra.mxu0 0.0
        %2213 = vmatprep.subr.mxu0 0.0
        %2214 = vmatpush1.msra.mxu0 0.0
        %2215 = vmatprep.subr.mxu0 %v2177
        %2216 = vmatpush1.msra.mxu0 %v2176
        %2217 = vmatprep.subr.mxu0 %v2175
        %2218 = vmatpush1.msra.mxu0 %v2174
        %2219 = vmatprep.subr.mxu0 0.0
        %2220 = vmatpush2.msra.mxu0 0.0
        %2221 = vmatprep.subr.mxu0 0.0
        %2222 = vmatpush2.msra.mxu0 0.0
        %2223 = vmatprep.subr.mxu0 0.0
        %2224 = vmatpush2.msra.mxu0 0.0
        %2225 = vmatprep.subr.mxu0 0.0
        %2226 = vmatpush2.msra.mxu0 0.0
        %2227 = vmatprep.subr.mxu0 0.0
        %2228 = vmatpush2.msra.mxu0 0.0
        %2229 = vmatprep.subr.mxu0 0.0
        %2230 = vmatpush2.msra.mxu0 0.0
        %2231 = vmatprep.subr.mxu0 0.0
        %2232 = vmatpush2.msra.mxu0 0.0
        %2233 = vmatprep.subr.mxu0 0.0
        %2234 = vmatpush2.msra.mxu0 0.0
        %2235 = vmatprep.subr.mxu0 0.0
        %2236 = vmatpush2.msra.mxu0 0.0
        %2237 = vmatprep.subr.mxu0 0.0
        %2238 = vmatpush2.msra.mxu0 0.0
        %2239 = vmatprep.subr.mxu0 0.0
        %2240 = vmatpush2.msra.mxu0 0.0
        %2241 = vmatprep.subr.mxu0 0.0
        %2242 = vmatpush2.msra.mxu0 0.0
        %2243 = vmatprep.subr.mxu0 0.0
        %2244 = vmatpush2.msra.mxu0 0.0
        %2245 = vmatprep.subr.mxu0 0.0
        %2246 = vmatpush2.msra.mxu0 0.0
        %2247 = vmatprep.subr.mxu0 0.0
        %2248 = vmatpush2.msra.mxu0 0.0
        %2249 = vmatprep.subr.mxu0 0.0
        %2250 = vmatpush2.msra.mxu0 0.0
        %2251 = vmatprep.mubr.f32.mxu0 0.0
        %2252 = vmatmul.mubr.f32.gmra.mxu0 %v2182
        %v2253 = vpop.f32.mrf.mxu0
        %v2254 = vadd.f32 0.0, %v2253
        %v2255 = vpop.f32.mrf.mxu0
        %v2256 = vadd.f32 0.0, %v2255
        %2257 = vmatprep.mubr.f32.mxu0 0.0
        %2258 = vmatmul.mubr.f32.gmra.mxu0 %v2185
        %v2259 = vpop.f32.mrf.mxu0
        %v2260 = vadd.f32 0.0, %v2259
        %v2261 = vpop.f32.mrf.mxu0
        %v2262 = vadd.f32 0.0, %v2261
        %2263 = vdwg.mxu0
        %v2264 = vadd.f32 %v2146, %v2254
        %v2265 = vadd.f32 %v2148, %v2256
        %v2266 = vadd.f32 %v2152, %v2260
        %v2267 = vadd.f32 %v2154, %v2262
        %2268 = vrot.lane.b32.xlu0 %v1934, 1
        %v2269 = vpop.permute.xlu0 %2268
        %2270 = vrot.lane.b32.xlu0 %v1936, 1
        %v2271 = vpop.permute.xlu0 %2270
        %2274 = vrot.lane.b32.xlu0 %v1933, 1
        %v2275 = vpop.permute.xlu0 %2274
        %2276 = vrot.lane.b32.xlu0 %v1935, 1
        %v2277 = vpop.permute.xlu0 %2276
        %v2278 = vsel %vm1223, %v2275, %v2269
        %v2279 = vsel %vm1223, %v2277, %v2271
        %v2284 = vsel %vm1223, %v2269, %v2275
        %v2285 = vsel %vm1223, %v2271, %v2277
        %v2286 = vmul.f32 %v2284, %v1238
        %v2287 = vmul.f32 %v2278, %v1242
        %v2288 = vmul.f32 %v2285, %v1238
        %v2289 = vmul.f32 %v2279, %v1242
        %s2290 = scalar_lea.vmem [#allocation7], 48
        %v2291 = vld [vmem:[%s2290] sm:$0xff]
        %v2292 = vld [vmem:[%s2290 + $0x8] sm:$0xff]
        %v2294 = vsel %vm374, %v2291, 0
        %v2297 = vsel %vm374, %v2292, 0
        %2299 = vmatprep.subr.mxu0 0.0
        %2300 = vmatpush1.msra.mxu0 0.0
        %2301 = vmatprep.subr.mxu0 0.0
        %2302 = vmatpush1.msra.mxu0 0.0
        %2303 = vmatprep.subr.mxu0 0.0
        %2304 = vmatpush1.msra.mxu0 0.0
        %2305 = vmatprep.subr.mxu0 0.0
        %2306 = vmatpush1.msra.mxu0 0.0
        %2307 = vmatprep.subr.mxu0 0.0
        %2308 = vmatpush1.msra.mxu0 0.0
        %2309 = vmatprep.subr.mxu0 0.0
        %2310 = vmatpush1.msra.mxu0 0.0
        %2311 = vmatprep.subr.mxu0 0.0
        %2312 = vmatpush1.msra.mxu0 0.0
        %2313 = vmatprep.subr.mxu0 0.0
        %2314 = vmatpush1.msra.mxu0 0.0
        %2315 = vmatprep.subr.mxu0 0.0
        %2316 = vmatpush1.msra.mxu0 0.0
        %2317 = vmatprep.subr.mxu0 0.0
        %2318 = vmatpush1.msra.mxu0 0.0
        %2319 = vmatprep.subr.mxu0 0.0
        %2320 = vmatpush1.msra.mxu0 0.0
        %2321 = vmatprep.subr.mxu0 0.0
        %2322 = vmatpush1.msra.mxu0 0.0
        %2323 = vmatprep.subr.mxu0 0.0
        %2324 = vmatpush1.msra.mxu0 0.0
        %2325 = vmatprep.subr.mxu0 0.0
        %2326 = vmatpush1.msra.mxu0 0.0
        %2327 = vmatprep.subr.mxu0 %v2289
        %2328 = vmatpush1.msra.mxu0 %v2288
        %2329 = vmatprep.subr.mxu0 %v2287
        %2330 = vmatpush1.msra.mxu0 %v2286
        %2331 = vmatprep.subr.mxu0 0.0
        %2332 = vmatpush2.msra.mxu0 0.0
        %2333 = vmatprep.subr.mxu0 0.0
        %2334 = vmatpush2.msra.mxu0 0.0
        %2335 = vmatprep.subr.mxu0 0.0
        %2336 = vmatpush2.msra.mxu0 0.0
        %2337 = vmatprep.subr.mxu0 0.0
        %2338 = vmatpush2.msra.mxu0 0.0
        %2339 = vmatprep.subr.mxu0 0.0
        %2340 = vmatpush2.msra.mxu0 0.0
        %2341 = vmatprep.subr.mxu0 0.0
        %2342 = vmatpush2.msra.mxu0 0.0
        %2343 = vmatprep.subr.mxu0 0.0
        %2344 = vmatpush2.msra.mxu0 0.0
        %2345 = vmatprep.subr.mxu0 0.0
        %2346 = vmatpush2.msra.mxu0 0.0
        %2347 = vmatprep.subr.mxu0 0.0
        %2348 = vmatpush2.msra.mxu0 0.0
        %2349 = vmatprep.subr.mxu0 0.0
        %2350 = vmatpush2.msra.mxu0 0.0
        %2351 = vmatprep.subr.mxu0 0.0
        %2352 = vmatpush2.msra.mxu0 0.0
        %2353 = vmatprep.subr.mxu0 0.0
        %2354 = vmatpush2.msra.mxu0 0.0
        %2355 = vmatprep.subr.mxu0 0.0
        %2356 = vmatpush2.msra.mxu0 0.0
        %2357 = vmatprep.subr.mxu0 0.0
        %2358 = vmatpush2.msra.mxu0 0.0
        %2359 = vmatprep.subr.mxu0 0.0
        %2360 = vmatpush2.msra.mxu0 0.0
        %2361 = vmatprep.subr.mxu0 0.0
        %2362 = vmatpush2.msra.mxu0 0.0
        %2363 = vmatprep.mubr.f32.mxu0 0.0
        %2364 = vmatmul.mubr.f32.gmra.mxu0 %v2294
        %v2365 = vpop.f32.mrf.mxu0
        %v2366 = vadd.f32 0.0, %v2365
        %v2367 = vpop.f32.mrf.mxu0
        %v2368 = vadd.f32 0.0, %v2367
        %2369 = vmatprep.mubr.f32.mxu0 0.0
        %2370 = vmatmul.mubr.f32.gmra.mxu0 %v2297
        %v2371 = vpop.f32.mrf.mxu0
        %v2372 = vadd.f32 0.0, %v2371
        %v2373 = vpop.f32.mrf.mxu0
        %v2374 = vadd.f32 0.0, %v2373
        %2375 = vdwg.mxu0
        %v2376 = vadd.f32 %v2264, %v2366
        %v2377 = vadd.f32 %v2265, %v2368
        %v2378 = vadd.f32 %v2266, %v2372
        %v2379 = vadd.f32 %v2267, %v2374
        %s2380 = scalar_lea.vmem [#allocation7], 64
        %v2381 = vld [vmem:[%s2380] sm:$0xff]
        %v2382 = vld [vmem:[%s2380 + $0x8] sm:$0xff]
        %v2384 = vsel %vm374, %v2381, 0
        %v2387 = vsel %vm374, %v2382, 0
        %2389 = vmatprep.subr.mxu0 0.0
        %2390 = vmatpush1.msra.mxu0 0.0
        %2391 = vmatprep.subr.mxu0 0.0
        %2392 = vmatpush1.msra.mxu0 0.0
        %2393 = vmatprep.subr.mxu0 0.0
        %2394 = vmatpush1.msra.mxu0 0.0
        %2395 = vmatprep.subr.mxu0 0.0
        %2396 = vmatpush1.msra.mxu0 0.0
        %2397 = vmatprep.subr.mxu0 0.0
        %2398 = vmatpush1.msra.mxu0 0.0
        %2399 = vmatprep.subr.mxu0 0.0
        %2400 = vmatpush1.msra.mxu0 0.0
        %2401 = vmatprep.subr.mxu0 0.0
        %2402 = vmatpush1.msra.mxu0 0.0
        %2403 = vmatprep.subr.mxu0 0.0
        %2404 = vmatpush1.msra.mxu0 0.0
        %2405 = vmatprep.subr.mxu0 0.0
        %2406 = vmatpush1.msra.mxu0 0.0
        %2407 = vmatprep.subr.mxu0 0.0
        %2408 = vmatpush1.msra.mxu0 0.0
        %2409 = vmatprep.subr.mxu0 0.0
        %2410 = vmatpush1.msra.mxu0 0.0
        %2411 = vmatprep.subr.mxu0 0.0
        %2412 = vmatpush1.msra.mxu0 0.0
        %2413 = vmatprep.subr.mxu0 0.0
        %2414 = vmatpush1.msra.mxu0 0.0
        %2415 = vmatprep.subr.mxu0 0.0
        %2416 = vmatpush1.msra.mxu0 0.0
        %2417 = vmatprep.subr.mxu0 %v1936
        %2418 = vmatpush1.msra.mxu0 %v1935
        %2419 = vmatprep.subr.mxu0 %v1934
        %2420 = vmatpush1.msra.mxu0 %v1933
        %2421 = vmatprep.subr.mxu0 0.0
        %2422 = vmatpush2.msra.mxu0 0.0
        %2423 = vmatprep.subr.mxu0 0.0
        %2424 = vmatpush2.msra.mxu0 0.0
        %2425 = vmatprep.subr.mxu0 0.0
        %2426 = vmatpush2.msra.mxu0 0.0
        %2427 = vmatprep.subr.mxu0 0.0
        %2428 = vmatpush2.msra.mxu0 0.0
        %2429 = vmatprep.subr.mxu0 0.0
        %2430 = vmatpush2.msra.mxu0 0.0
        %2431 = vmatprep.subr.mxu0 0.0
        %2432 = vmatpush2.msra.mxu0 0.0
        %2433 = vmatprep.subr.mxu0 0.0
        %2434 = vmatpush2.msra.mxu0 0.0
        %2435 = vmatprep.subr.mxu0 0.0
        %2436 = vmatpush2.msra.mxu0 0.0
        %2437 = vmatprep.subr.mxu0 0.0
        %2438 = vmatpush2.msra.mxu0 0.0
        %2439 = vmatprep.subr.mxu0 0.0
        %2440 = vmatpush2.msra.mxu0 0.0
        %2441 = vmatprep.subr.mxu0 0.0
        %2442 = vmatpush2.msra.mxu0 0.0
        %2443 = vmatprep.subr.mxu0 0.0
        %2444 = vmatpush2.msra.mxu0 0.0
        %2445 = vmatprep.subr.mxu0 0.0
        %2446 = vmatpush2.msra.mxu0 0.0
        %2447 = vmatprep.subr.mxu0 0.0
        %2448 = vmatpush2.msra.mxu0 0.0
        %2449 = vmatprep.subr.mxu0 0.0
        %2450 = vmatpush2.msra.mxu0 0.0
        %2451 = vmatprep.subr.mxu0 0.0
        %2452 = vmatpush2.msra.mxu0 0.0
        %2453 = vmatprep.mubr.f32.mxu0 0.0
        %2454 = vmatmul.mubr.f32.gmra.mxu0 %v2384
        %v2455 = vpop.f32.mrf.mxu0
        %v2456 = vadd.f32 0.0, %v2455
        %v2457 = vpop.f32.mrf.mxu0
        %v2458 = vadd.f32 0.0, %v2457
        %2459 = vmatprep.mubr.f32.mxu0 0.0
        %2460 = vmatmul.mubr.f32.gmra.mxu0 %v2387
        %v2461 = vpop.f32.mrf.mxu0
        %v2462 = vadd.f32 0.0, %v2461
        %v2463 = vpop.f32.mrf.mxu0
        %v2464 = vadd.f32 0.0, %v2463
        %2465 = vdwg.mxu0
        %v2466 = vadd.f32 %v2376, %v2456
        %v2467 = vadd.f32 %v2377, %v2458
        %v2468 = vadd.f32 %v2378, %v2462
        %v2469 = vadd.f32 %v2379, %v2464
        %2470 = vrot.lane.b32.xlu0 %v1933, 127
        %v2471 = vpop.permute.xlu0 %2470
        %2472 = vrot.lane.b32.xlu0 %v1934, 127
        %v2473 = vpop.permute.xlu0 %2472
        %2474 = vrot.lane.b32.xlu0 %v1935, 127
        %v2475 = vpop.permute.xlu0 %2474
        %2476 = vrot.lane.b32.xlu0 %v1936, 127
        %v2477 = vpop.permute.xlu0 %2476
        %v2478 = vsel %vm1437, %v2471, %v2473
        %v2479 = vsel %vm1437, %v2475, %v2477
        %v2486 = vsel %vm1437, %v2473, %v2471
        %v2487 = vsel %vm1437, %v2477, %v2475
        %v2488 = vmul.f32 %v2478, %v1454
        %v2489 = vmul.f32 %v2486, %v1458
        %v2490 = vmul.f32 %v2479, %v1454
        %v2491 = vmul.f32 %v2487, %v1458
        %s2492 = scalar_lea.vmem [#allocation7], 80
        %v2493 = vld [vmem:[%s2492] sm:$0xff]
        %v2494 = vld [vmem:[%s2492 + $0x8] sm:$0xff]
        %v2496 = vsel %vm374, %v2493, 0
        %v2499 = vsel %vm374, %v2494, 0
        %2501 = vmatprep.subr.mxu0 0.0
        %2502 = vmatpush1.msra.mxu0 0.0
        %2503 = vmatprep.subr.mxu0 0.0
        %2504 = vmatpush1.msra.mxu0 0.0
        %2505 = vmatprep.subr.mxu0 0.0
        %2506 = vmatpush1.msra.mxu0 0.0
        %2507 = vmatprep.subr.mxu0 0.0
        %2508 = vmatpush1.msra.mxu0 0.0
        %2509 = vmatprep.subr.mxu0 0.0
        %2510 = vmatpush1.msra.mxu0 0.0
        %2511 = vmatprep.subr.mxu0 0.0
        %2512 = vmatpush1.msra.mxu0 0.0
        %2513 = vmatprep.subr.mxu0 0.0
        %2514 = vmatpush1.msra.mxu0 0.0
        %2515 = vmatprep.subr.mxu0 0.0
        %2516 = vmatpush1.msra.mxu0 0.0
        %2517 = vmatprep.subr.mxu0 0.0
        %2518 = vmatpush1.msra.mxu0 0.0
        %2519 = vmatprep.subr.mxu0 0.0
        %2520 = vmatpush1.msra.mxu0 0.0
        %2521 = vmatprep.subr.mxu0 0.0
        %2522 = vmatpush1.msra.mxu0 0.0
        %2523 = vmatprep.subr.mxu0 0.0
        %2524 = vmatpush1.msra.mxu0 0.0
        %2525 = vmatprep.subr.mxu0 0.0
        %2526 = vmatpush1.msra.mxu0 0.0
        %2527 = vmatprep.subr.mxu0 0.0
        %2528 = vmatpush1.msra.mxu0 0.0
        %2529 = vmatprep.subr.mxu0 %v2491
        %2530 = vmatpush1.msra.mxu0 %v2490
        %2531 = vmatprep.subr.mxu0 %v2489
        %2532 = vmatpush1.msra.mxu0 %v2488
        %2533 = vmatprep.subr.mxu0 0.0
        %2534 = vmatpush2.msra.mxu0 0.0
        %2535 = vmatprep.subr.mxu0 0.0
        %2536 = vmatpush2.msra.mxu0 0.0
        %2537 = vmatprep.subr.mxu0 0.0
        %2538 = vmatpush2.msra.mxu0 0.0
        %2539 = vmatprep.subr.mxu0 0.0
        %2540 = vmatpush2.msra.mxu0 0.0
        %2541 = vmatprep.subr.mxu0 0.0
        %2542 = vmatpush2.msra.mxu0 0.0
        %2543 = vmatprep.subr.mxu0 0.0
        %2544 = vmatpush2.msra.mxu0 0.0
        %2545 = vmatprep.subr.mxu0 0.0
        %2546 = vmatpush2.msra.mxu0 0.0
        %2547 = vmatprep.subr.mxu0 0.0
        %2548 = vmatpush2.msra.mxu0 0.0
        %2549 = vmatprep.subr.mxu0 0.0
        %2550 = vmatpush2.msra.mxu0 0.0
        %2551 = vmatprep.subr.mxu0 0.0
        %2552 = vmatpush2.msra.mxu0 0.0
        %2553 = vmatprep.subr.mxu0 0.0
        %2554 = vmatpush2.msra.mxu0 0.0
        %2555 = vmatprep.subr.mxu0 0.0
        %2556 = vmatpush2.msra.mxu0 0.0
        %2557 = vmatprep.subr.mxu0 0.0
        %2558 = vmatpush2.msra.mxu0 0.0
        %2559 = vmatprep.subr.mxu0 0.0
        %2560 = vmatpush2.msra.mxu0 0.0
        %2561 = vmatprep.subr.mxu0 0.0
        %2562 = vmatpush2.msra.mxu0 0.0
        %2563 = vmatprep.subr.mxu0 0.0
        %2564 = vmatpush2.msra.mxu0 0.0
        %2565 = vmatprep.mubr.f32.mxu0 0.0
        %2566 = vmatmul.mubr.f32.gmra.mxu0 %v2496
        %v2567 = vpop.f32.mrf.mxu0
        %v2568 = vadd.f32 0.0, %v2567
        %v2569 = vpop.f32.mrf.mxu0
        %v2570 = vadd.f32 0.0, %v2569
        %2571 = vmatprep.mubr.f32.mxu0 0.0
        %2572 = vmatmul.mubr.f32.gmra.mxu0 %v2499
        %v2573 = vpop.f32.mrf.mxu0
        %v2574 = vadd.f32 0.0, %v2573
        %v2575 = vpop.f32.mrf.mxu0
        %v2576 = vadd.f32 0.0, %v2575
        %2577 = vdwg.mxu0
        %v2578 = vadd.f32 %v2466, %v2568
        %v2579 = vadd.f32 %v2467, %v2570
        %v2580 = vadd.f32 %v2468, %v2574
        %v2581 = vadd.f32 %v2469, %v2576
        %2582 = vrot.lane.b32.xlu0 %v1933, 113
        %v2583 = vpop.permute.xlu0 %2582
        %2584 = vrot.lane.b32.xlu0 %v1934, 113
        %v2585 = vpop.permute.xlu0 %2584
        %2586 = vrot.lane.b32.xlu0 %v1935, 113
        %v2587 = vpop.permute.xlu0 %2586
        %2588 = vrot.lane.b32.xlu0 %v1936, 113
        %v2589 = vpop.permute.xlu0 %2588
        %v2590 = vsel %vm1563, %v2583, %v2585
        %v2591 = vsel %vm1563, %v2587, %v2589
        %v2598 = vsel %vm1563, %v2585, %v2583
        %v2599 = vsel %vm1563, %v2589, %v2587
        %v2600 = vmul.f32 %v2590, %v1580
        %v2601 = vmul.f32 %v2598, %v1584
        %v2602 = vmul.f32 %v2591, %v1580
        %v2603 = vmul.f32 %v2599, %v1584
        %s2604 = scalar_lea.vmem [#allocation7], 96
        %v2605 = vld [vmem:[%s2604] sm:$0xff]
        %v2606 = vld [vmem:[%s2604 + $0x8] sm:$0xff]
        %v2608 = vsel %vm374, %v2605, 0
        %v2611 = vsel %vm374, %v2606, 0
        %2613 = vmatprep.subr.mxu0 0.0
        %2614 = vmatpush1.msra.mxu0 0.0
        %2615 = vmatprep.subr.mxu0 0.0
        %2616 = vmatpush1.msra.mxu0 0.0
        %2617 = vmatprep.subr.mxu0 0.0
        %2618 = vmatpush1.msra.mxu0 0.0
        %2619 = vmatprep.subr.mxu0 0.0
        %2620 = vmatpush1.msra.mxu0 0.0
        %2621 = vmatprep.subr.mxu0 0.0
        %2622 = vmatpush1.msra.mxu0 0.0
        %2623 = vmatprep.subr.mxu0 0.0
        %2624 = vmatpush1.msra.mxu0 0.0
        %2625 = vmatprep.subr.mxu0 0.0
        %2626 = vmatpush1.msra.mxu0 0.0
        %2627 = vmatprep.subr.mxu0 0.0
        %2628 = vmatpush1.msra.mxu0 0.0
        %2629 = vmatprep.subr.mxu0 0.0
        %2630 = vmatpush1.msra.mxu0 0.0
        %2631 = vmatprep.subr.mxu0 0.0
        %2632 = vmatpush1.msra.mxu0 0.0
        %2633 = vmatprep.subr.mxu0 0.0
        %2634 = vmatpush1.msra.mxu0 0.0
        %2635 = vmatprep.subr.mxu0 0.0
        %2636 = vmatpush1.msra.mxu0 0.0
        %2637 = vmatprep.subr.mxu0 0.0
        %2638 = vmatpush1.msra.mxu0 0.0
        %2639 = vmatprep.subr.mxu0 0.0
        %2640 = vmatpush1.msra.mxu0 0.0
        %2641 = vmatprep.subr.mxu0 %v2603
        %2642 = vmatpush1.msra.mxu0 %v2602
        %2643 = vmatprep.subr.mxu0 %v2601
        %2644 = vmatpush1.msra.mxu0 %v2600
        %2645 = vmatprep.subr.mxu0 0.0
        %2646 = vmatpush2.msra.mxu0 0.0
        %2647 = vmatprep.subr.mxu0 0.0
        %2648 = vmatpush2.msra.mxu0 0.0
        %2649 = vmatprep.subr.mxu0 0.0
        %2650 = vmatpush2.msra.mxu0 0.0
        %2651 = vmatprep.subr.mxu0 0.0
        %2652 = vmatpush2.msra.mxu0 0.0
        %2653 = vmatprep.subr.mxu0 0.0
        %2654 = vmatpush2.msra.mxu0 0.0
        %2655 = vmatprep.subr.mxu0 0.0
        %2656 = vmatpush2.msra.mxu0 0.0
        %2657 = vmatprep.subr.mxu0 0.0
        %2658 = vmatpush2.msra.mxu0 0.0
        %2659 = vmatprep.subr.mxu0 0.0
        %2660 = vmatpush2.msra.mxu0 0.0
        %2661 = vmatprep.subr.mxu0 0.0
        %2662 = vmatpush2.msra.mxu0 0.0
        %2663 = vmatprep.subr.mxu0 0.0
        %2664 = vmatpush2.msra.mxu0 0.0
        %2665 = vmatprep.subr.mxu0 0.0
        %2666 = vmatpush2.msra.mxu0 0.0
        %2667 = vmatprep.subr.mxu0 0.0
        %2668 = vmatpush2.msra.mxu0 0.0
        %2669 = vmatprep.subr.mxu0 0.0
        %2670 = vmatpush2.msra.mxu0 0.0
        %2671 = vmatprep.subr.mxu0 0.0
        %2672 = vmatpush2.msra.mxu0 0.0
        %2673 = vmatprep.subr.mxu0 0.0
        %2674 = vmatpush2.msra.mxu0 0.0
        %2675 = vmatprep.subr.mxu0 0.0
        %2676 = vmatpush2.msra.mxu0 0.0
        %2677 = vmatprep.mubr.f32.mxu0 0.0
        %2678 = vmatmul.mubr.f32.gmra.mxu0 %v2608
        %v2679 = vpop.f32.mrf.mxu0
        %v2680 = vadd.f32 0.0, %v2679
        %v2681 = vpop.f32.mrf.mxu0
        %v2682 = vadd.f32 0.0, %v2681
        %2683 = vmatprep.mubr.f32.mxu0 0.0
        %2684 = vmatmul.mubr.f32.gmra.mxu0 %v2611
        %v2685 = vpop.f32.mrf.mxu0
        %v2686 = vadd.f32 0.0, %v2685
        %v2687 = vpop.f32.mrf.mxu0
        %v2688 = vadd.f32 0.0, %v2687
        %2689 = vdwg.mxu0
        %v2690 = vadd.f32 %v2578, %v2680
        %v2691 = vadd.f32 %v2579, %v2682
        %v2692 = vadd.f32 %v2580, %v2686
        %v2693 = vadd.f32 %v2581, %v2688
        %2694 = vrot.lane.b32.xlu0 %v1933, 112
        %v2695 = vpop.permute.xlu0 %2694
        %2696 = vrot.lane.b32.xlu0 %v1934, 112
        %v2697 = vpop.permute.xlu0 %2696
        %2698 = vrot.lane.b32.xlu0 %v1935, 112
        %v2699 = vpop.permute.xlu0 %2698
        %2700 = vrot.lane.b32.xlu0 %v1936, 112
        %v2701 = vpop.permute.xlu0 %2700
        %v2702 = vsel %vm1689, %v2695, %v2697
        %v2703 = vsel %vm1689, %v2699, %v2701
        %v2710 = vsel %vm1689, %v2697, %v2695
        %v2711 = vsel %vm1689, %v2701, %v2699
        %v2712 = vmul.f32 %v2702, %v1706
        %v2713 = vmul.f32 %v2710, %v1710
        %v2714 = vmul.f32 %v2703, %v1706
        %v2715 = vmul.f32 %v2711, %v1710
        %s2716 = scalar_lea.vmem [#allocation7], 112
        %v2717 = vld [vmem:[%s2716] sm:$0xff]
        %v2718 = vld [vmem:[%s2716 + $0x8] sm:$0xff]
        %v2720 = vsel %vm374, %v2717, 0
        %v2723 = vsel %vm374, %v2718, 0
        %2725 = vmatprep.subr.mxu0 0.0
        %2726 = vmatpush1.msra.mxu0 0.0
        %2727 = vmatprep.subr.mxu0 0.0
        %2728 = vmatpush1.msra.mxu0 0.0
        %2729 = vmatprep.subr.mxu0 0.0
        %2730 = vmatpush1.msra.mxu0 0.0
        %2731 = vmatprep.subr.mxu0 0.0
        %2732 = vmatpush1.msra.mxu0 0.0
        %2733 = vmatprep.subr.mxu0 0.0
        %2734 = vmatpush1.msra.mxu0 0.0
        %2735 = vmatprep.subr.mxu0 0.0
        %2736 = vmatpush1.msra.mxu0 0.0
        %2737 = vmatprep.subr.mxu0 0.0
        %2738 = vmatpush1.msra.mxu0 0.0
        %2739 = vmatprep.subr.mxu0 0.0
        %2740 = vmatpush1.msra.mxu0 0.0
        %2741 = vmatprep.subr.mxu0 0.0
        %2742 = vmatpush1.msra.mxu0 0.0
        %2743 = vmatprep.subr.mxu0 0.0
        %2744 = vmatpush1.msra.mxu0 0.0
        %2745 = vmatprep.subr.mxu0 0.0
        %2746 = vmatpush1.msra.mxu0 0.0
        %2747 = vmatprep.subr.mxu0 0.0
        %2748 = vmatpush1.msra.mxu0 0.0
        %2749 = vmatprep.subr.mxu0 0.0
        %2750 = vmatpush1.msra.mxu0 0.0
        %2751 = vmatprep.subr.mxu0 0.0
        %2752 = vmatpush1.msra.mxu0 0.0
        %2753 = vmatprep.subr.mxu0 %v2715
        %2754 = vmatpush1.msra.mxu0 %v2714
        %2755 = vmatprep.subr.mxu0 %v2713
        %2756 = vmatpush1.msra.mxu0 %v2712
        %2757 = vmatprep.subr.mxu0 0.0
        %2758 = vmatpush2.msra.mxu0 0.0
        %2759 = vmatprep.subr.mxu0 0.0
        %2760 = vmatpush2.msra.mxu0 0.0
        %2761 = vmatprep.subr.mxu0 0.0
        %2762 = vmatpush2.msra.mxu0 0.0
        %2763 = vmatprep.subr.mxu0 0.0
        %2764 = vmatpush2.msra.mxu0 0.0
        %2765 = vmatprep.subr.mxu0 0.0
        %2766 = vmatpush2.msra.mxu0 0.0
        %2767 = vmatprep.subr.mxu0 0.0
        %2768 = vmatpush2.msra.mxu0 0.0
        %2769 = vmatprep.subr.mxu0 0.0
        %2770 = vmatpush2.msra.mxu0 0.0
        %2771 = vmatprep.subr.mxu0 0.0
        %2772 = vmatpush2.msra.mxu0 0.0
        %2773 = vmatprep.subr.mxu0 0.0
        %2774 = vmatpush2.msra.mxu0 0.0
        %2775 = vmatprep.subr.mxu0 0.0
        %2776 = vmatpush2.msra.mxu0 0.0
        %2777 = vmatprep.subr.mxu0 0.0
        %2778 = vmatpush2.msra.mxu0 0.0
        %2779 = vmatprep.subr.mxu0 0.0
        %2780 = vmatpush2.msra.mxu0 0.0
        %2781 = vmatprep.subr.mxu0 0.0
        %2782 = vmatpush2.msra.mxu0 0.0
        %2783 = vmatprep.subr.mxu0 0.0
        %2784 = vmatpush2.msra.mxu0 0.0
        %2785 = vmatprep.subr.mxu0 0.0
        %2786 = vmatpush2.msra.mxu0 0.0
        %2787 = vmatprep.subr.mxu0 0.0
        %2788 = vmatpush2.msra.mxu0 0.0
        %2789 = vmatprep.mubr.f32.mxu0 0.0
        %2790 = vmatmul.mubr.f32.gmra.mxu0 %v2720
        %v2791 = vpop.f32.mrf.mxu0
        %v2792 = vadd.f32 0.0, %v2791
        %v2793 = vpop.f32.mrf.mxu0
        %v2794 = vadd.f32 0.0, %v2793
        %2795 = vmatprep.mubr.f32.mxu0 0.0
        %2796 = vmatmul.mubr.f32.gmra.mxu0 %v2723
        %v2797 = vpop.f32.mrf.mxu0
        %v2798 = vadd.f32 0.0, %v2797
        %v2799 = vpop.f32.mrf.mxu0
        %v2800 = vadd.f32 0.0, %v2799
        %2801 = vdwg.mxu0
        %v2802 = vadd.f32 %v2690, %v2792
        %v2803 = vadd.f32 %v2691, %v2794
        %v2804 = vadd.f32 %v2692, %v2798
        %v2805 = vadd.f32 %v2693, %v2800
        %2806 = vrot.lane.b32.xlu0 %v1933, 111
        %v2807 = vpop.permute.xlu0 %2806
        %2808 = vrot.lane.b32.xlu0 %v1934, 111
        %v2809 = vpop.permute.xlu0 %2808
        %2810 = vrot.lane.b32.xlu0 %v1935, 111
        %v2811 = vpop.permute.xlu0 %2810
        %2812 = vrot.lane.b32.xlu0 %v1936, 111
        %v2813 = vpop.permute.xlu0 %2812
        %v2814 = vsel %vm1815, %v2807, %v2809
        %v2815 = vsel %vm1815, %v2811, %v2813
        %v2822 = vsel %vm1815, %v2809, %v2807
        %v2823 = vsel %vm1815, %v2813, %v2811
        %v2824 = vmul.f32 %v2814, %v1832
        %v2825 = vmul.f32 %v2822, %v1836
        %v2826 = vmul.f32 %v2815, %v1832
        %v2827 = vmul.f32 %v2823, %v1836
        %s2828 = scalar_lea.vmem [#allocation7], 128
        %v2829 = vld [vmem:[%s2828] sm:$0xff]
        %v2830 = vld [vmem:[%s2828 + $0x8] sm:$0xff]
        %v2832 = vsel %vm374, %v2829, 0
        %v2835 = vsel %vm374, %v2830, 0
        %2837 = vmatprep.subr.mxu0 0.0
        %2838 = vmatpush1.msra.mxu0 0.0
        %2839 = vmatprep.subr.mxu0 0.0
        %2840 = vmatpush1.msra.mxu0 0.0
        %2841 = vmatprep.subr.mxu0 0.0
        %2842 = vmatpush1.msra.mxu0 0.0
        %2843 = vmatprep.subr.mxu0 0.0
        %2844 = vmatpush1.msra.mxu0 0.0
        %2845 = vmatprep.subr.mxu0 0.0
        %2846 = vmatpush1.msra.mxu0 0.0
        %2847 = vmatprep.subr.mxu0 0.0
        %2848 = vmatpush1.msra.mxu0 0.0
        %2849 = vmatprep.subr.mxu0 0.0
        %2850 = vmatpush1.msra.mxu0 0.0
        %2851 = vmatprep.subr.mxu0 0.0
        %2852 = vmatpush1.msra.mxu0 0.0
        %2853 = vmatprep.subr.mxu0 0.0
        %2854 = vmatpush1.msra.mxu0 0.0
        %2855 = vmatprep.subr.mxu0 0.0
        %2856 = vmatpush1.msra.mxu0 0.0
        %2857 = vmatprep.subr.mxu0 0.0
        %2858 = vmatpush1.msra.mxu0 0.0
        %2859 = vmatprep.subr.mxu0 0.0
        %2860 = vmatpush1.msra.mxu0 0.0
        %2861 = vmatprep.subr.mxu0 0.0
        %2862 = vmatpush1.msra.mxu0 0.0
        %2863 = vmatprep.subr.mxu0 0.0
        %2864 = vmatpush1.msra.mxu0 0.0
        %2865 = vmatprep.subr.mxu0 %v2827
        %2866 = vmatpush1.msra.mxu0 %v2826
        %2867 = vmatprep.subr.mxu0 %v2825
        %2868 = vmatpush1.msra.mxu0 %v2824
        %2869 = vmatprep.subr.mxu0 0.0
        %2870 = vmatpush2.msra.mxu0 0.0
        %2871 = vmatprep.subr.mxu0 0.0
        %2872 = vmatpush2.msra.mxu0 0.0
        %2873 = vmatprep.subr.mxu0 0.0
        %2874 = vmatpush2.msra.mxu0 0.0
        %2875 = vmatprep.subr.mxu0 0.0
        %2876 = vmatpush2.msra.mxu0 0.0
        %2877 = vmatprep.subr.mxu0 0.0
        %2878 = vmatpush2.msra.mxu0 0.0
        %2879 = vmatprep.subr.mxu0 0.0
        %2880 = vmatpush2.msra.mxu0 0.0
        %2881 = vmatprep.subr.mxu0 0.0
        %2882 = vmatpush2.msra.mxu0 0.0
        %2883 = vmatprep.subr.mxu0 0.0
        %2884 = vmatpush2.msra.mxu0 0.0
        %2885 = vmatprep.subr.mxu0 0.0
        %2886 = vmatpush2.msra.mxu0 0.0
        %2887 = vmatprep.subr.mxu0 0.0
        %2888 = vmatpush2.msra.mxu0 0.0
        %2889 = vmatprep.subr.mxu0 0.0
        %2890 = vmatpush2.msra.mxu0 0.0
        %2891 = vmatprep.subr.mxu0 0.0
        %2892 = vmatpush2.msra.mxu0 0.0
        %2893 = vmatprep.subr.mxu0 0.0
        %2894 = vmatpush2.msra.mxu0 0.0
        %2895 = vmatprep.subr.mxu0 0.0
        %2896 = vmatpush2.msra.mxu0 0.0
        %2897 = vmatprep.subr.mxu0 0.0
        %2898 = vmatpush2.msra.mxu0 0.0
        %2899 = vmatprep.subr.mxu0 0.0
        %2900 = vmatpush2.msra.mxu0 0.0
        %2901 = vmatprep.mubr.f32.mxu0 0.0
        %2902 = vmatmul.mubr.f32.gmra.mxu0 %v2832
        %v2903 = vpop.f32.mrf.mxu0
        %v2904 = vadd.f32 0.0, %v2903
        %v2905 = vpop.f32.mrf.mxu0
        %v2906 = vadd.f32 0.0, %v2905
        %2907 = vmatprep.mubr.f32.mxu0 0.0
        %2908 = vmatmul.mubr.f32.gmra.mxu0 %v2835
        %v2909 = vpop.f32.mrf.mxu0
        %v2910 = vadd.f32 0.0, %v2909
        %v2911 = vpop.f32.mrf.mxu0
        %v2912 = vadd.f32 0.0, %v2911
        %2913 = vdwg.mxu0
        %v2914 = vadd.f32 %v2802, %v2904
        %v2915 = vadd.f32 %v2803, %v2906
        %v2916 = vadd.f32 %v2804, %v2910
        %v2917 = vadd.f32 %v2805, %v2912
        %v2918 = vadd.f32 %v368, %v2914
        %v2919 = vadd.f32 %v369, %v2915
        %v2920 = vadd.f32 %v370, %v2916
        %v2921 = vadd.f32 %v371, %v2917
        %2922 = vst [vmem:[%s367] sm:$0xff] %v2918
        %2923 = vst [vmem:[%s367 + $0x8] sm:$0xff] %v2919
        %2924 = vst [vmem:[%s367 + $0x10] sm:$0xff] %v2920
        %2925 = vst [vmem:[%s367 + $0x18] sm:$0xff] %v2921
        %s2926 = sand.u32 %s208, 1
        %s2927 = scalar_lea.sflag [#allocation4], %s2926
        %s2928 = sand.u32 %s208, 1
        %s2929 = smul.addr %s2928, 32
        %s2930 = scalar_lea.vmem [#allocation10], %s2929
        // Predicated region
        $region69: #{tpu_custom_call.1} parent=51 // pred_check
          %p2931 = pneg %p218
        $region70: #{tpu_custom_call.1} parent=51 // pred_check_branch
          %2933 = sbr.rel (%p2931) target = $region72
        $region71: #{tpu_custom_call.1} parent=51 // pred_region
          %s2935 = ssub.s32 512, 512
          %2936 = vsyncadd %s2927, %s2935
          %s2937 = smul.addr %s27, 4
          %s2938 = smul.addr %s2937, 128
          %s2939 = scalar_lea.hbm %s8, %s2938
          %s2940 = sshll.u32 %s2930, 4
          %s2941 = int_to_ptr.vmem [resolvable:$true] %s2940
          %2946 = dma.vmem_to_hbm [thread:$0]  %s2941, 512, %s2939, %s2927, 256, 256, 16
        $region72: #{tpu_custom_call.1} parent=51 // pred_fallthru
          _
      $region52: #{tpu_custom_call.1} parent=5 // pred_fallthru
        _
      %p2947 = scmp.le.s32.totalorder 2, %s22
      // Predicated region
      $region73: #{tpu_custom_call.1} parent=5 // pred_check
        %p2948 = pneg %p2947
      $region74: #{tpu_custom_call.1} parent=5 // pred_check_branch
        %2950 = sbr.rel (%p2948) target = $region76
      $region75: #{tpu_custom_call.1} parent=5 // pred_region
        %s2951 = ssub.s32 %s22, 2
        // Predicated region
        $region77: #{tpu_custom_call.1} parent=75 // pred_check
          %p2952 = pneg %p224
        $region78: #{tpu_custom_call.1} parent=75 // pred_check_branch
          %2954 = sbr.rel (%p2952) target = $region80
        $region79: #{tpu_custom_call.1} parent=75 // pred_region
          %s2955 = sand.u32 %s209, 1
          %s2956 = scalar_lea.sflag [#allocation4], %s2955
          %s2957 = sand.u32 %s209, 1
          %s2958 = smul.addr %s2957, 32
          %s2959 = scalar_lea.vmem [#allocation10], %s2958
          %2960 = dma.done %s2956, 512
        $region80: #{tpu_custom_call.1} parent=75 // pred_fallthru
          _
      $region76: #{tpu_custom_call.1} parent=5 // pred_fallthru
        _
    $region6: #{tpu_custom_call.1} parent=1 // loop_footer
      %s26 = sadd.s32 1, %s22
    $region7: #{tpu_custom_call.1} parent=1 // loop_footer_branch
      %21 = sbr.rel target = $region3
    $region8: #{tpu_custom_call.1} parent=1 // loop_exit
      _
    %2961 = vsyncpa [#allocation3], 1
    %s2962 = scalar_lea.sflag [#allocation3], 1
    %2963 = vsyncpa %s2962, 1
    %2964 = vsyncpa [#allocation6], 1
    %2965 = vsyncpa [#allocation9], 1
    %s2966 = scalar_lea.sflag [#allocation9], 1
    %2967 = vsyncpa %s2966, 1
    %2968 = vsyncpa [#allocation4], 1
    %s2969 = scalar_lea.sflag [#allocation4], 1
    %2970 = vsyncpa %s2969, 1

</llo_original>
